<compile_context>
chip_gen: v5e
topology: v5e:2x2
jax: 0.10.0
libtpu: 0.0.40
codegen_flags: <defaults>
</compile_context>

<pallas_src>
import jax
import jax.numpy as jnp
from jax.experimental import pallas as pl
from jax.experimental.pallas import tpu as pltpu

KSIZE = 5          # conv kernel size (fixed by the PyTorch module)
N_CLASSES = 10     # real output classes (fc2 is padded to 128 lanes internally)
CPAD = 128         # lane-dense channel padding for conv kernel outputs
NEG_INF = -1e30    # mask value for padded logits columns in the fused log_softmax


def _round_up(x, m):
    return ((x + m - 1) // m) * m


def _pad_k(k):
    """Contraction-dim padding: 128-lane multiple when large, 8-sublane multiple when small."""
    return _round_up(k, 128) if k > 128 else _round_up(k, 8)


def _vmem_budgets():
    """(budget used for M-tile sizing, explicit vmem_limit_bytes), per TPU generation."""
    cap = 128 * 1024 * 1024
    try:
        cap = int(pltpu.get_tpu_info().vmem_capacity_bytes)
    except Exception:
        pass
    if cap <= 64 * 1024 * 1024:                      # v7x-class: 64 MiB per TensorCore
        return 20 * 1024 * 1024, min(cap, 32 * 1024 * 1024)
    return 40 * 1024 * 1024, 64 * 1024 * 1024        # v5e / v6e: raise scoped default


def _choose_tile_m(M, K, N, n_streams, extra_f32_tiles=2, extra_fixed_bytes=0):
    """Fixed M-tile with honest VMEM accounting.

    Budgets double-buffered bf16 input tiles, double-buffered weights/bias/output and
    the live f32 accumulator tiles. Guarantees >= 2 grid steps whenever M allows it
    (megacore sharding on v7x) and prefers a tile that divides M exactly.
    """
    budget, _ = _vmem_budgets()
    fixed = 2 * (K * N * 2 + N * 4) + extra_fixed_bytes   # dbl-buffered weight + bias
    per_row = (2 * n_streams * K * 2                      # dbl-buffered bf16 input tiles
               + 2 * N * 4                                # dbl-buffered output tile
               + extra_f32_tiles * N * 4)                 # live f32 accumulators
    avail = max(budget - fixed, 2 * 1024 * 1024)
    cap = max(16, min(512, (avail // per_row) // 16 * 16))
    align = 16
    m_pad = _round_up(M, align)
    if m_pad <= align:
        return align, align
    tile = min(cap, _round_up((m_pad + 1) // 2, align))   # aim for >= 2 grid steps
    while tile > align and m_pad % tile != 0:             # prefer exact divisor of m_pad
        tile -= align
    return tile, m_pad


# ----------------------------------------------------------------------------
# Pallas kernels
# ----------------------------------------------------------------------------
def conv_pool_relu_kernel(a_ref, w_ref, b_ref, o_ref):
    """Fused conv (im2col matmul) + 2x2/2 max-pool + bias + ReLU.

    a_ref holds the 4 pool-tap patch tiles stacked on axis 0; pooling is a RUNNING
    elementwise max over the four MXU results (only 2 f32 tiles live at a time).
    Bias is added after the max (exact: bias is constant per channel), then ReLU.
    """
    w = w_ref[...]
    m = jnp.dot(a_ref[0], w, preferred_element_type=jnp.float32)
    m = jnp.maximum(m, jnp.dot(a_ref[1], w, preferred_element_type=jnp.float32))
    m = jnp.maximum(m, jnp.dot(a_ref[2], w, preferred_element_type=jnp.float32))
    m = jnp.maximum(m, jnp.dot(a_ref[3], w, preferred_element_type=jnp.float32))
    o_ref[...] = jnp.maximum(m + b_ref[...], 0.0).astype(o_ref.dtype)


def mlp_head_kernel(x_ref, w1_ref, b1_ref, w2_ref, b2_ref, o_ref):
    """Fused fc1 + ReLU + (dropout=identity in eval) + fc2 + log_softmax.

    Padded fc2 columns carry bias = NEG_INF so their exp() underflows to exactly 0
    and the log_softmax over the 10 real classes is unchanged.
    """
    h = jnp.dot(x_ref[...], w1_ref[...], preferred_element_type=jnp.float32)
    h = jnp.maximum(h + b1_ref[...], 0.0)
    # TODO(synk): training-mode dropout RNG not modeled (eval: identity).
    logits = jnp.dot(h.astype(w2_ref.dtype), w2_ref[...],
                     preferred_element_type=jnp.float32) + b2_ref[...]
    mx = jnp.max(logits, axis=-1, keepdims=True)
    s = logits - mx
    lse = jnp.log(jnp.sum(jnp.exp(s), axis=-1, keepdims=True))
    o_ref[...] = (s - lse).astype(o_ref.dtype)


# ----------------------------------------------------------------------------
# Pallas wrappers
# ----------------------------------------------------------------------------
def conv_pool_relu(a, w, b):
    """a: (4, M, K) bf16 stacked pool-tap patch matrices; w: (K, N) bf16; b: (1, N) f32."""
    _, M, K = a.shape
    Kw, N = w.shape
    assert K == Kw and N % 128 == 0
    tile_m, m_pad = _choose_tile_m(M, K, N, n_streams=4, extra_f32_tiles=2)
    if m_pad != M:
        a = jnp.pad(a, ((0, 0), (0, m_pad - M), (0, 0)))
    _, vmem_limit = _vmem_budgets()
    out = pl.pallas_call(
        conv_pool_relu_kernel,
        out_shape=jax.ShapeDtypeStruct((m_pad, N), jnp.bfloat16),
        grid=(m_pad // tile_m,),
        in_specs=[
            pl.BlockSpec((4, tile_m, K), lambda i: (0, i, 0)),
            pl.BlockSpec((K, N), lambda i: (0, 0)),
            pl.BlockSpec((1, N), lambda i: (0, 0)),
        ],
        out_specs=pl.BlockSpec((tile_m, N), lambda i: (i, 0)),
        compiler_params=pltpu.CompilerParams(
            dimension_semantics=("parallel",),
            vmem_limit_bytes=vmem_limit),
    )(a, w, b)
    return out[:M]


def mlp_head(x, w1, b1, w2, b2):
    """x: (B, K) bf16; returns (B, 128) f32 log-probs (cols >= N_CLASSES are padding)."""
    B, K = x.shape
    N1 = int(w1.shape[1])
    N2 = int(w2.shape[1])
    tile_b, b_pad = _choose_tile_m(B, K, max(N1, N2), n_streams=1, extra_f32_tiles=3,
                                   extra_fixed_bytes=2 * (N1 * N2 * 2 + N2 * 4))
    if b_pad != B:
        x = jnp.pad(x, ((0, b_pad - B), (0, 0)))
    _, vmem_limit = _vmem_budgets()
    out = pl.pallas_call(
        mlp_head_kernel,
        out_shape=jax.ShapeDtypeStruct((b_pad, N2), jnp.float32),
        grid=(b_pad // tile_b,),
        in_specs=[
            pl.BlockSpec((tile_b, K), lambda i: (i, 0)),
            pl.BlockSpec((K, N1), lambda i: (0, 0)),
            pl.BlockSpec((1, N1), lambda i: (0, 0)),
            pl.BlockSpec((N1, N2), lambda i: (0, 0)),
            pl.BlockSpec((1, N2), lambda i: (0, 0)),
        ],
        out_specs=pl.BlockSpec((tile_b, N2), lambda i: (i, 0)),
        compiler_params=pltpu.CompilerParams(
            dimension_semantics=("parallel",),
            vmem_limit_bytes=vmem_limit),
    )(x, w1, b1, w2, b2)
    return out[:B]


# ----------------------------------------------------------------------------
# Glue: pool-tap im2col patch extraction (pure slice/concat plumbing)
# ----------------------------------------------------------------------------
def pool_tap_patches(x, k, c_real, k_pad):
    """x: (B, H, W, C) NHWC. Returns the 4 pool-tap im2col matrices stacked on axis 0:
    shape (4, B*PH*PW, k_pad); rows ordered (b, pooled_h, pooled_w), columns
    (kh, kw, cin) over the c_real REAL channels, zero-padded to k_pad."""
    # TODO(synk): im2col still runs as XLA slices in the wrapper; in-kernel patch
    # extraction (shift-and-matmul on a VMEM-resident activation tile) would remove
    # this HBM materialization at large batch sizes.
    x = x[..., :c_real]
    B, H, W, C = x.shape
    OH, OW = H - k + 1, W - k + 1
    assert OH % 2 == 0 and OW % 2 == 0
    PH, PW = OH // 2, OW // 2
    cols = k * k * C
    mats = []
    for pi in range(2):
        for pj in range(2):
            taps = []
            for di in range(k):
                for dj in range(k):
                    taps.append(x[:, pi + di: pi + di + 2 * PH: 2,
                                     pj + dj: pj + dj + 2 * PW: 2, :])
            mats.append(jnp.concatenate(taps, axis=-1).reshape(B * PH * PW, cols))
    a = jnp.stack(mats, axis=0)                                   # (4, M, cols)
    if k_pad > cols:
        a = jnp.pad(a, ((0, 0), (0, 0), (0, k_pad - cols)))
    return a, (PH, PW)


# ----------------------------------------------------------------------------
# Net forward (eval mode)
# ----------------------------------------------------------------------------
def net_forward(x_nchw, kp, conv_features=(32, 64)):
    c1, c2 = conv_features
    B = x_nchw.shape[0]
    x = jnp.transpose(x_nchw, (0, 2, 3, 1)).astype(jnp.bfloat16)      # NCHW -> NHWC

    # conv1 + max-pool(2) + relu, one fused kernel (K padded 25 -> 32 only)
    a1, (ph1, pw1) = pool_tap_patches(x, KSIZE, c_real=x.shape[-1],
                                      k_pad=kp["w1"].shape[0])
    y1 = conv_pool_relu(a1, kp["w1"], kp["b1"])                       # (B*12*12, 128)
    y1 = y1.reshape(B, ph1, pw1, CPAD)

    # conv2 + max-pool(2) + relu: contraction over the c1 REAL channels only (K=896)
    a2, (ph2, pw2) = pool_tap_patches(y1, KSIZE, c_real=c1,
                                      k_pad=kp["w2"].shape[0])
    y2 = conv_pool_relu(a2, kp["w2"], kp["b2"])                       # (B*4*4, 128)

    # Drop structural-zero lanes before the fc head; NHWC flatten matches wfc1 rows
    flat = y2.reshape(B, ph2, pw2, CPAD)[..., :c2].reshape(B, ph2 * pw2 * c2)

    # fc1 + relu + dropout(identity) + fc2 + log_softmax, one fused kernel
    out = mlp_head(flat, kp["wfc1"], kp["bfc1"], kp["wfc2"], kp["bfc2"])
    return out[:, :N_CLASSES]


# ----------------------------------------------------------------------------
# Parameters: PyTorch-native layouts -> padded/permuted kernel layouts
# ----------------------------------------------------------------------------
def init_torch_params(key, in_channels=1, out_channels=10, conv_features=(32, 64)):
    """Deterministic synthetic parameters in PyTorch-native layouts."""
    c1, c2 = conv_features
    k = KSIZE
    conv_output_size = c2 * 4 * 4
    ks = jax.random.split(key, 8)
    s = 0.05
    return {
        "conv1_w": s * jax.random.normal(ks[0], (c1, in_channels, k, k), jnp.float32),
        "conv1_b": s * jax.random.normal(ks[1], (c1,), jnp.float32),
        "conv2_w": s * jax.random.normal(ks[2], (c2, c1, k, k), jnp.float32),
        "conv2_b": s * jax.random.normal(ks[3], (c2,), jnp.float32),
        "fc1_w": s * jax.random.normal(ks[4], (128, conv_output_size), jnp.float32),
        "fc1_b": s * jax.random.normal(ks[5], (128,), jnp.float32),
        "fc2_w": s * jax.random.normal(ks[6], (out_channels, 128), jnp.float32),
        "fc2_b": s * jax.random.normal(ks[7], (out_channels,), jnp.float32),
    }


def prepare_params(p):
    """Convert PyTorch-layout params to the padded / permuted kernel layout.

    - conv weights (cout, cin, kh, kw) -> (kh*kw*cin_real padded, cout padded to 128)
      im2col layout; the contraction dim uses only the REAL input channels.
    - fc1 rows permuted from NCHW-flatten order to NHWC-flatten order over the 64
      real channels (K = 1024, no structural zeros).
    - fc2 padded 10 -> 128 output columns; padded bias entries NEG_INF so the fused
      log_softmax ignores them exactly.
    - weights bf16, biases f32.
    """
    k = KSIZE

    w1 = p["conv1_w"]
    c1, cin = int(w1.shape[0]), int(w1.shape[1])
    k1 = k * k * cin
    w1k = jnp.transpose(w1, (2, 3, 1, 0)).reshape(k1, c1)
    w1k = jnp.pad(w1k, ((0, _pad_k(k1) - k1), (0, CPAD - c1)))

    w2 = p["conv2_w"]
    c2 = int(w2.shape[0])
    k2 = k * k * c1
    w2k = jnp.transpose(w2, (2, 3, 1, 0)).reshape(k2, c2)
    w2k = jnp.pad(w2k, ((0, _pad_k(k2) - k2), (0, CPAD - c2)))

    fc1_w = p["fc1_w"]                                           # (128, c2*s*s)
    n_hidden = int(fc1_w.shape[0])
    spatial = int(round((fc1_w.shape[1] // c2) ** 0.5))
    w3 = fc1_w.reshape(n_hidden, c2, spatial, spatial)
    wfc1 = jnp.transpose(w3, (2, 3, 1, 0)).reshape(spatial * spatial * c2, n_hidden)

    fc2_w = p["fc2_w"]                                           # (n_out, 128)
    n_out = int(fc2_w.shape[0])
    wfc2 = jnp.pad(fc2_w.T, ((0, 0), (0, CPAD - n_out)))
    bfc2 = jnp.concatenate(
        [p["fc2_b"].astype(jnp.float32),
         jnp.full((CPAD - n_out,), NEG_INF, jnp.float32)])

    return {
        "w1": w1k.astype(jnp.bfloat16),
        "b1": jnp.pad(p["conv1_b"], (0, CPAD - c1)).reshape(1, CPAD).astype(jnp.float32),
        "w2": w2k.astype(jnp.bfloat16),
        "b2": jnp.pad(p["conv2_b"], (0, CPAD - c2)).reshape(1, CPAD).astype(jnp.float32),
        "wfc1": wfc1.astype(jnp.bfloat16),
        "bfc1": p["fc1_b"].reshape(1, n_hidden).astype(jnp.float32),
        "wfc2": wfc2.astype(jnp.bfloat16),
        "bfc2": bfc2.reshape(1, CPAD),
    }


if __name__ == "__main__":
    key = jax.random.PRNGKey(0)
    k_x, k_p = jax.random.split(key)

    B, C, H, W = 2, 1, 28, 28                                    # 28x28 is fixed by the module
    x = jax.random.normal(k_x, (B, C, H, W), jnp.float32)
    kparams = prepare_params(init_torch_params(k_p))

    out = jax.jit(net_forward)(x, kparams)
    out = jax.block_until_ready(out)

    assert out.shape == (B, N_CLASSES), out.shape
    assert bool(jnp.all(jnp.isfinite(out)))
    # log_softmax rows should exp-sum to 1 (f32 epilogue; bf16 matmul drift doesn't affect this)
    assert jnp.allclose(jnp.sum(jnp.exp(out), axis=1), 1.0, atol=2e-3)
    print("KERNEL_OK")
</pallas_src>

<mosaic_0001>
module attributes {stable_mosaic.version = 11 : i64} {
  func.func @conv_pool_relu_kernel(%arg0: i32, %arg1: memref<4x144x32xbf16, #tpu.memory_space<vmem>>, %arg2: memref<32x128xbf16, #tpu.memory_space<vmem>>, %arg3: memref<1x128xf32, #tpu.memory_space<vmem>>, %arg4: memref<144x128xbf16, #tpu.memory_space<vmem>>) attributes {dimension_semantics = [#tpu.dimension_semantics<parallel>], iteration_bounds = array<i64: 2>, scalar_prefetch = 0 : i64, scratch_operands = 0 : i64, tpu.core_type = #tpu.core_type<tc>, window_params = [{transform_indices = @transform_0, window_bounds = array<i64: 4, 144, 32>}, {pipeline_mode = #tpu.pipeline_mode<synchronous>, transform_indices = @transform_1, window_bounds = array<i64: 32, 128>}, {pipeline_mode = #tpu.pipeline_mode<synchronous>, transform_indices = @transform_2, window_bounds = array<i64: 1, 128>}, {transform_indices = @transform_3, window_bounds = array<i64: 144, 128>}]} {
    %c0 = arith.constant 0 : index
    %c0_0 = arith.constant 0 : index
    %0 = vector.load %arg2[%c0, %c0_0] : memref<32x128xbf16, #tpu.memory_space<vmem>>, vector<32x128xbf16>
    %c0_1 = arith.constant 0 : index
    %c0_2 = arith.constant 0 : index
    %c0_3 = arith.constant 0 : index
    %1 = vector.load %arg1[%c0_1, %c0_2, %c0_3] : memref<4x144x32xbf16, #tpu.memory_space<vmem>>, vector<1x144x32xbf16>
    %2 = vector.shape_cast %1 : vector<1x144x32xbf16> to vector<144x32xbf16>
    %cst = arith.constant dense<0.000000e+00> : vector<144x128xf32>
    %3 = tpu.matmul %2, %0, %cst {dimension_numbers = #tpu.dot_dimension_numbers<[1], [0], [0], [1], [0, 0, 1, 1], [], []>} : vector<144x32xbf16>, vector<32x128xbf16>, vector<144x128xf32> -> vector<144x128xf32>
    %c1 = arith.constant 1 : index
    %c0_4 = arith.constant 0 : index
    %c0_5 = arith.constant 0 : index
    %4 = vector.load %arg1[%c1, %c0_4, %c0_5] : memref<4x144x32xbf16, #tpu.memory_space<vmem>>, vector<1x144x32xbf16>
    %5 = vector.shape_cast %4 : vector<1x144x32xbf16> to vector<144x32xbf16>
    %cst_6 = arith.constant dense<0.000000e+00> : vector<144x128xf32>
    %6 = tpu.matmul %5, %0, %cst_6 {dimension_numbers = #tpu.dot_dimension_numbers<[1], [0], [0], [1], [0, 0, 1, 1], [], []>} : vector<144x32xbf16>, vector<32x128xbf16>, vector<144x128xf32> -> vector<144x128xf32>
    %7 = arith.maximumf %3, %6 : vector<144x128xf32>
    %c2 = arith.constant 2 : index
    %c0_7 = arith.constant 0 : index
    %c0_8 = arith.constant 0 : index
    %8 = vector.load %arg1[%c2, %c0_7, %c0_8] : memref<4x144x32xbf16, #tpu.memory_space<vmem>>, vector<1x144x32xbf16>
    %9 = vector.shape_cast %8 : vector<1x144x32xbf16> to vector<144x32xbf16>
    %cst_9 = arith.constant dense<0.000000e+00> : vector<144x128xf32>
    %10 = tpu.matmul %9, %0, %cst_9 {dimension_numbers = #tpu.dot_dimension_numbers<[1], [0], [0], [1], [0, 0, 1, 1], [], []>} : vector<144x32xbf16>, vector<32x128xbf16>, vector<144x128xf32> -> vector<144x128xf32>
    %11 = arith.maximumf %7, %10 : vector<144x128xf32>
    %c3 = arith.constant 3 : index
    %c0_10 = arith.constant 0 : index
    %c0_11 = arith.constant 0 : index
    %12 = vector.load %arg1[%c3, %c0_10, %c0_11] : memref<4x144x32xbf16, #tpu.memory_space<vmem>>, vector<1x144x32xbf16>
    %13 = vector.shape_cast %12 : vector<1x144x32xbf16> to vector<144x32xbf16>
    %cst_12 = arith.constant dense<0.000000e+00> : vector<144x128xf32>
    %14 = tpu.matmul %13, %0, %cst_12 {dimension_numbers = #tpu.dot_dimension_numbers<[1], [0], [0], [1], [0, 0, 1, 1], [], []>} : vector<144x32xbf16>, vector<32x128xbf16>, vector<144x128xf32> -> vector<144x128xf32>
    %15 = arith.maximumf %11, %14 : vector<144x128xf32>
    %c0_13 = arith.constant 0 : index
    %c0_14 = arith.constant 0 : index
    %16 = vector.load %arg3[%c0_13, %c0_14] : memref<1x128xf32, #tpu.memory_space<vmem>>, vector<1x128xf32>
    %17 = vector.broadcast %16 : vector<1x128xf32> to vector<144x128xf32>
    %18 = arith.addf %15, %17 : vector<144x128xf32>
    %cst_15 = arith.constant 0.000000e+00 : f32
    %19 = vector.broadcast %cst_15 : f32 to vector<144x128xf32>
    %20 = arith.maximumf %18, %19 : vector<144x128xf32>
    %21 = arith.truncf %20 : vector<144x128xf32> to vector<144x128xbf16>
    %c0_16 = arith.constant 0 : index
    %c0_17 = arith.constant 0 : index
    %22 = vector.load %arg4[%c0_16, %c0_17] : memref<144x128xbf16, #tpu.memory_space<vmem>>, vector<144x128xbf16>
    tpu.vector_store %arg4[%c0_16, %c0_17], %21 {strides = array<i32>} : memref<144x128xbf16, #tpu.memory_space<vmem>>, vector<144x128xbf16>,
    return
  }
  func.func @transform_0(%arg0: i32) -> (i32, i32, i32) {
    %c0_i32 = arith.constant 0 : i32
    %c0_i32_0 = arith.constant 0 : i32
    %c0_i32_1 = arith.constant 0 : i32
    return %c0_i32, %arg0, %c0_i32_0 : i32, i32, i32
  }
  func.func @transform_1(%arg0: i32) -> (i32, i32) {
    %c0_i32 = arith.constant 0 : i32
    %c0_i32_0 = arith.constant 0 : i32
    %c0_i32_1 = arith.constant 0 : i32
    return %c0_i32, %c0_i32_0 : i32, i32
  }
  func.func @transform_2(%arg0: i32) -> (i32, i32) {
    %c0_i32 = arith.constant 0 : i32
    %c0_i32_0 = arith.constant 0 : i32
    %c0_i32_1 = arith.constant 0 : i32
    return %c0_i32, %c0_i32_0 : i32, i32
  }
  func.func @transform_3(%arg0: i32) -> (i32, i32) {
    %c0_i32 = arith.constant 0 : i32
    %c0_i32_0 = arith.constant 0 : i32
    return %arg0, %c0_i32 : i32, i32
  }
}

module attributes {stable_mosaic.version = 11 : i64} {
  func.func @conv_pool_relu_kernel(%arg0: i32, %arg1: memref<4x16x896xbf16, #tpu.memory_space<vmem>>, %arg2: memref<896x128xbf16, #tpu.memory_space<vmem>>, %arg3: memref<1x128xf32, #tpu.memory_space<vmem>>, %arg4: memref<16x128xbf16, #tpu.memory_space<vmem>>) attributes {dimension_semantics = [#tpu.dimension_semantics<parallel>], iteration_bounds = array<i64: 2>, scalar_prefetch = 0 : i64, scratch_operands = 0 : i64, tpu.core_type = #tpu.core_type<tc>, window_params = [{transform_indices = @transform_0, window_bounds = array<i64: 4, 16, 896>}, {pipeline_mode = #tpu.pipeline_mode<synchronous>, transform_indices = @transform_1, window_bounds = array<i64: 896, 128>}, {pipeline_mode = #tpu.pipeline_mode<synchronous>, transform_indices = @transform_2, window_bounds = array<i64: 1, 128>}, {transform_indices = @transform_3, window_bounds = array<i64: 16, 128>}]} {
    %c0 = arith.constant 0 : index
    %c0_0 = arith.constant 0 : index
    %0 = vector.load %arg2[%c0, %c0_0] : memref<896x128xbf16, #tpu.memory_space<vmem>>, vector<896x128xbf16>
    %c0_1 = arith.constant 0 : index
    %c0_2 = arith.constant 0 : index
    %c0_3 = arith.constant 0 : index
    %1 = vector.load %arg1[%c0_1, %c0_2, %c0_3] : memref<4x16x896xbf16, #tpu.memory_space<vmem>>, vector<1x16x896xbf16>
    %2 = vector.shape_cast %1 : vector<1x16x896xbf16> to vector<16x896xbf16>
    %cst = arith.constant dense<0.000000e+00> : vector<16x128xf32>
    %3 = tpu.matmul %2, %0, %cst {dimension_numbers = #tpu.dot_dimension_numbers<[1], [0], [0], [1], [0, 0, 1, 1], [], []>} : vector<16x896xbf16>, vector<896x128xbf16>, vector<16x128xf32> -> vector<16x128xf32>
    %c1 = arith.constant 1 : index
    %c0_4 = arith.constant 0 : index
    %c0_5 = arith.constant 0 : index
    %4 = vector.load %arg1[%c1, %c0_4, %c0_5] : memref<4x16x896xbf16, #tpu.memory_space<vmem>>, vector<1x16x896xbf16>
    %5 = vector.shape_cast %4 : vector<1x16x896xbf16> to vector<16x896xbf16>
    %cst_6 = arith.constant dense<0.000000e+00> : vector<16x128xf32>
    %6 = tpu.matmul %5, %0, %cst_6 {dimension_numbers = #tpu.dot_dimension_numbers<[1], [0], [0], [1], [0, 0, 1, 1], [], []>} : vector<16x896xbf16>, vector<896x128xbf16>, vector<16x128xf32> -> vector<16x128xf32>
    %7 = arith.maximumf %3, %6 : vector<16x128xf32>
    %c2 = arith.constant 2 : index
    %c0_7 = arith.constant 0 : index
    %c0_8 = arith.constant 0 : index
    %8 = vector.load %arg1[%c2, %c0_7, %c0_8] : memref<4x16x896xbf16, #tpu.memory_space<vmem>>, vector<1x16x896xbf16>
    %9 = vector.shape_cast %8 : vector<1x16x896xbf16> to vector<16x896xbf16>
    %cst_9 = arith.constant dense<0.000000e+00> : vector<16x128xf32>
    %10 = tpu.matmul %9, %0, %cst_9 {dimension_numbers = #tpu.dot_dimension_numbers<[1], [0], [0], [1], [0, 0, 1, 1], [], []>} : vector<16x896xbf16>, vector<896x128xbf16>, vector<16x128xf32> -> vector<16x128xf32>
    %11 = arith.maximumf %7, %10 : vector<16x128xf32>
    %c3 = arith.constant 3 : index
    %c0_10 = arith.constant 0 : index
    %c0_11 = arith.constant 0 : index
    %12 = vector.load %arg1[%c3, %c0_10, %c0_11] : memref<4x16x896xbf16, #tpu.memory_space<vmem>>, vector<1x16x896xbf16>
    %13 = vector.shape_cast %12 : vector<1x16x896xbf16> to vector<16x896xbf16>
    %cst_12 = arith.constant dense<0.000000e+00> : vector<16x128xf32>
    %14 = tpu.matmul %13, %0, %cst_12 {dimension_numbers = #tpu.dot_dimension_numbers<[1], [0], [0], [1], [0, 0, 1, 1], [], []>} : vector<16x896xbf16>, vector<896x128xbf16>, vector<16x128xf32> -> vector<16x128xf32>
    %15 = arith.maximumf %11, %14 : vector<16x128xf32>
    %c0_13 = arith.constant 0 : index
    %c0_14 = arith.constant 0 : index
    %16 = vector.load %arg3[%c0_13, %c0_14] : memref<1x128xf32, #tpu.memory_space<vmem>>, vector<1x128xf32>
    %17 = vector.broadcast %16 : vector<1x128xf32> to vector<16x128xf32>
    %18 = arith.addf %15, %17 : vector<16x128xf32>
    %cst_15 = arith.constant 0.000000e+00 : f32
    %19 = vector.broadcast %cst_15 : f32 to vector<16x128xf32>
    %20 = arith.maximumf %18, %19 : vector<16x128xf32>
    %21 = arith.truncf %20 : vector<16x128xf32> to vector<16x128xbf16>
    %c0_16 = arith.constant 0 : index
    %c0_17 = arith.constant 0 : index
    %22 = vector.load %arg4[%c0_16, %c0_17] : memref<16x128xbf16, #tpu.memory_space<vmem>>, vector<16x128xbf16>
    tpu.vector_store %arg4[%c0_16, %c0_17], %21 {strides = array<i32>} : memref<16x128xbf16, #tpu.memory_space<vmem>>, vector<16x128xbf16>,
    return
  }
  func.func @transform_0(%arg0: i32) -> (i32, i32, i32) {
    %c0_i32 = arith.constant 0 : i32
    %c0_i32_0 = arith.constant 0 : i32
    %c0_i32_1 = arith.constant 0 : i32
    return %c0_i32, %arg0, %c0_i32_0 : i32, i32, i32
  }
  func.func @transform_1(%arg0: i32) -> (i32, i32) {
    %c0_i32 = arith.constant 0 : i32
    %c0_i32_0 = arith.constant 0 : i32
    %c0_i32_1 = arith.constant 0 : i32
    return %c0_i32, %c0_i32_0 : i32, i32
  }
  func.func @transform_2(%arg0: i32) -> (i32, i32) {
    %c0_i32 = arith.constant 0 : i32
    %c0_i32_0 = arith.constant 0 : i32
    %c0_i32_1 = arith.constant 0 : i32
    return %c0_i32, %c0_i32_0 : i32, i32
  }
  func.func @transform_3(%arg0: i32) -> (i32, i32) {
    %c0_i32 = arith.constant 0 : i32
    %c0_i32_0 = arith.constant 0 : i32
    return %arg0, %c0_i32 : i32, i32
  }
}

module attributes {stable_mosaic.version = 11 : i64} {
  func.func @mlp_head_kernel(%arg0: i32, %arg1: memref<16x1024xbf16, #tpu.memory_space<vmem>>, %arg2: memref<1024x128xbf16, #tpu.memory_space<vmem>>, %arg3: memref<1x128xf32, #tpu.memory_space<vmem>>, %arg4: memref<128x128xbf16, #tpu.memory_space<vmem>>, %arg5: memref<1x128xf32, #tpu.memory_space<vmem>>, %arg6: memref<16x128xf32, #tpu.memory_space<vmem>>) attributes {dimension_semantics = [#tpu.dimension_semantics<parallel>], iteration_bounds = array<i64: 1>, scalar_prefetch = 0 : i64, scratch_operands = 0 : i64, tpu.core_type = #tpu.core_type<tc>, window_params = [{transform_indices = @transform_0, window_bounds = array<i64: 16, 1024>}, {pipeline_mode = #tpu.pipeline_mode<synchronous>, transform_indices = @transform_1, window_bounds = array<i64: 1024, 128>}, {pipeline_mode = #tpu.pipeline_mode<synchronous>, transform_indices = @transform_2, window_bounds = array<i64: 1, 128>}, {pipeline_mode = #tpu.pipeline_mode<synchronous>, transform_indices = @transform_3, window_bounds = array<i64: 128, 128>}, {pipeline_mode = #tpu.pipeline_mode<synchronous>, transform_indices = @transform_4, window_bounds = array<i64: 1, 128>}, {transform_indices = @transform_5, window_bounds = array<i64: 16, 128>}]} {
    %c0 = arith.constant 0 : index
    %c0_0 = arith.constant 0 : index
    %0 = vector.load %arg1[%c0, %c0_0] : memref<16x1024xbf16, #tpu.memory_space<vmem>>, vector<16x1024xbf16>
    %c0_1 = arith.constant 0 : index
    %c0_2 = arith.constant 0 : index
    %1 = vector.load %arg2[%c0_1, %c0_2] : memref<1024x128xbf16, #tpu.memory_space<vmem>>, vector<1024x128xbf16>
    %cst = arith.constant dense<0.000000e+00> : vector<16x128xf32>
    %2 = tpu.matmul %0, %1, %cst {dimension_numbers = #tpu.dot_dimension_numbers<[1], [0], [0], [1], [0, 0, 1, 1], [], []>} : vector<16x1024xbf16>, vector<1024x128xbf16>, vector<16x128xf32> -> vector<16x128xf32>
    %c0_3 = arith.constant 0 : index
    %c0_4 = arith.constant 0 : index
    %3 = vector.load %arg3[%c0_3, %c0_4] : memref<1x128xf32, #tpu.memory_space<vmem>>, vector<1x128xf32>
    %4 = vector.broadcast %3 : vector<1x128xf32> to vector<16x128xf32>
    %5 = arith.addf %2, %4 : vector<16x128xf32>
    %cst_5 = arith.constant 0.000000e+00 : f32
    %6 = vector.broadcast %cst_5 : f32 to vector<16x128xf32>
    %7 = arith.maximumf %5, %6 : vector<16x128xf32>
    %8 = arith.truncf %7 : vector<16x128xf32> to vector<16x128xbf16>
    %c0_6 = arith.constant 0 : index
    %c0_7 = arith.constant 0 : index
    %9 = vector.load %arg4[%c0_6, %c0_7] : memref<128x128xbf16, #tpu.memory_space<vmem>>, vector<128x128xbf16>
    %cst_8 = arith.constant dense<0.000000e+00> : vector<16x128xf32>
    %10 = tpu.matmul %8, %9, %cst_8 {dimension_numbers = #tpu.dot_dimension_numbers<[1], [0], [0], [1], [0, 0, 1, 1], [], []>} : vector<16x128xbf16>, vector<128x128xbf16>, vector<16x128xf32> -> vector<16x128xf32>
    %c0_9 = arith.constant 0 : index
    %c0_10 = arith.constant 0 : index
    %11 = vector.load %arg5[%c0_9, %c0_10] : memref<1x128xf32, #tpu.memory_space<vmem>>, vector<1x128xf32>
    %12 = vector.broadcast %11 : vector<1x128xf32> to vector<16x128xf32>
    %13 = arith.addf %10, %12 : vector<16x128xf32>
    %cst_11 = arith.constant dense<0xFF800000> : vector<16xf32>
    %14 = vector.multi_reduction <maximumf>, %13, %cst_11 [1] : vector<16x128xf32> to vector<16xf32>
    %15 = vector.shape_cast %14 : vector<16xf32> to vector<16x1xf32>
    %16 = vector.broadcast %15 : vector<16x1xf32> to vector<16x128xf32>
    %17 = arith.subf %13, %16 : vector<16x128xf32>
    %18 = math.exp %17 : vector<16x128xf32>
    %cst_12 = arith.constant dense<0.000000e+00> : vector<16xf32>
    %19 = vector.multi_reduction <add>, %18, %cst_12 [1] : vector<16x128xf32> to vector<16xf32>
    %20 = vector.shape_cast %19 : vector<16xf32> to vector<16x1xf32>
    %21 = math.log %20 : vector<16x1xf32>
    %22 = vector.broadcast %21 : vector<16x1xf32> to vector<16x128xf32>
    %23 = arith.subf %17, %22 : vector<16x128xf32>
    %c0_13 = arith.constant 0 : index
    %c0_14 = arith.constant 0 : index
    %24 = vector.load %arg6[%c0_13, %c0_14] : memref<16x128xf32, #tpu.memory_space<vmem>>, vector<16x128xf32>
    tpu.vector_store %arg6[%c0_13, %c0_14], %23 {strides = array<i32>} : memref<16x128xf32, #tpu.memory_space<vmem>>, vector<16x128xf32>,
    return
  }
  func.func @transform_0(%arg0: i32) -> (i32, i32) {
    %c0_i32 = arith.constant 0 : i32
    %c0_i32_0 = arith.constant 0 : i32
    return %arg0, %c0_i32 : i32, i32
  }
  func.func @transform_1(%arg0: i32) -> (i32, i32) {
    %c0_i32 = arith.constant 0 : i32
    %c0_i32_0 = arith.constant 0 : i32
    %c0_i32_1 = arith.constant 0 : i32
    return %c0_i32, %c0_i32_0 : i32, i32
  }
  func.func @transform_2(%arg0: i32) -> (i32, i32) {
    %c0_i32 = arith.constant 0 : i32
    %c0_i32_0 = arith.constant 0 : i32
    %c0_i32_1 = arith.constant 0 : i32
    return %c0_i32, %c0_i32_0 : i32, i32
  }
  func.func @transform_3(%arg0: i32) -> (i32, i32) {
    %c0_i32 = arith.constant 0 : i32
    %c0_i32_0 = arith.constant 0 : i32
    %c0_i32_1 = arith.constant 0 : i32
    return %c0_i32, %c0_i32_0 : i32, i32
  }
  func.func @transform_4(%arg0: i32) -> (i32, i32) {
    %c0_i32 = arith.constant 0 : i32
    %c0_i32_0 = arith.constant 0 : i32
    %c0_i32_1 = arith.constant 0 : i32
    return %c0_i32, %c0_i32_0 : i32, i32
  }
  func.func @transform_5(%arg0: i32) -> (i32, i32) {
    %c0_i32 = arith.constant 0 : i32
    %c0_i32_0 = arith.constant 0 : i32
    return %arg0, %c0_i32 : i32, i32
  }
}

</mosaic_0001>

<llo_original>
// kernel: net_forward.3
$region0: #{net_forward.3}
  #allocation0 [shape = 'u32[]', space=smem, size = 0x4, offset = 0x4, fixed_abs, tag = 'smem constant byte address 0x4 - core index']
  #allocation1 [shape = 'u32[72,128]{1,0:T(1,128)}', space=vmem, size = 0x9000, scoped, tag = 'internal scratch']
  %s0 = inlined_call_operand.vmem [shape: bf16[4,288,32], index: 0, kind: input, shape index: {}]
  %s1 = inlined_call_operand.vmem [shape: bf16[32,128], index: 1, kind: input, shape index: {}]
  %s2 = inlined_call_operand.vmem [shape: f32[1,128], index: 2, kind: input, shape index: {}]
  %s3 = inlined_call_operand.vmem [shape: bf16[288,128], index: 3, kind: output, shape index: {}]
  %s4 = sld [smem:[#allocation0]]
  $region86: #{net_forward.3} parent=0
    _
  %s6 = ssub.s32 1, %s4
  %s7 = scalar_select 0, %s6, %s4
  $region1: #{net_forward.3} parent=0
    #allocation2 [shape = 'u8[294912]{0}', space=vmem, size = 0x48000, scoped, tag = 'input window, operand 0']
    loop: start=0, step=1, limit=4
    $region2: #{net_forward.3} parent=1 // loop_pre_header
      _
    $region3: #{net_forward.3} parent=1 // loop_header
      %s9 = sphi 0, %s13
      %p10 = scmp.ge.s32.totalorder %s9, 4
      %s19 = sphi 0, %s21
      %s22 = sphi 0, %s19
      %s23 = sphi 0, %s22
      %s39 = sphi 0, %s23
      %s43 = sphi 0, %s43
      %s45 = sphi 0, %s43
      %s46 = sphi 0, %s45
      %s60 = sphi 0, %s46
      %s64 = sphi 0, %s64
      %s66 = sphi 0, %s64
      %s67 = sphi 0, %s66
      %s81 = sphi 0, %s67
      %s87 = sphi 0, %s89
      %s90 = sphi 0, %s87
      %s91 = sphi 0, %s90
      %s107 = sphi 0, %s91
    $region4: #{net_forward.3} parent=1 // loop_header_branch
      %12 = sbr.rel (%p10) target = $region8
    $region5: #{net_forward.3} parent=1 // loop_body
      %s14 = ssub.s32 %s9, 1
      %s15 = ssub.s32 %s9, 2
      %s16 = sadd.s32 %s9, 1
      %s17 = ssub.s32 %s9, %s16
      %p18 = scmp.eq.s32.totalorder %s17, 0
      %s20 = sadd.s32 %s19, 1
      %s21 = scalar_select %p18, %s19, %s20
      %p24 = pneg %p18
      %p25 = scmp.eq.s32.totalorder %s9, 1
      %p26 = por %p24, %p25
      %p27 = scmp.ne.s32.totalorder %s19, %s22
      %p28 = scmp.eq.s32.totalorder %s9, 0
      %p29 = por %p27, %p28
      %p30 = scmp.ne.s32.totalorder %s19, %s22
      %p31 = scmp.eq.s32.totalorder %s14, 1
      %p32 = por %p30, %p31
      %p33 = scmp.ne.s32.totalorder %s22, %s23
      %p34 = scmp.eq.s32.totalorder %s14, 0
      %p35 = por %p33, %p34
      %p36 = scmp.ne.s32.totalorder %s22, %s23
      %p37 = scmp.eq.s32.totalorder %s15, 1
      %p38 = por %p36, %p37
      %p40 = scmp.ne.s32.totalorder %s23, %s39
      %p41 = scmp.eq.s32.totalorder %s15, 0
      %p42 = por %p40, %p41
      %s44 = sadd.s32 %s43, 1
      %p47 = scmp.eq.s32.totalorder %s9, 1
      %p48 = scmp.ne.s32.totalorder %s43, %s45
      %p49 = scmp.eq.s32.totalorder %s9, 0
      %p50 = por %p48, %p49
      %p51 = scmp.ne.s32.totalorder %s43, %s45
      %p52 = scmp.eq.s32.totalorder %s14, 1
      %p53 = por %p51, %p52
      %p54 = scmp.ne.s32.totalorder %s45, %s46
      %p55 = scmp.eq.s32.totalorder %s14, 0
      %p56 = por %p54, %p55
      %p57 = scmp.ne.s32.totalorder %s45, %s46
      %p58 = scmp.eq.s32.totalorder %s15, 1
      %p59 = por %p57, %p58
      %p61 = scmp.ne.s32.totalorder %s46, %s60
      %p62 = scmp.eq.s32.totalorder %s15, 0
      %p63 = por %p61, %p62
      %s65 = sadd.s32 %s64, 1
      %p68 = scmp.eq.s32.totalorder %s9, 1
      %p69 = scmp.ne.s32.totalorder %s64, %s66
      %p70 = scmp.eq.s32.totalorder %s9, 0
      %p71 = por %p69, %p70
      %p72 = scmp.ne.s32.totalorder %s64, %s66
      %p73 = scmp.eq.s32.totalorder %s14, 1
      %p74 = por %p72, %p73
      %p75 = scmp.ne.s32.totalorder %s66, %s67
      %p76 = scmp.eq.s32.totalorder %s14, 0
      %p77 = por %p75, %p76
      %p78 = scmp.ne.s32.totalorder %s66, %s67
      %p79 = scmp.eq.s32.totalorder %s15, 1
      %p80 = por %p78, %p79
      %p82 = scmp.ne.s32.totalorder %s67, %s81
      %p83 = scmp.eq.s32.totalorder %s15, 0
      %p84 = por %p82, %p83
      %s85 = ssub.s32 %s9, %s16
      %p86 = scmp.eq.s32.totalorder %s85, 0
      %s88 = sadd.s32 %s87, 1
      %s89 = scalar_select %p86, %s87, %s88
      %p92 = pneg %p86
      %p93 = scmp.eq.s32.totalorder %s9, 1
      %p94 = por %p92, %p93
      %p95 = scmp.ne.s32.totalorder %s87, %s90
      %p96 = scmp.eq.s32.totalorder %s9, 0
      %p97 = por %p95, %p96
      %p98 = scmp.ne.s32.totalorder %s87, %s90
      %p99 = scmp.eq.s32.totalorder %s14, 1
      %p100 = por %p98, %p99
      %p101 = scmp.ne.s32.totalorder %s90, %s91
      %p102 = scmp.eq.s32.totalorder %s14, 0
      %p103 = por %p101, %p102
      %p104 = scmp.ne.s32.totalorder %s90, %s91
      %p105 = scmp.eq.s32.totalorder %s15, 1
      %p106 = por %p104, %p105
      %p108 = scmp.ne.s32.totalorder %s91, %s107
      %p109 = scmp.eq.s32.totalorder %s15, 0
      %p110 = por %p108, %p109
      %p111 = scmp.le.s32.totalorder 1, %s9
      %p112 = scmp.lt.s32.totalorder %s9, 3
      %p113 = pnand %p111, %p112
      %p114 = pneg %p113
      // Predicated region
      $region9: #{net_forward.3} parent=5 // pred_check
        _
      $region10: #{net_forward.3} parent=5 // pred_check_branch
        %116 = sbr.rel (%p113) target = $region12
      $region11: #{net_forward.3} parent=5 // pred_region
        %s117 = ssub.s32 %s9, 1
        // Predicated region
        $region13: #{net_forward.3} parent=11 // pred_check
          %p118 = pneg %p56
        $region14: #{net_forward.3} parent=11 // pred_check_branch
          %120 = sbr.rel (%p118) target = $region16
        $region15: #{net_forward.3} parent=11 // pred_region
          _
        $region16: #{net_forward.3} parent=11 // pred_fallthru
          _
        // Predicated region
        $region17: #{net_forward.3} parent=11 // pred_check
          %p121 = pneg %p77
        $region18: #{net_forward.3} parent=11 // pred_check_branch
          %123 = sbr.rel (%p121) target = $region20
        $region19: #{net_forward.3} parent=11 // pred_region
          _
        $region20: #{net_forward.3} parent=11 // pred_fallthru
          _
      $region12: #{net_forward.3} parent=5 // pred_fallthru
        _
      %p124 = scmp.lt.s32.totalorder %s9, 2
      // Predicated region
      $region21: #{net_forward.3} parent=5 // pred_check
        %p125 = pneg %p124
      $region22: #{net_forward.3} parent=5 // pred_check_branch
        %127 = sbr.rel (%p125) target = $region24
      $region23: #{net_forward.3} parent=5 // pred_region
        // Predicated region
        $region25: #{net_forward.3} parent=23 // pred_check
          %p128 = pneg %p29
        $region26: #{net_forward.3} parent=23 // pred_check_branch
          %130 = sbr.rel (%p128) target = $region28
        $region27: #{net_forward.3} parent=23 // pred_region
          %s131 = sand.u32 %s19, 1
          %s132 = sand.u32 %s19, 1
          %s133 = smul.addr %s132, 288
          %s134 = scalar_lea.vmem [#allocation2], %s133
          %s135 = smul.u32 18, %s9
          %s136 = smul.addr %s135, 4
          %s137 = scalar_lea.vmem %s0, %s136
          // Predicated region
          $region29: #{net_forward.3} parent=27 // pred_check
            _
          $region30: #{net_forward.3} parent=27 // pred_check_branch
            %139 = sbr.rel (0) target = $region32
          $region31: #{net_forward.3} parent=27 // pred_region
            // Predicated region
            $region33: #{net_forward.3} parent=31 // pred_check
              _
            $region34: #{net_forward.3} parent=31 // pred_check_branch
              %141 = sbr.rel target = $region36
            $region35: #{net_forward.3} parent=31 // pred_region
              // Predicated region
              $region48: #{net_forward.3} parent=35 // pred_check
                _
              $region49: #{net_forward.3} parent=35 // pred_check_branch
                %299 = sbr.rel (0) target = $region51
              $region50: #{net_forward.3} parent=35 // pred_region
                loop: start=0, step=1, limit=1
                $region52: #{net_forward.3} parent=50 // loop_pre_header
                  _
                $region53: #{net_forward.3} parent=50 // loop_header
                  %s301 = sphi 0, %s305
                  %p302 = scmp.ge.s32.totalorder %s301, 1
                  %s306 = sphi %s137, %s137
                  %s307 = sphi %s134, %s134
                $region54: #{net_forward.3} parent=50 // loop_header_branch
                  %304 = sbr.rel (%p302) target = $region58
                $region55: #{net_forward.3} parent=50 // loop_body
                  _
                $region56: #{net_forward.3} parent=50 // loop_footer
                  %s305 = sadd.s32 1, %s301
                $region57: #{net_forward.3} parent=50 // loop_footer_branch
                  %300 = sbr.rel target = $region53
                $region58: #{net_forward.3} parent=50 // loop_exit
                  _
                %s309 = ssub.s32 16, 1
                loop: start=0, step=1, limit=1
                $region59: #{net_forward.3} parent=50 // loop_pre_header
                  _
                $region60: #{net_forward.3} parent=50 // loop_header
                  %s311 = sphi 0, %s315
                  %p312 = scmp.ge.s32.totalorder %s311, 1
                  %s316 = sphi %s137, %s137
                  %s317 = sphi %s134, %s134
                $region61: #{net_forward.3} parent=50 // loop_header_branch
                  %314 = sbr.rel (%p312) target = $region65
                $region62: #{net_forward.3} parent=50 // loop_body
                  %v318 = vld [vmem:[%s316] sm:%s309]
                  %319 = vst [vmem:[%s317] sm:%s309] %v318
                  %v320 = vld [vmem:[%s316 + $0x4] sm:%s309]
                  %321 = vst [vmem:[%s317 + $0x4] sm:%s309] %v320
                  %v322 = vld [vmem:[%s316 + $0x8] sm:%s309]
                  %323 = vst [vmem:[%s317 + $0x8] sm:%s309] %v322
                  %v324 = vld [vmem:[%s316 + $0xc] sm:%s309]
                  %325 = vst [vmem:[%s317 + $0xc] sm:%s309] %v324
                  %v326 = vld [vmem:[%s316 + $0x10] sm:%s309]
                  %327 = vst [vmem:[%s317 + $0x10] sm:%s309] %v326
                  %v328 = vld [vmem:[%s316 + $0x14] sm:%s309]
                  %329 = vst [vmem:[%s317 + $0x14] sm:%s309] %v328
                  %v330 = vld [vmem:[%s316 + $0x18] sm:%s309]
                  %331 = vst [vmem:[%s317 + $0x18] sm:%s309] %v330
                  %v332 = vld [vmem:[%s316 + $0x1c] sm:%s309]
                  %333 = vst [vmem:[%s317 + $0x1c] sm:%s309] %v332
                  %v334 = vld [vmem:[%s316 + $0x20] sm:%s309]
                  %335 = vst [vmem:[%s317 + $0x20] sm:%s309] %v334
                  %v336 = vld [vmem:[%s316 + $0x24] sm:%s309]
                  %337 = vst [vmem:[%s317 + $0x24] sm:%s309] %v336
                  %v338 = vld [vmem:[%s316 + $0x28] sm:%s309]
                  %339 = vst [vmem:[%s317 + $0x28] sm:%s309] %v338
                  %v340 = vld [vmem:[%s316 + $0x2c] sm:%s309]
                  %341 = vst [vmem:[%s317 + $0x2c] sm:%s309] %v340
                  %v342 = vld [vmem:[%s316 + $0x30] sm:%s309]
                  %343 = vst [vmem:[%s317 + $0x30] sm:%s309] %v342
                  %v344 = vld [vmem:[%s316 + $0x34] sm:%s309]
                  %345 = vst [vmem:[%s317 + $0x34] sm:%s309] %v344
                  %v346 = vld [vmem:[%s316 + $0x38] sm:%s309]
                  %347 = vst [vmem:[%s317 + $0x38] sm:%s309] %v346
                  %v348 = vld [vmem:[%s316 + $0x3c] sm:%s309]
                  %349 = vst [vmem:[%s317 + $0x3c] sm:%s309] %v348
                  %v350 = vld [vmem:[%s316 + $0x40] sm:%s309]
                  %351 = vst [vmem:[%s317 + $0x40] sm:%s309] %v350
                  %v352 = vld [vmem:[%s316 + $0x44] sm:%s309]
                  %353 = vst [vmem:[%s317 + $0x44] sm:%s309] %v352
                  %v354 = vld [vmem:[%s316 + $0x90] sm:%s309]
                  %355 = vst [vmem:[%s317 + $0x48] sm:%s309] %v354
                  %v356 = vld [vmem:[%s316 + $0x94] sm:%s309]
                  %357 = vst [vmem:[%s317 + $0x4c] sm:%s309] %v356
                  %v358 = vld [vmem:[%s316 + $0x98] sm:%s309]
                  %359 = vst [vmem:[%s317 + $0x50] sm:%s309] %v358
                  %v360 = vld [vmem:[%s316 + $0x9c] sm:%s309]
                  %361 = vst [vmem:[%s317 + $0x54] sm:%s309] %v360
                  %v362 = vld [vmem:[%s316 + $0xa0] sm:%s309]
                  %363 = vst [vmem:[%s317 + $0x58] sm:%s309] %v362
                  %v364 = vld [vmem:[%s316 + $0xa4] sm:%s309]
                  %365 = vst [vmem:[%s317 + $0x5c] sm:%s309] %v364
                  %v366 = vld [vmem:[%s316 + $0xa8] sm:%s309]
                  %367 = vst [vmem:[%s317 + $0x60] sm:%s309] %v366
                  %v368 = vld [vmem:[%s316 + $0xac] sm:%s309]
                  %369 = vst [vmem:[%s317 + $0x64] sm:%s309] %v368
                  %v370 = vld [vmem:[%s316 + $0xb0] sm:%s309]
                  %371 = vst [vmem:[%s317 + $0x68] sm:%s309] %v370
                  %v372 = vld [vmem:[%s316 + $0xb4] sm:%s309]
                  %373 = vst [vmem:[%s317 + $0x6c] sm:%s309] %v372
                  %v374 = vld [vmem:[%s316 + $0xb8] sm:%s309]
                  %375 = vst [vmem:[%s317 + $0x70] sm:%s309] %v374
                  %v376 = vld [vmem:[%s316 + $0xbc] sm:%s309]
                  %377 = vst [vmem:[%s317 + $0x74] sm:%s309] %v376
                  %v378 = vld [vmem:[%s316 + $0xc0] sm:%s309]
                  %379 = vst [vmem:[%s317 + $0x78] sm:%s309] %v378
                  %v380 = vld [vmem:[%s316 + $0xc4] sm:%s309]
                  %381 = vst [vmem:[%s317 + $0x7c] sm:%s309] %v380
                  %v382 = vld [vmem:[%s316 + $0xc8] sm:%s309]
                  %383 = vst [vmem:[%s317 + $0x80] sm:%s309] %v382
                  %v384 = vld [vmem:[%s316 + $0xcc] sm:%s309]
                  %385 = vst [vmem:[%s317 + $0x84] sm:%s309] %v384
                  %v386 = vld [vmem:[%s316 + $0xd0] sm:%s309]
                  %387 = vst [vmem:[%s317 + $0x88] sm:%s309] %v386
                  %v388 = vld [vmem:[%s316 + $0xd4] sm:%s309]
                  %389 = vst [vmem:[%s317 + $0x8c] sm:%s309] %v388
                  %v390 = vld [vmem:[%s316 + $0x120] sm:%s309]
                  %391 = vst [vmem:[%s317 + $0x90] sm:%s309] %v390
                  %v392 = vld [vmem:[%s316 + $0x124] sm:%s309]
                  %393 = vst [vmem:[%s317 + $0x94] sm:%s309] %v392
                  %v394 = vld [vmem:[%s316 + $0x128] sm:%s309]
                  %395 = vst [vmem:[%s317 + $0x98] sm:%s309] %v394
                  %v396 = vld [vmem:[%s316 + $0x12c] sm:%s309]
                  %397 = vst [vmem:[%s317 + $0x9c] sm:%s309] %v396
                  %v398 = vld [vmem:[%s316 + $0x130] sm:%s309]
                  %399 = vst [vmem:[%s317 + $0xa0] sm:%s309] %v398
                  %v400 = vld [vmem:[%s316 + $0x134] sm:%s309]
                  %401 = vst [vmem:[%s317 + $0xa4] sm:%s309] %v400
                  %v402 = vld [vmem:[%s316 + $0x138] sm:%s309]
                  %403 = vst [vmem:[%s317 + $0xa8] sm:%s309] %v402
                  %v404 = vld [vmem:[%s316 + $0x13c] sm:%s309]
                  %405 = vst [vmem:[%s317 + $0xac] sm:%s309] %v404
                  %v406 = vld [vmem:[%s316 + $0x140] sm:%s309]
                  %407 = vst [vmem:[%s317 + $0xb0] sm:%s309] %v406
                  %v408 = vld [vmem:[%s316 + $0x144] sm:%s309]
                  %409 = vst [vmem:[%s317 + $0xb4] sm:%s309] %v408
                  %v410 = vld [vmem:[%s316 + $0x148] sm:%s309]
                  %411 = vst [vmem:[%s317 + $0xb8] sm:%s309] %v410
                  %v412 = vld [vmem:[%s316 + $0x14c] sm:%s309]
                  %413 = vst [vmem:[%s317 + $0xbc] sm:%s309] %v412
                  %v414 = vld [vmem:[%s316 + $0x150] sm:%s309]
                  %415 = vst [vmem:[%s317 + $0xc0] sm:%s309] %v414
                  %v416 = vld [vmem:[%s316 + $0x154] sm:%s309]
                  %417 = vst [vmem:[%s317 + $0xc4] sm:%s309] %v416
                  %v418 = vld [vmem:[%s316 + $0x158] sm:%s309]
                  %419 = vst [vmem:[%s317 + $0xc8] sm:%s309] %v418
                  %v420 = vld [vmem:[%s316 + $0x15c] sm:%s309]
                  %421 = vst [vmem:[%s317 + $0xcc] sm:%s309] %v420
                  %v422 = vld [vmem:[%s316 + $0x160] sm:%s309]
                  %423 = vst [vmem:[%s317 + $0xd0] sm:%s309] %v422
                  %v424 = vld [vmem:[%s316 + $0x164] sm:%s309]
                  %425 = vst [vmem:[%s317 + $0xd4] sm:%s309] %v424
                  %v426 = vld [vmem:[%s316 + $0x1b0] sm:%s309]
                  %427 = vst [vmem:[%s317 + $0xd8] sm:%s309] %v426
                  %v428 = vld [vmem:[%s316 + $0x1b4] sm:%s309]
                  %429 = vst [vmem:[%s317 + $0xdc] sm:%s309] %v428
                  %v430 = vld [vmem:[%s316 + $0x1b8] sm:%s309]
                  %431 = vst [vmem:[%s317 + $0xe0] sm:%s309] %v430
                  %v432 = vld [vmem:[%s316 + $0x1bc] sm:%s309]
                  %433 = vst [vmem:[%s317 + $0xe4] sm:%s309] %v432
                  %v434 = vld [vmem:[%s316 + $0x1c0] sm:%s309]
                  %435 = vst [vmem:[%s317 + $0xe8] sm:%s309] %v434
                  %v436 = vld [vmem:[%s316 + $0x1c4] sm:%s309]
                  %437 = vst [vmem:[%s317 + $0xec] sm:%s309] %v436
                  %v438 = vld [vmem:[%s316 + $0x1c8] sm:%s309]
                  %439 = vst [vmem:[%s317 + $0xf0] sm:%s309] %v438
                  %v440 = vld [vmem:[%s316 + $0x1cc] sm:%s309]
                  %441 = vst [vmem:[%s317 + $0xf4] sm:%s309] %v440
                  %v442 = vld [vmem:[%s316 + $0x1d0] sm:%s309]
                  %443 = vst [vmem:[%s317 + $0xf8] sm:%s309] %v442
                  %v444 = vld [vmem:[%s316 + $0x1d4] sm:%s309]
                  %445 = vst [vmem:[%s317 + $0xfc] sm:%s309] %v444
                  %v446 = vld [vmem:[%s316 + $0x1d8] sm:%s309]
                  %447 = vst [vmem:[%s317 + $0x100] sm:%s309] %v446
                  %v448 = vld [vmem:[%s316 + $0x1dc] sm:%s309]
                  %449 = vst [vmem:[%s317 + $0x104] sm:%s309] %v448
                  %v450 = vld [vmem:[%s316 + $0x1e0] sm:%s309]
                  %451 = vst [vmem:[%s317 + $0x108] sm:%s309] %v450
                  %v452 = vld [vmem:[%s316 + $0x1e4] sm:%s309]
                  %453 = vst [vmem:[%s317 + $0x10c] sm:%s309] %v452
                  %v454 = vld [vmem:[%s316 + $0x1e8] sm:%s309]
                  %455 = vst [vmem:[%s317 + $0x110] sm:%s309] %v454
                  %v456 = vld [vmem:[%s316 + $0x1ec] sm:%s309]
                  %457 = vst [vmem:[%s317 + $0x114] sm:%s309] %v456
                  %v458 = vld [vmem:[%s316 + $0x1f0] sm:%s309]
                  %459 = vst [vmem:[%s317 + $0x118] sm:%s309] %v458
                  %v460 = vld [vmem:[%s316 + $0x1f4] sm:%s309]
                  %461 = vst [vmem:[%s317 + $0x11c] sm:%s309] %v460
                $region63: #{net_forward.3} parent=50 // loop_footer
                  %s315 = sadd.s32 1, %s311
                $region64: #{net_forward.3} parent=50 // loop_footer_branch
                  %310 = sbr.rel target = $region60
                $region65: #{net_forward.3} parent=50 // loop_exit
                  _
              $region51: #{net_forward.3} parent=35 // pred_fallthru
                _
            $region36: #{net_forward.3} parent=31 // pred_fallthru
              _
            // Predicated region
            $region37: #{net_forward.3} parent=31 // pred_check
              _
            $region38: #{net_forward.3} parent=31 // pred_check_branch
              %143 = sbr.rel (0) target = $region40
            $region39: #{net_forward.3} parent=31 // pred_region
              %s145 = ssub.s32 16, 1
              loop: start=0, step=1, limit=1
              $region41: #{net_forward.3} parent=39 // loop_pre_header
                _
              $region42: #{net_forward.3} parent=39 // loop_header
                %s147 = sphi 0, %s151
                %p148 = scmp.ge.s32.totalorder %s147, 1
                %s152 = sphi %s137, %s137
                %s153 = sphi %s134, %s134
              $region43: #{net_forward.3} parent=39 // loop_header_branch
                %150 = sbr.rel (%p148) target = $region47
              $region44: #{net_forward.3} parent=39 // loop_body
                %v154 = vld [vmem:[%s152] sm:%s145]
                %155 = vst [vmem:[%s153] sm:%s145] %v154
                %v156 = vld [vmem:[%s152 + $0x4] sm:%s145]
                %157 = vst [vmem:[%s153 + $0x4] sm:%s145] %v156
                %v158 = vld [vmem:[%s152 + $0x8] sm:%s145]
                %159 = vst [vmem:[%s153 + $0x8] sm:%s145] %v158
                %v160 = vld [vmem:[%s152 + $0xc] sm:%s145]
                %161 = vst [vmem:[%s153 + $0xc] sm:%s145] %v160
                %v162 = vld [vmem:[%s152 + $0x10] sm:%s145]
                %163 = vst [vmem:[%s153 + $0x10] sm:%s145] %v162
                %v164 = vld [vmem:[%s152 + $0x14] sm:%s145]
                %165 = vst [vmem:[%s153 + $0x14] sm:%s145] %v164
                %v166 = vld [vmem:[%s152 + $0x18] sm:%s145]
                %167 = vst [vmem:[%s153 + $0x18] sm:%s145] %v166
                %v168 = vld [vmem:[%s152 + $0x1c] sm:%s145]
                %169 = vst [vmem:[%s153 + $0x1c] sm:%s145] %v168
                %v170 = vld [vmem:[%s152 + $0x20] sm:%s145]
                %171 = vst [vmem:[%s153 + $0x20] sm:%s145] %v170
                %v172 = vld [vmem:[%s152 + $0x24] sm:%s145]
                %173 = vst [vmem:[%s153 + $0x24] sm:%s145] %v172
                %v174 = vld [vmem:[%s152 + $0x28] sm:%s145]
                %175 = vst [vmem:[%s153 + $0x28] sm:%s145] %v174
                %v176 = vld [vmem:[%s152 + $0x2c] sm:%s145]
                %177 = vst [vmem:[%s153 + $0x2c] sm:%s145] %v176
                %v178 = vld [vmem:[%s152 + $0x30] sm:%s145]
                %179 = vst [vmem:[%s153 + $0x30] sm:%s145] %v178
                %v180 = vld [vmem:[%s152 + $0x34] sm:%s145]
                %181 = vst [vmem:[%s153 + $0x34] sm:%s145] %v180
                %v182 = vld [vmem:[%s152 + $0x38] sm:%s145]
                %183 = vst [vmem:[%s153 + $0x38] sm:%s145] %v182
                %v184 = vld [vmem:[%s152 + $0x3c] sm:%s145]
                %185 = vst [vmem:[%s153 + $0x3c] sm:%s145] %v184
                %v186 = vld [vmem:[%s152 + $0x40] sm:%s145]
                %187 = vst [vmem:[%s153 + $0x40] sm:%s145] %v186
                %v188 = vld [vmem:[%s152 + $0x44] sm:%s145]
                %189 = vst [vmem:[%s153 + $0x44] sm:%s145] %v188
                %v190 = vld [vmem:[%s152 + $0x90] sm:%s145]
                %191 = vst [vmem:[%s153 + $0x48] sm:%s145] %v190
                %v192 = vld [vmem:[%s152 + $0x94] sm:%s145]
                %193 = vst [vmem:[%s153 + $0x4c] sm:%s145] %v192
                %v194 = vld [vmem:[%s152 + $0x98] sm:%s145]
                %195 = vst [vmem:[%s153 + $0x50] sm:%s145] %v194
                %v196 = vld [vmem:[%s152 + $0x9c] sm:%s145]
                %197 = vst [vmem:[%s153 + $0x54] sm:%s145] %v196
                %v198 = vld [vmem:[%s152 + $0xa0] sm:%s145]
                %199 = vst [vmem:[%s153 + $0x58] sm:%s145] %v198
                %v200 = vld [vmem:[%s152 + $0xa4] sm:%s145]
                %201 = vst [vmem:[%s153 + $0x5c] sm:%s145] %v200
                %v202 = vld [vmem:[%s152 + $0xa8] sm:%s145]
                %203 = vst [vmem:[%s153 + $0x60] sm:%s145] %v202
                %v204 = vld [vmem:[%s152 + $0xac] sm:%s145]
                %205 = vst [vmem:[%s153 + $0x64] sm:%s145] %v204
                %v206 = vld [vmem:[%s152 + $0xb0] sm:%s145]
                %207 = vst [vmem:[%s153 + $0x68] sm:%s145] %v206
                %v208 = vld [vmem:[%s152 + $0xb4] sm:%s145]
                %209 = vst [vmem:[%s153 + $0x6c] sm:%s145] %v208
                %v210 = vld [vmem:[%s152 + $0xb8] sm:%s145]
                %211 = vst [vmem:[%s153 + $0x70] sm:%s145] %v210
                %v212 = vld [vmem:[%s152 + $0xbc] sm:%s145]
                %213 = vst [vmem:[%s153 + $0x74] sm:%s145] %v212
                %v214 = vld [vmem:[%s152 + $0xc0] sm:%s145]
                %215 = vst [vmem:[%s153 + $0x78] sm:%s145] %v214
                %v216 = vld [vmem:[%s152 + $0xc4] sm:%s145]
                %217 = vst [vmem:[%s153 + $0x7c] sm:%s145] %v216
                %v218 = vld [vmem:[%s152 + $0xc8] sm:%s145]
                %219 = vst [vmem:[%s153 + $0x80] sm:%s145] %v218
                %v220 = vld [vmem:[%s152 + $0xcc] sm:%s145]
                %221 = vst [vmem:[%s153 + $0x84] sm:%s145] %v220
                %v222 = vld [vmem:[%s152 + $0xd0] sm:%s145]
                %223 = vst [vmem:[%s153 + $0x88] sm:%s145] %v222
                %v224 = vld [vmem:[%s152 + $0xd4] sm:%s145]
                %225 = vst [vmem:[%s153 + $0x8c] sm:%s145] %v224
                %v226 = vld [vmem:[%s152 + $0x120] sm:%s145]
                %227 = vst [vmem:[%s153 + $0x90] sm:%s145] %v226
                %v228 = vld [vmem:[%s152 + $0x124] sm:%s145]
                %229 = vst [vmem:[%s153 + $0x94] sm:%s145] %v228
                %v230 = vld [vmem:[%s152 + $0x128] sm:%s145]
                %231 = vst [vmem:[%s153 + $0x98] sm:%s145] %v230
                %v232 = vld [vmem:[%s152 + $0x12c] sm:%s145]
                %233 = vst [vmem:[%s153 + $0x9c] sm:%s145] %v232
                %v234 = vld [vmem:[%s152 + $0x130] sm:%s145]
                %235 = vst [vmem:[%s153 + $0xa0] sm:%s145] %v234
                %v236 = vld [vmem:[%s152 + $0x134] sm:%s145]
                %237 = vst [vmem:[%s153 + $0xa4] sm:%s145] %v236
                %v238 = vld [vmem:[%s152 + $0x138] sm:%s145]
                %239 = vst [vmem:[%s153 + $0xa8] sm:%s145] %v238
                %v240 = vld [vmem:[%s152 + $0x13c] sm:%s145]
                %241 = vst [vmem:[%s153 + $0xac] sm:%s145] %v240
                %v242 = vld [vmem:[%s152 + $0x140] sm:%s145]
                %243 = vst [vmem:[%s153 + $0xb0] sm:%s145] %v242
                %v244 = vld [vmem:[%s152 + $0x144] sm:%s145]
                %245 = vst [vmem:[%s153 + $0xb4] sm:%s145] %v244
                %v246 = vld [vmem:[%s152 + $0x148] sm:%s145]
                %247 = vst [vmem:[%s153 + $0xb8] sm:%s145] %v246
                %v248 = vld [vmem:[%s152 + $0x14c] sm:%s145]
                %249 = vst [vmem:[%s153 + $0xbc] sm:%s145] %v248
                %v250 = vld [vmem:[%s152 + $0x150] sm:%s145]
                %251 = vst [vmem:[%s153 + $0xc0] sm:%s145] %v250
                %v252 = vld [vmem:[%s152 + $0x154] sm:%s145]
                %253 = vst [vmem:[%s153 + $0xc4] sm:%s145] %v252
                %v254 = vld [vmem:[%s152 + $0x158] sm:%s145]
                %255 = vst [vmem:[%s153 + $0xc8] sm:%s145] %v254
                %v256 = vld [vmem:[%s152 + $0x15c] sm:%s145]
                %257 = vst [vmem:[%s153 + $0xcc] sm:%s145] %v256
                %v258 = vld [vmem:[%s152 + $0x160] sm:%s145]
                %259 = vst [vmem:[%s153 + $0xd0] sm:%s145] %v258
                %v260 = vld [vmem:[%s152 + $0x164] sm:%s145]
                %261 = vst [vmem:[%s153 + $0xd4] sm:%s145] %v260
                %v262 = vld [vmem:[%s152 + $0x1b0] sm:%s145]
                %263 = vst [vmem:[%s153 + $0xd8] sm:%s145] %v262
                %v264 = vld [vmem:[%s152 + $0x1b4] sm:%s145]
                %265 = vst [vmem:[%s153 + $0xdc] sm:%s145] %v264
                %v266 = vld [vmem:[%s152 + $0x1b8] sm:%s145]
                %267 = vst [vmem:[%s153 + $0xe0] sm:%s145] %v266
                %v268 = vld [vmem:[%s152 + $0x1bc] sm:%s145]
                %269 = vst [vmem:[%s153 + $0xe4] sm:%s145] %v268
                %v270 = vld [vmem:[%s152 + $0x1c0] sm:%s145]
                %271 = vst [vmem:[%s153 + $0xe8] sm:%s145] %v270
                %v272 = vld [vmem:[%s152 + $0x1c4] sm:%s145]
                %273 = vst [vmem:[%s153 + $0xec] sm:%s145] %v272
                %v274 = vld [vmem:[%s152 + $0x1c8] sm:%s145]
                %275 = vst [vmem:[%s153 + $0xf0] sm:%s145] %v274
                %v276 = vld [vmem:[%s152 + $0x1cc] sm:%s145]
                %277 = vst [vmem:[%s153 + $0xf4] sm:%s145] %v276
                %v278 = vld [vmem:[%s152 + $0x1d0] sm:%s145]
                %279 = vst [vmem:[%s153 + $0xf8] sm:%s145] %v278
                %v280 = vld [vmem:[%s152 + $0x1d4] sm:%s145]
                %281 = vst [vmem:[%s153 + $0xfc] sm:%s145] %v280
                %v282 = vld [vmem:[%s152 + $0x1d8] sm:%s145]
                %283 = vst [vmem:[%s153 + $0x100] sm:%s145] %v282
                %v284 = vld [vmem:[%s152 + $0x1dc] sm:%s145]
                %285 = vst [vmem:[%s153 + $0x104] sm:%s145] %v284
                %v286 = vld [vmem:[%s152 + $0x1e0] sm:%s145]
                %287 = vst [vmem:[%s153 + $0x108] sm:%s145] %v286
                %v288 = vld [vmem:[%s152 + $0x1e4] sm:%s145]
                %289 = vst [vmem:[%s153 + $0x10c] sm:%s145] %v288
                %v290 = vld [vmem:[%s152 + $0x1e8] sm:%s145]
                %291 = vst [vmem:[%s153 + $0x110] sm:%s145] %v290
                %v292 = vld [vmem:[%s152 + $0x1ec] sm:%s145]
                %293 = vst [vmem:[%s153 + $0x114] sm:%s145] %v292
                %v294 = vld [vmem:[%s152 + $0x1f0] sm:%s145]
                %295 = vst [vmem:[%s153 + $0x118] sm:%s145] %v294
                %v296 = vld [vmem:[%s152 + $0x1f4] sm:%s145]
                %297 = vst [vmem:[%s153 + $0x11c] sm:%s145] %v296
              $region45: #{net_forward.3} parent=39 // loop_footer
                %s151 = sadd.s32 1, %s147
              $region46: #{net_forward.3} parent=39 // loop_footer_branch
                %146 = sbr.rel target = $region42
              $region47: #{net_forward.3} parent=39 // loop_exit
                _
            $region40: #{net_forward.3} parent=31 // pred_fallthru
              _
          $region32: #{net_forward.3} parent=27 // pred_fallthru
            _
          %462 = vnop
        $region28: #{net_forward.3} parent=23 // pred_fallthru
          _
      $region24: #{net_forward.3} parent=5 // pred_fallthru
        _
      %p463 = scmp.le.s32.totalorder 1, %s9
      %p464 = scmp.lt.s32.totalorder %s9, 3
      %p465 = pnand %p463, %p464
      %p466 = pneg %p465
      // Predicated region
      $region66: #{net_forward.3} parent=5 // pred_check
        _
      $region67: #{net_forward.3} parent=5 // pred_check_branch
        %468 = sbr.rel (%p465) target = $region69
      $region68: #{net_forward.3} parent=5 // pred_region
        %s469 = ssub.s32 %s9, 1
        %s470 = sand.u32 %s22, 1
        %s471 = sand.u32 %s22, 1
        %s472 = smul.addr %s471, 288
        %s473 = scalar_lea.vmem [#allocation2], %s472
        // Predicated region
        $region70: #{net_forward.3} parent=68 // pred_check
          %p474 = pneg %p35
        $region71: #{net_forward.3} parent=68 // pred_check_branch
          %476 = sbr.rel (%p474) target = $region73
        $region72: #{net_forward.3} parent=68 // pred_region
          _
        $region73: #{net_forward.3} parent=68 // pred_fallthru
          _
        %s477 = sand.u32 %s22, 1
        %s478 = sand.u32 %s22, 1
        %s479 = smul.addr %s478, 288
        %s480 = scalar_lea.vmem [#allocation2], %s479
        %p481 = pneg %p35
        %p482 = pneg %p32
        %p483 = pneg %p56
        %p484 = pneg %p53
        %p485 = pneg %p77
        %p486 = pneg %p74
        %p487 = pneg %p103
        %p488 = pneg %p100
        %s489 = smul.u32 18, %s14
        %p490 = scmp.lt.s32.totalorder %s489, 35
        %s491 = scalar_select %p490, %s489, 35
        %s492 = smul.addr %s491, 4
        %s493 = scalar_lea.vmem %s3, %s492
        %s494 = smul.u32 18, %s14
        %s495 = smul.u32 18, %s14
        %p496 = scmp.lt.s32.totalorder %s495, 35
        %s497 = scalar_select %p496, %s495, 35
        %s498 = smul.addr %s497, 4
        %s499 = scalar_lea.vmem %s3, %s498
        %s500 = smul.u32 18, %s14
        %v502 = vld [vmem:[%s1] sm:$0xf]
        %v503 = vld [vmem:[%s1 + $0x4] sm:$0xf]
        %v504 = vld [vmem:[%s1 + $0x8] sm:$0xf]
        %v505 = vld [vmem:[%s1 + $0xc] sm:$0xf]
        %v506 = vld [vmem:[%s473] sm:$0xf]
        %v507 = vld [vmem:[%s473 + $0x4] sm:$0xf]
        %v508 = vld [vmem:[%s473 + $0x8] sm:$0xf]
        %v509 = vld [vmem:[%s473 + $0xc] sm:$0xf]
        %v510 = vld [vmem:[%s473 + $0x10] sm:$0xf]
        %v511 = vld [vmem:[%s473 + $0x14] sm:$0xf]
        %v512 = vld [vmem:[%s473 + $0x18] sm:$0xf]
        %v513 = vld [vmem:[%s473 + $0x1c] sm:$0xf]
        %v514 = vld [vmem:[%s473 + $0x20] sm:$0xf]
        %v515 = vld [vmem:[%s473 + $0x24] sm:$0xf]
        %v516 = vld [vmem:[%s473 + $0x28] sm:$0xf]
        %v517 = vld [vmem:[%s473 + $0x2c] sm:$0xf]
        %v518 = vld [vmem:[%s473 + $0x30] sm:$0xf]
        %v519 = vld [vmem:[%s473 + $0x34] sm:$0xf]
        %v520 = vld [vmem:[%s473 + $0x38] sm:$0xf]
        %v521 = vld [vmem:[%s473 + $0x3c] sm:$0xf]
        %v522 = vld [vmem:[%s473 + $0x40] sm:$0xf]
        %v523 = vld [vmem:[%s473 + $0x44] sm:$0xf]
        %v542 = vunpack.c.l.b16 %v506
        %v543 = vunpack.c.l.b16 %v507
        %v544 = vunpack.c.l.b16 %v508
        %v545 = vunpack.c.l.b16 %v509
        %v546 = vunpack.c.l.b16 %v510
        %v547 = vunpack.c.l.b16 %v511
        %v548 = vunpack.c.l.b16 %v512
        %v549 = vunpack.c.l.b16 %v513
        %v550 = vunpack.c.l.b16 %v514
        %v551 = vunpack.c.l.b16 %v515
        %v552 = vunpack.c.l.b16 %v516
        %v553 = vunpack.c.l.b16 %v517
        %v554 = vunpack.c.l.b16 %v518
        %v555 = vunpack.c.l.b16 %v519
        %v556 = vunpack.c.l.b16 %v520
        %v557 = vunpack.c.l.b16 %v521
        %v558 = vunpack.c.l.b16 %v522
        %v559 = vunpack.c.l.b16 %v523
        %v560 = vpack.c.b16 %v543, %v542
        %v561 = vpack.c.b16 %v545, %v544
        %v562 = vpack.c.b16 %v547, %v546
        %v563 = vpack.c.b16 %v549, %v548
        %v564 = vpack.c.b16 %v551, %v550
        %v565 = vpack.c.b16 %v553, %v552
        %v566 = vpack.c.b16 %v555, %v554
        %v567 = vpack.c.b16 %v557, %v556
        %v568 = vpack.c.b16 %v559, %v558
        %v573 = vunpack.c.l.b16 %v502
        %v574 = vunpack.c.l.b16 %v503
        %v575 = vunpack.c.l.b16 %v504
        %v576 = vunpack.c.l.b16 %v505
        %v577 = vpack.c.b16 %v574, %v573
        %v578 = vpack.c.b16 %v576, %v575
        %vm581 = vcmask 261120
        %v583 = vsel %vm581, %v560, 0
        %v586 = vsel %vm581, %v561, 0
        %v589 = vsel %vm581, %v562, 0
        %v592 = vsel %vm581, %v563, 0
        %v595 = vsel %vm581, %v564, 0
        %v598 = vsel %vm581, %v565, 0
        %v601 = vsel %vm581, %v566, 0
        %v604 = vsel %vm581, %v567, 0
        %v607 = vsel %vm581, %v568, 0
        %609 = vmatpush.bf16.msra.mxu0 0
        %610 = vmatpush.bf16.msra.mxu0 0
        %611 = vmatpush.bf16.msra.mxu0 0
        %612 = vmatpush.bf16.msra.mxu0 0
        %613 = vmatpush.bf16.msra.mxu0 0
        %614 = vmatpush.bf16.msra.mxu0 0
        %615 = vmatpush.bf16.msra.mxu0 %v578
        %616 = vmatpush.bf16.msra.mxu0 %v577
        %617 = vmatmul.bf16.gmra.mxu0 %v583
        %v618 = vpop.f32.mrf.mxu0
        %v619 = vadd.f32 0.0, %v618
        %v620 = vpop.f32.mrf.mxu0
        %v621 = vadd.f32 0.0, %v620
        %622 = vmatmul.bf16.gmra.mxu0 %v586
        %v623 = vpop.f32.mrf.mxu0
        %v624 = vadd.f32 0.0, %v623
        %v625 = vpop.f32.mrf.mxu0
        %v626 = vadd.f32 0.0, %v625
        %627 = vmatmul.bf16.gmra.mxu0 %v589
        %v628 = vpop.f32.mrf.mxu0
        %v629 = vadd.f32 0.0, %v628
        %v630 = vpop.f32.mrf.mxu0
        %v631 = vadd.f32 0.0, %v630
        %632 = vmatmul.bf16.gmra.mxu0 %v592
        %v633 = vpop.f32.mrf.mxu0
        %v634 = vadd.f32 0.0, %v633
        %v635 = vpop.f32.mrf.mxu0
        %v636 = vadd.f32 0.0, %v635
        %637 = vmatmul.bf16.gmra.mxu0 %v595
        %v638 = vpop.f32.mrf.mxu0
        %v639 = vadd.f32 0.0, %v638
        %v640 = vpop.f32.mrf.mxu0
        %v641 = vadd.f32 0.0, %v640
        %642 = vmatmul.bf16.gmra.mxu0 %v598
        %v643 = vpop.f32.mrf.mxu0
        %v644 = vadd.f32 0.0, %v643
        %v645 = vpop.f32.mrf.mxu0
        %v646 = vadd.f32 0.0, %v645
        %647 = vmatmul.bf16.gmra.mxu0 %v601
        %v648 = vpop.f32.mrf.mxu0
        %v649 = vadd.f32 0.0, %v648
        %v650 = vpop.f32.mrf.mxu0
        %v651 = vadd.f32 0.0, %v650
        %652 = vmatmul.bf16.gmra.mxu0 %v604
        %v653 = vpop.f32.mrf.mxu0
        %v654 = vadd.f32 0.0, %v653
        %v655 = vpop.f32.mrf.mxu0
        %v656 = vadd.f32 0.0, %v655
        %657 = vmatmul.bf16.gmra.mxu0 %v607
        %v658 = vpop.f32.mrf.mxu0
        %v659 = vadd.f32 0.0, %v658
        %v660 = vpop.f32.mrf.mxu0
        %v661 = vadd.f32 0.0, %v660
        %662 = vdwg.mxu0
        %s663 = scalar_lea.vmem %s473, 72 [#allocation2]
        %v664 = vld [vmem:[%s663] sm:$0xf]
        %v665 = vld [vmem:[%s663 + $0x4] sm:$0xf]
        %v666 = vld [vmem:[%s663 + $0x8] sm:$0xf]
        %v667 = vld [vmem:[%s663 + $0xc] sm:$0xf]
        %v668 = vld [vmem:[%s663 + $0x10] sm:$0xf]
        %v669 = vld [vmem:[%s663 + $0x14] sm:$0xf]
        %v670 = vld [vmem:[%s663 + $0x18] sm:$0xf]
        %v671 = vld [vmem:[%s663 + $0x1c] sm:$0xf]
        %v672 = vld [vmem:[%s663 + $0x20] sm:$0xf]
        %v673 = vld [vmem:[%s663 + $0x24] sm:$0xf]
        %v674 = vld [vmem:[%s663 + $0x28] sm:$0xf]
        %v675 = vld [vmem:[%s663 + $0x2c] sm:$0xf]
        %v676 = vld [vmem:[%s663 + $0x30] sm:$0xf]
        %v677 = vld [vmem:[%s663 + $0x34] sm:$0xf]
        %v678 = vld [vmem:[%s663 + $0x38] sm:$0xf]
        %v679 = vld [vmem:[%s663 + $0x3c] sm:$0xf]
        %v680 = vld [vmem:[%s663 + $0x40] sm:$0xf]
        %v681 = vld [vmem:[%s663 + $0x44] sm:$0xf]
        %v700 = vunpack.c.l.b16 %v664
        %v701 = vunpack.c.l.b16 %v665
        %v702 = vunpack.c.l.b16 %v666
        %v703 = vunpack.c.l.b16 %v667
        %v704 = vunpack.c.l.b16 %v668
        %v705 = vunpack.c.l.b16 %v669
        %v706 = vunpack.c.l.b16 %v670
        %v707 = vunpack.c.l.b16 %v671
        %v708 = vunpack.c.l.b16 %v672
        %v709 = vunpack.c.l.b16 %v673
        %v710 = vunpack.c.l.b16 %v674
        %v711 = vunpack.c.l.b16 %v675
        %v712 = vunpack.c.l.b16 %v676
        %v713 = vunpack.c.l.b16 %v677
        %v714 = vunpack.c.l.b16 %v678
        %v715 = vunpack.c.l.b16 %v679
        %v716 = vunpack.c.l.b16 %v680
        %v717 = vunpack.c.l.b16 %v681
        %v718 = vpack.c.b16 %v701, %v700
        %v719 = vpack.c.b16 %v703, %v702
        %v720 = vpack.c.b16 %v705, %v704
        %v721 = vpack.c.b16 %v707, %v706
        %v722 = vpack.c.b16 %v709, %v708
        %v723 = vpack.c.b16 %v711, %v710
        %v724 = vpack.c.b16 %v713, %v712
        %v725 = vpack.c.b16 %v715, %v714
        %v726 = vpack.c.b16 %v717, %v716
        %v728 = vsel %vm581, %v718, 0
        %v731 = vsel %vm581, %v719, 0
        %v734 = vsel %vm581, %v720, 0
        %v737 = vsel %vm581, %v721, 0
        %v740 = vsel %vm581, %v722, 0
        %v743 = vsel %vm581, %v723, 0
        %v746 = vsel %vm581, %v724, 0
        %v749 = vsel %vm581, %v725, 0
        %v752 = vsel %vm581, %v726, 0
        %754 = vmatpush.bf16.msra.mxu0 0
        %755 = vmatpush.bf16.msra.mxu0 0
        %756 = vmatpush.bf16.msra.mxu0 0
        %757 = vmatpush.bf16.msra.mxu0 0
        %758 = vmatpush.bf16.msra.mxu0 0
        %759 = vmatpush.bf16.msra.mxu0 0
        %760 = vmatpush.bf16.msra.mxu0 %v578
        %761 = vmatpush.bf16.msra.mxu0 %v577
        %762 = vmatmul.bf16.gmra.mxu0 %v728
        %v763 = vpop.f32.mrf.mxu0
        %v764 = vadd.f32 0.0, %v763
        %v765 = vpop.f32.mrf.mxu0
        %v766 = vadd.f32 0.0, %v765
        %767 = vmatmul.bf16.gmra.mxu0 %v731
        %v768 = vpop.f32.mrf.mxu0
        %v769 = vadd.f32 0.0, %v768
        %v770 = vpop.f32.mrf.mxu0
        %v771 = vadd.f32 0.0, %v770
        %772 = vmatmul.bf16.gmra.mxu0 %v734
        %v773 = vpop.f32.mrf.mxu0
        %v774 = vadd.f32 0.0, %v773
        %v775 = vpop.f32.mrf.mxu0
        %v776 = vadd.f32 0.0, %v775
        %777 = vmatmul.bf16.gmra.mxu0 %v737
        %v778 = vpop.f32.mrf.mxu0
        %v779 = vadd.f32 0.0, %v778
        %v780 = vpop.f32.mrf.mxu0
        %v781 = vadd.f32 0.0, %v780
        %782 = vmatmul.bf16.gmra.mxu0 %v740
        %v783 = vpop.f32.mrf.mxu0
        %v784 = vadd.f32 0.0, %v783
        %v785 = vpop.f32.mrf.mxu0
        %v786 = vadd.f32 0.0, %v785
        %787 = vmatmul.bf16.gmra.mxu0 %v743
        %v788 = vpop.f32.mrf.mxu0
        %v789 = vadd.f32 0.0, %v788
        %v790 = vpop.f32.mrf.mxu0
        %v791 = vadd.f32 0.0, %v790
        %792 = vmatmul.bf16.gmra.mxu0 %v746
        %v793 = vpop.f32.mrf.mxu0
        %v794 = vadd.f32 0.0, %v793
        %v795 = vpop.f32.mrf.mxu0
        %v796 = vadd.f32 0.0, %v795
        %797 = vmatmul.bf16.gmra.mxu0 %v749
        %v798 = vpop.f32.mrf.mxu0
        %v799 = vadd.f32 0.0, %v798
        %v800 = vpop.f32.mrf.mxu0
        %v801 = vadd.f32 0.0, %v800
        %802 = vmatmul.bf16.gmra.mxu0 %v752
        %v803 = vpop.f32.mrf.mxu0
        %v804 = vadd.f32 0.0, %v803
        %v805 = vpop.f32.mrf.mxu0
        %v806 = vadd.f32 0.0, %v805
        %807 = vdwg.mxu0
        %v808 = vmax.f32 %v619, %v764
        %v809 = vmax.f32 %v621, %v766
        %v810 = vmax.f32 %v624, %v769
        %v811 = vmax.f32 %v626, %v771
        %v812 = vmax.f32 %v629, %v774
        %v813 = vmax.f32 %v631, %v776
        %v814 = vmax.f32 %v634, %v779
        %v815 = vmax.f32 %v636, %v781
        %v816 = vmax.f32 %v639, %v784
        %v817 = vmax.f32 %v641, %v786
        %v818 = vmax.f32 %v644, %v789
        %v819 = vmax.f32 %v646, %v791
        %v820 = vmax.f32 %v649, %v794
        %v821 = vmax.f32 %v651, %v796
        %v822 = vmax.f32 %v654, %v799
        %v823 = vmax.f32 %v656, %v801
        %v824 = vmax.f32 %v659, %v804
        %v825 = vmax.f32 %v661, %v806
        %s826 = scalar_lea.vmem %s473, 144 [#allocation2]
        %v827 = vld [vmem:[%s826] sm:$0xf]
        %v828 = vld [vmem:[%s826 + $0x4] sm:$0xf]
        %v829 = vld [vmem:[%s826 + $0x8] sm:$0xf]
        %v830 = vld [vmem:[%s826 + $0xc] sm:$0xf]
        %v831 = vld [vmem:[%s826 + $0x10] sm:$0xf]
        %v832 = vld [vmem:[%s826 + $0x14] sm:$0xf]
        %v833 = vld [vmem:[%s826 + $0x18] sm:$0xf]
        %v834 = vld [vmem:[%s826 + $0x1c] sm:$0xf]
        %v835 = vld [vmem:[%s826 + $0x20] sm:$0xf]
        %v836 = vld [vmem:[%s826 + $0x24] sm:$0xf]
        %v837 = vld [vmem:[%s826 + $0x28] sm:$0xf]
        %v838 = vld [vmem:[%s826 + $0x2c] sm:$0xf]
        %v839 = vld [vmem:[%s826 + $0x30] sm:$0xf]
        %v840 = vld [vmem:[%s826 + $0x34] sm:$0xf]
        %v841 = vld [vmem:[%s826 + $0x38] sm:$0xf]
        %v842 = vld [vmem:[%s826 + $0x3c] sm:$0xf]
        %v843 = vld [vmem:[%s826 + $0x40] sm:$0xf]
        %v844 = vld [vmem:[%s826 + $0x44] sm:$0xf]
        %v863 = vunpack.c.l.b16 %v827
        %v864 = vunpack.c.l.b16 %v828
        %v865 = vunpack.c.l.b16 %v829
        %v866 = vunpack.c.l.b16 %v830
        %v867 = vunpack.c.l.b16 %v831
        %v868 = vunpack.c.l.b16 %v832
        %v869 = vunpack.c.l.b16 %v833
        %v870 = vunpack.c.l.b16 %v834
        %v871 = vunpack.c.l.b16 %v835
        %v872 = vunpack.c.l.b16 %v836
        %v873 = vunpack.c.l.b16 %v837
        %v874 = vunpack.c.l.b16 %v838
        %v875 = vunpack.c.l.b16 %v839
        %v876 = vunpack.c.l.b16 %v840
        %v877 = vunpack.c.l.b16 %v841
        %v878 = vunpack.c.l.b16 %v842
        %v879 = vunpack.c.l.b16 %v843
        %v880 = vunpack.c.l.b16 %v844
        %v881 = vpack.c.b16 %v864, %v863
        %v882 = vpack.c.b16 %v866, %v865
        %v883 = vpack.c.b16 %v868, %v867
        %v884 = vpack.c.b16 %v870, %v869
        %v885 = vpack.c.b16 %v872, %v871
        %v886 = vpack.c.b16 %v874, %v873
        %v887 = vpack.c.b16 %v876, %v875
        %v888 = vpack.c.b16 %v878, %v877
        %v889 = vpack.c.b16 %v880, %v879
        %v891 = vsel %vm581, %v881, 0
        %v894 = vsel %vm581, %v882, 0
        %v897 = vsel %vm581, %v883, 0
        %v900 = vsel %vm581, %v884, 0
        %v903 = vsel %vm581, %v885, 0
        %v906 = vsel %vm581, %v886, 0
        %v909 = vsel %vm581, %v887, 0
        %v912 = vsel %vm581, %v888, 0
        %v915 = vsel %vm581, %v889, 0
        %917 = vmatpush.bf16.msra.mxu0 0
        %918 = vmatpush.bf16.msra.mxu0 0
        %919 = vmatpush.bf16.msra.mxu0 0
        %920 = vmatpush.bf16.msra.mxu0 0
        %921 = vmatpush.bf16.msra.mxu0 0
        %922 = vmatpush.bf16.msra.mxu0 0
        %923 = vmatpush.bf16.msra.mxu0 %v578
        %924 = vmatpush.bf16.msra.mxu0 %v577
        %925 = vmatmul.bf16.gmra.mxu0 %v891
        %v926 = vpop.f32.mrf.mxu0
        %v927 = vadd.f32 0.0, %v926
        %v928 = vpop.f32.mrf.mxu0
        %v929 = vadd.f32 0.0, %v928
        %930 = vmatmul.bf16.gmra.mxu0 %v894
        %v931 = vpop.f32.mrf.mxu0
        %v932 = vadd.f32 0.0, %v931
        %v933 = vpop.f32.mrf.mxu0
        %v934 = vadd.f32 0.0, %v933
        %935 = vmatmul.bf16.gmra.mxu0 %v897
        %v936 = vpop.f32.mrf.mxu0
        %v937 = vadd.f32 0.0, %v936
        %v938 = vpop.f32.mrf.mxu0
        %v939 = vadd.f32 0.0, %v938
        %940 = vmatmul.bf16.gmra.mxu0 %v900
        %v941 = vpop.f32.mrf.mxu0
        %v942 = vadd.f32 0.0, %v941
        %v943 = vpop.f32.mrf.mxu0
        %v944 = vadd.f32 0.0, %v943
        %945 = vmatmul.bf16.gmra.mxu0 %v903
        %v946 = vpop.f32.mrf.mxu0
        %v947 = vadd.f32 0.0, %v946
        %v948 = vpop.f32.mrf.mxu0
        %v949 = vadd.f32 0.0, %v948
        %950 = vmatmul.bf16.gmra.mxu0 %v906
        %v951 = vpop.f32.mrf.mxu0
        %v952 = vadd.f32 0.0, %v951
        %v953 = vpop.f32.mrf.mxu0
        %v954 = vadd.f32 0.0, %v953
        %955 = vmatmul.bf16.gmra.mxu0 %v909
        %v956 = vpop.f32.mrf.mxu0
        %v957 = vadd.f32 0.0, %v956
        %v958 = vpop.f32.mrf.mxu0
        %v959 = vadd.f32 0.0, %v958
        %960 = vmatmul.bf16.gmra.mxu0 %v912
        %v961 = vpop.f32.mrf.mxu0
        %v962 = vadd.f32 0.0, %v961
        %v963 = vpop.f32.mrf.mxu0
        %v964 = vadd.f32 0.0, %v963
        %965 = vmatmul.bf16.gmra.mxu0 %v915
        %v966 = vpop.f32.mrf.mxu0
        %v967 = vadd.f32 0.0, %v966
        %v968 = vpop.f32.mrf.mxu0
        %v969 = vadd.f32 0.0, %v968
        %970 = vdwg.mxu0
        %v971 = vmax.f32 %v808, %v927
        %v972 = vmax.f32 %v809, %v929
        %v973 = vmax.f32 %v810, %v932
        %v974 = vmax.f32 %v811, %v934
        %v975 = vmax.f32 %v812, %v937
        %v976 = vmax.f32 %v813, %v939
        %v977 = vmax.f32 %v814, %v942
        %v978 = vmax.f32 %v815, %v944
        %v979 = vmax.f32 %v816, %v947
        %v980 = vmax.f32 %v817, %v949
        %v981 = vmax.f32 %v818, %v952
        %v982 = vmax.f32 %v819, %v954
        %v983 = vmax.f32 %v820, %v957
        %v984 = vmax.f32 %v821, %v959
        %v985 = vmax.f32 %v822, %v962
        %v986 = vmax.f32 %v823, %v964
        %v987 = vmax.f32 %v824, %v967
        %v988 = vmax.f32 %v825, %v969
        %s989 = scalar_lea.vmem %s473, 216 [#allocation2]
        %v990 = vld [vmem:[%s989] sm:$0xf]
        %v991 = vld [vmem:[%s989 + $0x4] sm:$0xf]
        %v992 = vld [vmem:[%s989 + $0x8] sm:$0xf]
        %v993 = vld [vmem:[%s989 + $0xc] sm:$0xf]
        %v994 = vld [vmem:[%s989 + $0x10] sm:$0xf]
        %v995 = vld [vmem:[%s989 + $0x14] sm:$0xf]
        %v996 = vld [vmem:[%s989 + $0x18] sm:$0xf]
        %v997 = vld [vmem:[%s989 + $0x1c] sm:$0xf]
        %v998 = vld [vmem:[%s989 + $0x20] sm:$0xf]
        %v999 = vld [vmem:[%s989 + $0x24] sm:$0xf]
        %v1000 = vld [vmem:[%s989 + $0x28] sm:$0xf]
        %v1001 = vld [vmem:[%s989 + $0x2c] sm:$0xf]
        %v1002 = vld [vmem:[%s989 + $0x30] sm:$0xf]
        %v1003 = vld [vmem:[%s989 + $0x34] sm:$0xf]
        %v1004 = vld [vmem:[%s989 + $0x38] sm:$0xf]
        %v1005 = vld [vmem:[%s989 + $0x3c] sm:$0xf]
        %v1006 = vld [vmem:[%s989 + $0x40] sm:$0xf]
        %v1007 = vld [vmem:[%s989 + $0x44] sm:$0xf]
        %v1026 = vunpack.c.l.b16 %v990
        %v1027 = vunpack.c.l.b16 %v991
        %v1028 = vunpack.c.l.b16 %v992
        %v1029 = vunpack.c.l.b16 %v993
        %v1030 = vunpack.c.l.b16 %v994
        %v1031 = vunpack.c.l.b16 %v995
        %v1032 = vunpack.c.l.b16 %v996
        %v1033 = vunpack.c.l.b16 %v997
        %v1034 = vunpack.c.l.b16 %v998
        %v1035 = vunpack.c.l.b16 %v999
        %v1036 = vunpack.c.l.b16 %v1000
        %v1037 = vunpack.c.l.b16 %v1001
        %v1038 = vunpack.c.l.b16 %v1002
        %v1039 = vunpack.c.l.b16 %v1003
        %v1040 = vunpack.c.l.b16 %v1004
        %v1041 = vunpack.c.l.b16 %v1005
        %v1042 = vunpack.c.l.b16 %v1006
        %v1043 = vunpack.c.l.b16 %v1007
        %v1044 = vpack.c.b16 %v1027, %v1026
        %v1045 = vpack.c.b16 %v1029, %v1028
        %v1046 = vpack.c.b16 %v1031, %v1030
        %v1047 = vpack.c.b16 %v1033, %v1032
        %v1048 = vpack.c.b16 %v1035, %v1034
        %v1049 = vpack.c.b16 %v1037, %v1036
        %v1050 = vpack.c.b16 %v1039, %v1038
        %v1051 = vpack.c.b16 %v1041, %v1040
        %v1052 = vpack.c.b16 %v1043, %v1042
        %v1054 = vsel %vm581, %v1044, 0
        %v1057 = vsel %vm581, %v1045, 0
        %v1060 = vsel %vm581, %v1046, 0
        %v1063 = vsel %vm581, %v1047, 0
        %v1066 = vsel %vm581, %v1048, 0
        %v1069 = vsel %vm581, %v1049, 0
        %v1072 = vsel %vm581, %v1050, 0
        %v1075 = vsel %vm581, %v1051, 0
        %v1078 = vsel %vm581, %v1052, 0
        %1080 = vmatpush.bf16.msra.mxu0 0
        %1081 = vmatpush.bf16.msra.mxu0 0
        %1082 = vmatpush.bf16.msra.mxu0 0
        %1083 = vmatpush.bf16.msra.mxu0 0
        %1084 = vmatpush.bf16.msra.mxu0 0
        %1085 = vmatpush.bf16.msra.mxu0 0
        %1086 = vmatpush.bf16.msra.mxu0 %v578
        %1087 = vmatpush.bf16.msra.mxu0 %v577
        %1088 = vmatmul.bf16.gmra.mxu0 %v1054
        %v1089 = vpop.f32.mrf.mxu0
        %v1090 = vadd.f32 0.0, %v1089
        %v1091 = vpop.f32.mrf.mxu0
        %v1092 = vadd.f32 0.0, %v1091
        %1093 = vmatmul.bf16.gmra.mxu0 %v1057
        %v1094 = vpop.f32.mrf.mxu0
        %v1095 = vadd.f32 0.0, %v1094
        %v1096 = vpop.f32.mrf.mxu0
        %v1097 = vadd.f32 0.0, %v1096
        %1098 = vmatmul.bf16.gmra.mxu0 %v1060
        %v1099 = vpop.f32.mrf.mxu0
        %v1100 = vadd.f32 0.0, %v1099
        %v1101 = vpop.f32.mrf.mxu0
        %v1102 = vadd.f32 0.0, %v1101
        %1103 = vmatmul.bf16.gmra.mxu0 %v1063
        %v1104 = vpop.f32.mrf.mxu0
        %v1105 = vadd.f32 0.0, %v1104
        %v1106 = vpop.f32.mrf.mxu0
        %v1107 = vadd.f32 0.0, %v1106
        %1108 = vmatmul.bf16.gmra.mxu0 %v1066
        %v1109 = vpop.f32.mrf.mxu0
        %v1110 = vadd.f32 0.0, %v1109
        %v1111 = vpop.f32.mrf.mxu0
        %v1112 = vadd.f32 0.0, %v1111
        %1113 = vmatmul.bf16.gmra.mxu0 %v1069
        %v1114 = vpop.f32.mrf.mxu0
        %v1115 = vadd.f32 0.0, %v1114
        %v1116 = vpop.f32.mrf.mxu0
        %v1117 = vadd.f32 0.0, %v1116
        %1118 = vmatmul.bf16.gmra.mxu0 %v1072
        %v1119 = vpop.f32.mrf.mxu0
        %v1120 = vadd.f32 0.0, %v1119
        %v1121 = vpop.f32.mrf.mxu0
        %v1122 = vadd.f32 0.0, %v1121
        %1123 = vmatmul.bf16.gmra.mxu0 %v1075
        %v1124 = vpop.f32.mrf.mxu0
        %v1125 = vadd.f32 0.0, %v1124
        %v1126 = vpop.f32.mrf.mxu0
        %v1127 = vadd.f32 0.0, %v1126
        %1128 = vmatmul.bf16.gmra.mxu0 %v1078
        %v1129 = vpop.f32.mrf.mxu0
        %v1130 = vadd.f32 0.0, %v1129
        %v1131 = vpop.f32.mrf.mxu0
        %v1132 = vadd.f32 0.0, %v1131
        %1133 = vdwg.mxu0
        %v1134 = vmax.f32 %v971, %v1090
        %v1135 = vmax.f32 %v972, %v1092
        %v1136 = vmax.f32 %v973, %v1095
        %v1137 = vmax.f32 %v974, %v1097
        %v1138 = vmax.f32 %v975, %v1100
        %v1139 = vmax.f32 %v976, %v1102
        %v1140 = vmax.f32 %v977, %v1105
        %v1141 = vmax.f32 %v978, %v1107
        %v1142 = vmax.f32 %v979, %v1110
        %v1143 = vmax.f32 %v980, %v1112
        %v1144 = vmax.f32 %v981, %v1115
        %v1145 = vmax.f32 %v982, %v1117
        %v1146 = vmax.f32 %v983, %v1120
        %v1147 = vmax.f32 %v984, %v1122
        %v1148 = vmax.f32 %v985, %v1125
        %v1149 = vmax.f32 %v986, %v1127
        %v1150 = vmax.f32 %v987, %v1130
        %v1151 = vmax.f32 %v988, %v1132
        %v1152 = vld [vmem:[%s2] sm:$0x1]
        %v1154 = vperm.slane %v1152, 0
        %v1156 = vadd.f32 %v1134, %v1154
        %v1157 = vadd.f32 %v1135, %v1154
        %v1158 = vadd.f32 %v1136, %v1154
        %v1159 = vadd.f32 %v1137, %v1154
        %v1160 = vadd.f32 %v1138, %v1154
        %v1161 = vadd.f32 %v1139, %v1154
        %v1162 = vadd.f32 %v1140, %v1154
        %v1163 = vadd.f32 %v1141, %v1154
        %v1164 = vadd.f32 %v1142, %v1154
        %v1165 = vadd.f32 %v1143, %v1154
        %v1166 = vadd.f32 %v1144, %v1154
        %v1167 = vadd.f32 %v1145, %v1154
        %v1168 = vadd.f32 %v1146, %v1154
        %v1169 = vadd.f32 %v1147, %v1154
        %v1170 = vadd.f32 %v1148, %v1154
        %v1171 = vadd.f32 %v1149, %v1154
        %v1172 = vadd.f32 %v1150, %v1154
        %v1173 = vadd.f32 %v1151, %v1154
        %v1174 = vmax.f32 %v1156, 0.0
        %v1175 = vmax.f32 %v1157, 0.0
        %v1176 = vmax.f32 %v1158, 0.0
        %v1177 = vmax.f32 %v1159, 0.0
        %v1178 = vmax.f32 %v1160, 0.0
        %v1179 = vmax.f32 %v1161, 0.0
        %v1180 = vmax.f32 %v1162, 0.0
        %v1181 = vmax.f32 %v1163, 0.0
        %v1182 = vmax.f32 %v1164, 0.0
        %v1183 = vmax.f32 %v1165, 0.0
        %v1184 = vmax.f32 %v1166, 0.0
        %v1185 = vmax.f32 %v1167, 0.0
        %v1186 = vmax.f32 %v1168, 0.0
        %v1187 = vmax.f32 %v1169, 0.0
        %v1188 = vmax.f32 %v1170, 0.0
        %v1189 = vmax.f32 %v1171, 0.0
        %v1190 = vmax.f32 %v1172, 0.0
        %v1191 = vmax.f32 %v1173, 0.0
        %v1192 = vpack.c.bf16 %v1174, %v1174
        %v1193 = vpack.c.bf16 %v1175, %v1175
        %v1194 = vpack.c.bf16 %v1176, %v1176
        %v1195 = vpack.c.bf16 %v1177, %v1177
        %v1196 = vpack.c.bf16 %v1178, %v1178
        %v1197 = vpack.c.bf16 %v1179, %v1179
        %v1198 = vpack.c.bf16 %v1180, %v1180
        %v1199 = vpack.c.bf16 %v1181, %v1181
        %v1200 = vpack.c.bf16 %v1182, %v1182
        %v1201 = vpack.c.bf16 %v1183, %v1183
        %v1202 = vpack.c.bf16 %v1184, %v1184
        %v1203 = vpack.c.bf16 %v1185, %v1185
        %v1204 = vpack.c.bf16 %v1186, %v1186
        %v1205 = vpack.c.bf16 %v1187, %v1187
        %v1206 = vpack.c.bf16 %v1188, %v1188
        %v1207 = vpack.c.bf16 %v1189, %v1189
        %v1208 = vpack.c.bf16 %v1190, %v1190
        %v1209 = vpack.c.bf16 %v1191, %v1191
        %1210 = vst [vmem:[%s499] sm:$0xf] %v1192
        %1211 = vst [vmem:[%s499 + $0x4] sm:$0xf] %v1193
        %1212 = vst [vmem:[%s499 + $0x8] sm:$0xf] %v1194
        %1213 = vst [vmem:[%s499 + $0xc] sm:$0xf] %v1195
        %1214 = vst [vmem:[%s499 + $0x10] sm:$0xf] %v1196
        %1215 = vst [vmem:[%s499 + $0x14] sm:$0xf] %v1197
        %1216 = vst [vmem:[%s499 + $0x18] sm:$0xf] %v1198
        %1217 = vst [vmem:[%s499 + $0x1c] sm:$0xf] %v1199
        %1218 = vst [vmem:[%s499 + $0x20] sm:$0xf] %v1200
        %1219 = vst [vmem:[%s499 + $0x24] sm:$0xf] %v1201
        %1220 = vst [vmem:[%s499 + $0x28] sm:$0xf] %v1202
        %1221 = vst [vmem:[%s499 + $0x2c] sm:$0xf] %v1203
        %1222 = vst [vmem:[%s499 + $0x30] sm:$0xf] %v1204
        %1223 = vst [vmem:[%s499 + $0x34] sm:$0xf] %v1205
        %1224 = vst [vmem:[%s499 + $0x38] sm:$0xf] %v1206
        %1225 = vst [vmem:[%s499 + $0x3c] sm:$0xf] %v1207
        %1226 = vst [vmem:[%s499 + $0x40] sm:$0xf] %v1208
        %1227 = vst [vmem:[%s499 + $0x44] sm:$0xf] %v1209
        %s1228 = smul.u32 18, %s14
        %p1229 = scmp.lt.s32.totalorder %s1228, 35
        %s1230 = scalar_select %p1229, %s1228, 35
        %s1231 = smul.addr %s1230, 4
        %s1232 = scalar_lea.vmem %s3, %s1231
        // Predicated region
        $region74: #{net_forward.3} parent=68 // pred_check
          %p1233 = pneg %p100
        $region75: #{net_forward.3} parent=68 // pred_check_branch
          %1235 = sbr.rel (%p1233) target = $region77
        $region76: #{net_forward.3} parent=68 // pred_region
          %s1236 = smul.u32 18, %s14
        $region77: #{net_forward.3} parent=68 // pred_fallthru
          _
      $region69: #{net_forward.3} parent=5 // pred_fallthru
        _
      %p1237 = scmp.le.s32.totalorder 2, %s9
      // Predicated region
      $region78: #{net_forward.3} parent=5 // pred_check
        %p1238 = pneg %p1237
      $region79: #{net_forward.3} parent=5 // pred_check_branch
        %1240 = sbr.rel (%p1238) target = $region81
      $region80: #{net_forward.3} parent=5 // pred_region
        %s1241 = ssub.s32 %s9, 2
        // Predicated region
        $region82: #{net_forward.3} parent=80 // pred_check
          %p1242 = pneg %p106
        $region83: #{net_forward.3} parent=80 // pred_check_branch
          %1244 = sbr.rel (%p1242) target = $region85
        $region84: #{net_forward.3} parent=80 // pred_region
          %s1245 = smul.u32 18, %s15
          %p1246 = scmp.lt.s32.totalorder %s1245, 35
          %s1247 = scalar_select %p1246, %s1245, 35
          %s1248 = smul.addr %s1247, 4
          %s1249 = scalar_lea.vmem %s3, %s1248
        $region85: #{net_forward.3} parent=80 // pred_fallthru
          _
      $region81: #{net_forward.3} parent=5 // pred_fallthru
        _
    $region6: #{net_forward.3} parent=1 // loop_footer
      %s13 = sadd.s32 1, %s9
    $region7: #{net_forward.3} parent=1 // loop_footer_branch
      %8 = sbr.rel target = $region3
    $region8: #{net_forward.3} parent=1 // loop_exit
      _

// kernel: net_forward.4
$region0: #{net_forward.4}
  #allocation0 [shape = 'u32[]', space=smem, size = 0x4, offset = 0x4, fixed_abs, tag = 'smem constant byte address 0x4 - core index']
  #allocation1 [shape = 'u32[72,128]{1,0:T(1,128)}', space=vmem, size = 0x9000, scoped, tag = 'internal scratch']
  %s0 = inlined_call_operand.vmem [shape: bf16[4,32,896], index: 0, kind: input, shape index: {}]
  %s1 = inlined_call_operand.vmem [shape: bf16[896,128], index: 1, kind: input, shape index: {}]
  %s2 = inlined_call_operand.vmem [shape: f32[1,128], index: 2, kind: input, shape index: {}]
  %s3 = inlined_call_operand.vmem [shape: bf16[32,128], index: 3, kind: output, shape index: {}]
  %s4 = sld [smem:[#allocation0]]
  $region71: #{net_forward.4} parent=0
    _
  %s6 = ssub.s32 1, %s4
  %s7 = scalar_select 0, %s6, %s4
  $region1: #{net_forward.4} parent=0
    #allocation2 [shape = 'u8[229376]{0}', space=vmem, size = 0x38000, scoped, tag = 'input window, operand 0']
    loop: start=0, step=1, limit=4
    $region2: #{net_forward.4} parent=1 // loop_pre_header
      _
    $region3: #{net_forward.4} parent=1 // loop_header
      %s9 = sphi 0, %s13
      %p10 = scmp.ge.s32.totalorder %s9, 4
      %s19 = sphi 0, %s21
      %s22 = sphi 0, %s19
      %s23 = sphi 0, %s22
      %s39 = sphi 0, %s23
      %s43 = sphi 0, %s43
      %s45 = sphi 0, %s43
      %s46 = sphi 0, %s45
      %s60 = sphi 0, %s46
      %s64 = sphi 0, %s64
      %s66 = sphi 0, %s64
      %s67 = sphi 0, %s66
      %s81 = sphi 0, %s67
      %s87 = sphi 0, %s89
      %s90 = sphi 0, %s87
      %s91 = sphi 0, %s90
      %s107 = sphi 0, %s91
    $region4: #{net_forward.4} parent=1 // loop_header_branch
      %12 = sbr.rel (%p10) target = $region8
    $region5: #{net_forward.4} parent=1 // loop_body
      %s14 = ssub.s32 %s9, 1
      %s15 = ssub.s32 %s9, 2
      %s16 = sadd.s32 %s9, 1
      %s17 = ssub.s32 %s9, %s16
      %p18 = scmp.eq.s32.totalorder %s17, 0
      %s20 = sadd.s32 %s19, 1
      %s21 = scalar_select %p18, %s19, %s20
      %p24 = pneg %p18
      %p25 = scmp.eq.s32.totalorder %s9, 1
      %p26 = por %p24, %p25
      %p27 = scmp.ne.s32.totalorder %s19, %s22
      %p28 = scmp.eq.s32.totalorder %s9, 0
      %p29 = por %p27, %p28
      %p30 = scmp.ne.s32.totalorder %s19, %s22
      %p31 = scmp.eq.s32.totalorder %s14, 1
      %p32 = por %p30, %p31
      %p33 = scmp.ne.s32.totalorder %s22, %s23
      %p34 = scmp.eq.s32.totalorder %s14, 0
      %p35 = por %p33, %p34
      %p36 = scmp.ne.s32.totalorder %s22, %s23
      %p37 = scmp.eq.s32.totalorder %s15, 1
      %p38 = por %p36, %p37
      %p40 = scmp.ne.s32.totalorder %s23, %s39
      %p41 = scmp.eq.s32.totalorder %s15, 0
      %p42 = por %p40, %p41
      %s44 = sadd.s32 %s43, 1
      %p47 = scmp.eq.s32.totalorder %s9, 1
      %p48 = scmp.ne.s32.totalorder %s43, %s45
      %p49 = scmp.eq.s32.totalorder %s9, 0
      %p50 = por %p48, %p49
      %p51 = scmp.ne.s32.totalorder %s43, %s45
      %p52 = scmp.eq.s32.totalorder %s14, 1
      %p53 = por %p51, %p52
      %p54 = scmp.ne.s32.totalorder %s45, %s46
      %p55 = scmp.eq.s32.totalorder %s14, 0
      %p56 = por %p54, %p55
      %p57 = scmp.ne.s32.totalorder %s45, %s46
      %p58 = scmp.eq.s32.totalorder %s15, 1
      %p59 = por %p57, %p58
      %p61 = scmp.ne.s32.totalorder %s46, %s60
      %p62 = scmp.eq.s32.totalorder %s15, 0
      %p63 = por %p61, %p62
      %s65 = sadd.s32 %s64, 1
      %p68 = scmp.eq.s32.totalorder %s9, 1
      %p69 = scmp.ne.s32.totalorder %s64, %s66
      %p70 = scmp.eq.s32.totalorder %s9, 0
      %p71 = por %p69, %p70
      %p72 = scmp.ne.s32.totalorder %s64, %s66
      %p73 = scmp.eq.s32.totalorder %s14, 1
      %p74 = por %p72, %p73
      %p75 = scmp.ne.s32.totalorder %s66, %s67
      %p76 = scmp.eq.s32.totalorder %s14, 0
      %p77 = por %p75, %p76
      %p78 = scmp.ne.s32.totalorder %s66, %s67
      %p79 = scmp.eq.s32.totalorder %s15, 1
      %p80 = por %p78, %p79
      %p82 = scmp.ne.s32.totalorder %s67, %s81
      %p83 = scmp.eq.s32.totalorder %s15, 0
      %p84 = por %p82, %p83
      %s85 = ssub.s32 %s9, %s16
      %p86 = scmp.eq.s32.totalorder %s85, 0
      %s88 = sadd.s32 %s87, 1
      %s89 = scalar_select %p86, %s87, %s88
      %p92 = pneg %p86
      %p93 = scmp.eq.s32.totalorder %s9, 1
      %p94 = por %p92, %p93
      %p95 = scmp.ne.s32.totalorder %s87, %s90
      %p96 = scmp.eq.s32.totalorder %s9, 0
      %p97 = por %p95, %p96
      %p98 = scmp.ne.s32.totalorder %s87, %s90
      %p99 = scmp.eq.s32.totalorder %s14, 1
      %p100 = por %p98, %p99
      %p101 = scmp.ne.s32.totalorder %s90, %s91
      %p102 = scmp.eq.s32.totalorder %s14, 0
      %p103 = por %p101, %p102
      %p104 = scmp.ne.s32.totalorder %s90, %s91
      %p105 = scmp.eq.s32.totalorder %s15, 1
      %p106 = por %p104, %p105
      %p108 = scmp.ne.s32.totalorder %s91, %s107
      %p109 = scmp.eq.s32.totalorder %s15, 0
      %p110 = por %p108, %p109
      %p111 = scmp.le.s32.totalorder 1, %s9
      %p112 = scmp.lt.s32.totalorder %s9, 3
      %p113 = pnand %p111, %p112
      %p114 = pneg %p113
      // Predicated region
      $region9: #{net_forward.4} parent=5 // pred_check
        _
      $region10: #{net_forward.4} parent=5 // pred_check_branch
        %116 = sbr.rel (%p113) target = $region12
      $region11: #{net_forward.4} parent=5 // pred_region
        %s117 = ssub.s32 %s9, 1
        // Predicated region
        $region13: #{net_forward.4} parent=11 // pred_check
          %p118 = pneg %p56
        $region14: #{net_forward.4} parent=11 // pred_check_branch
          %120 = sbr.rel (%p118) target = $region16
        $region15: #{net_forward.4} parent=11 // pred_region
          _
        $region16: #{net_forward.4} parent=11 // pred_fallthru
          _
        // Predicated region
        $region17: #{net_forward.4} parent=11 // pred_check
          %p121 = pneg %p77
        $region18: #{net_forward.4} parent=11 // pred_check_branch
          %123 = sbr.rel (%p121) target = $region20
        $region19: #{net_forward.4} parent=11 // pred_region
          _
        $region20: #{net_forward.4} parent=11 // pred_fallthru
          _
      $region12: #{net_forward.4} parent=5 // pred_fallthru
        _
      %p124 = scmp.lt.s32.totalorder %s9, 2
      // Predicated region
      $region21: #{net_forward.4} parent=5 // pred_check
        %p125 = pneg %p124
      $region22: #{net_forward.4} parent=5 // pred_check_branch
        %127 = sbr.rel (%p125) target = $region24
      $region23: #{net_forward.4} parent=5 // pred_region
        // Predicated region
        $region25: #{net_forward.4} parent=23 // pred_check
          %p128 = pneg %p29
        $region26: #{net_forward.4} parent=23 // pred_check_branch
          %130 = sbr.rel (%p128) target = $region28
        $region27: #{net_forward.4} parent=23 // pred_region
          %s131 = sand.u32 %s19, 1
          %s132 = sand.u32 %s19, 1
          %s133 = smul.addr %s132, 224
          %s134 = scalar_lea.vmem [#allocation2], %s133
          %s135 = smul.u32 2, %s9
          %s136 = smul.addr %s135, 7
          %s137 = smul.addr %s136, 4
          %s138 = scalar_lea.vmem %s0, %s137
          // Predicated region
          $region29: #{net_forward.4} parent=27 // pred_check
            _
          $region30: #{net_forward.4} parent=27 // pred_check_branch
            %140 = sbr.rel (0) target = $region32
          $region31: #{net_forward.4} parent=27 // pred_region
            // Predicated region
            $region33: #{net_forward.4} parent=31 // pred_check
              _
            $region34: #{net_forward.4} parent=31 // pred_check_branch
              %142 = sbr.rel (0) target = $region36
            $region35: #{net_forward.4} parent=31 // pred_region
              %s143 = scalar_lea.vmem %s138, 24
              %s144 = scalar_lea.vmem %s134, 24 [#allocation2]
              loop: start=0, step=1, limit=1
              $region37: #{net_forward.4} parent=35 // loop_pre_header
                _
              $region38: #{net_forward.4} parent=35 // loop_header
                %s146 = sphi 0, %s150
                %p147 = scmp.ge.s32.totalorder %s146, 1
                %s151 = sphi %s138, %s138
                %s152 = sphi %s134, %s134
              $region39: #{net_forward.4} parent=35 // loop_header_branch
                %149 = sbr.rel (%p147) target = $region43
              $region40: #{net_forward.4} parent=35 // loop_body
                %v153 = vld [vmem:[%s151] sm:$0xff]
                %154 = vst [vmem:[%s152] sm:$0xff] %v153
                %v155 = vld [vmem:[%s151 + $0x8] sm:$0xff]
                %156 = vst [vmem:[%s152 + $0x8] sm:$0xff] %v155
                %v157 = vld [vmem:[%s151 + $0x10] sm:$0xff]
                %158 = vst [vmem:[%s152 + $0x10] sm:$0xff] %v157
                %v159 = vld [vmem:[%s151 + $0x1c] sm:$0xff]
                %160 = vst [vmem:[%s152 + $0x1c] sm:$0xff] %v159
                %v161 = vld [vmem:[%s151 + $0x24] sm:$0xff]
                %162 = vst [vmem:[%s152 + $0x24] sm:$0xff] %v161
                %v163 = vld [vmem:[%s151 + $0x2c] sm:$0xff]
                %164 = vst [vmem:[%s152 + $0x2c] sm:$0xff] %v163
                %v165 = vld [vmem:[%s151 + $0x70] sm:$0xff]
                %166 = vst [vmem:[%s152 + $0x38] sm:$0xff] %v165
                %v167 = vld [vmem:[%s151 + $0x78] sm:$0xff]
                %168 = vst [vmem:[%s152 + $0x40] sm:$0xff] %v167
                %v169 = vld [vmem:[%s151 + $0x80] sm:$0xff]
                %170 = vst [vmem:[%s152 + $0x48] sm:$0xff] %v169
                %v171 = vld [vmem:[%s151 + $0x8c] sm:$0xff]
                %172 = vst [vmem:[%s152 + $0x54] sm:$0xff] %v171
                %v173 = vld [vmem:[%s151 + $0x94] sm:$0xff]
                %174 = vst [vmem:[%s152 + $0x5c] sm:$0xff] %v173
                %v175 = vld [vmem:[%s151 + $0x9c] sm:$0xff]
                %176 = vst [vmem:[%s152 + $0x64] sm:$0xff] %v175
                %v177 = vld [vmem:[%s151 + $0xe0] sm:$0xff]
                %178 = vst [vmem:[%s152 + $0x70] sm:$0xff] %v177
                %v179 = vld [vmem:[%s151 + $0xe8] sm:$0xff]
                %180 = vst [vmem:[%s152 + $0x78] sm:$0xff] %v179
                %v181 = vld [vmem:[%s151 + $0xf0] sm:$0xff]
                %182 = vst [vmem:[%s152 + $0x80] sm:$0xff] %v181
                %v183 = vld [vmem:[%s151 + $0xfc] sm:$0xff]
                %184 = vst [vmem:[%s152 + $0x8c] sm:$0xff] %v183
                %v185 = vld [vmem:[%s151 + $0x104] sm:$0xff]
                %186 = vst [vmem:[%s152 + $0x94] sm:$0xff] %v185
                %v187 = vld [vmem:[%s151 + $0x10c] sm:$0xff]
                %188 = vst [vmem:[%s152 + $0x9c] sm:$0xff] %v187
                %v189 = vld [vmem:[%s151 + $0x150] sm:$0xff]
                %190 = vst [vmem:[%s152 + $0xa8] sm:$0xff] %v189
                %v191 = vld [vmem:[%s151 + $0x158] sm:$0xff]
                %192 = vst [vmem:[%s152 + $0xb0] sm:$0xff] %v191
                %v193 = vld [vmem:[%s151 + $0x160] sm:$0xff]
                %194 = vst [vmem:[%s152 + $0xb8] sm:$0xff] %v193
                %v195 = vld [vmem:[%s151 + $0x16c] sm:$0xff]
                %196 = vst [vmem:[%s152 + $0xc4] sm:$0xff] %v195
                %v197 = vld [vmem:[%s151 + $0x174] sm:$0xff]
                %198 = vst [vmem:[%s152 + $0xcc] sm:$0xff] %v197
                %v199 = vld [vmem:[%s151 + $0x17c] sm:$0xff]
                %200 = vst [vmem:[%s152 + $0xd4] sm:$0xff] %v199
              $region41: #{net_forward.4} parent=35 // loop_footer
                %s150 = sadd.s32 1, %s146
              $region42: #{net_forward.4} parent=35 // loop_footer_branch
                %145 = sbr.rel target = $region38
              $region43: #{net_forward.4} parent=35 // loop_exit
                _
              %s202 = ssub.s32 16, 1
              loop: start=0, step=1, limit=1
              $region44: #{net_forward.4} parent=35 // loop_pre_header
                _
              $region45: #{net_forward.4} parent=35 // loop_header
                %s204 = sphi 0, %s208
                %p205 = scmp.ge.s32.totalorder %s204, 1
                %s209 = sphi %s143, %s143
                %s210 = sphi %s144, %s144
              $region46: #{net_forward.4} parent=35 // loop_header_branch
                %207 = sbr.rel (%p205) target = $region50
              $region47: #{net_forward.4} parent=35 // loop_body
                %v211 = vld [vmem:[%s209] sm:%s202]
                %212 = vst [vmem:[%s210] sm:%s202] %v211
                %v213 = vld [vmem:[%s209 + $0x1c] sm:%s202]
                %214 = vst [vmem:[%s210 + $0x1c] sm:%s202] %v213
                %v215 = vld [vmem:[%s209 + $0x70] sm:%s202]
                %216 = vst [vmem:[%s210 + $0x38] sm:%s202] %v215
                %v217 = vld [vmem:[%s209 + $0x8c] sm:%s202]
                %218 = vst [vmem:[%s210 + $0x54] sm:%s202] %v217
                %v219 = vld [vmem:[%s209 + $0xe0] sm:%s202]
                %220 = vst [vmem:[%s210 + $0x70] sm:%s202] %v219
                %v221 = vld [vmem:[%s209 + $0xfc] sm:%s202]
                %222 = vst [vmem:[%s210 + $0x8c] sm:%s202] %v221
                %v223 = vld [vmem:[%s209 + $0x150] sm:%s202]
                %224 = vst [vmem:[%s210 + $0xa8] sm:%s202] %v223
                %v225 = vld [vmem:[%s209 + $0x16c] sm:%s202]
                %226 = vst [vmem:[%s210 + $0xc4] sm:%s202] %v225
              $region48: #{net_forward.4} parent=35 // loop_footer
                %s208 = sadd.s32 1, %s204
              $region49: #{net_forward.4} parent=35 // loop_footer_branch
                %203 = sbr.rel target = $region45
              $region50: #{net_forward.4} parent=35 // loop_exit
                _
            $region36: #{net_forward.4} parent=31 // pred_fallthru
              _
          $region32: #{net_forward.4} parent=27 // pred_fallthru
            _
          %227 = vnop
        $region28: #{net_forward.4} parent=23 // pred_fallthru
          _
      $region24: #{net_forward.4} parent=5 // pred_fallthru
        _
      %p228 = scmp.le.s32.totalorder 1, %s9
      %p229 = scmp.lt.s32.totalorder %s9, 3
      %p230 = pnand %p228, %p229
      %p231 = pneg %p230
      // Predicated region
      $region51: #{net_forward.4} parent=5 // pred_check
        _
      $region52: #{net_forward.4} parent=5 // pred_check_branch
        %233 = sbr.rel (%p230) target = $region54
      $region53: #{net_forward.4} parent=5 // pred_region
        %s234 = ssub.s32 %s9, 1
        %s235 = sand.u32 %s22, 1
        %s236 = sand.u32 %s22, 1
        %s237 = smul.addr %s236, 224
        %s238 = scalar_lea.vmem [#allocation2], %s237
        // Predicated region
        $region55: #{net_forward.4} parent=53 // pred_check
          %p239 = pneg %p35
        $region56: #{net_forward.4} parent=53 // pred_check_branch
          %241 = sbr.rel (%p239) target = $region58
        $region57: #{net_forward.4} parent=53 // pred_region
          _
        $region58: #{net_forward.4} parent=53 // pred_fallthru
          _
        %s242 = sand.u32 %s22, 1
        %s243 = sand.u32 %s22, 1
        %s244 = smul.addr %s243, 224
        %s245 = scalar_lea.vmem [#allocation2], %s244
        %p246 = pneg %p35
        %p247 = pneg %p32
        %p248 = pneg %p56
        %p249 = pneg %p53
        %p250 = pneg %p77
        %p251 = pneg %p74
        %p252 = pneg %p103
        %p253 = pneg %p100
        %s254 = smul.u32 2, %s14
        %p255 = scmp.lt.s32.totalorder %s254, 3
        %s256 = scalar_select %p255, %s254, 3
        %s257 = smul.addr %s256, 4
        %s258 = scalar_lea.vmem %s3, %s257
        %s259 = smul.u32 2, %s14
        %s260 = smul.u32 2, %s14
        %p261 = scmp.lt.s32.totalorder %s260, 3
        %s262 = scalar_select %p261, %s260, 3
        %s263 = smul.addr %s262, 4
        %s264 = scalar_lea.vmem %s3, %s263
        %s265 = smul.u32 2, %s14
        %v266 = vld [vmem:[%s1] sm:$0xf]
        %v267 = vld [vmem:[%s1 + $0x4] sm:$0xf]
        %v268 = vld [vmem:[%s1 + $0x8] sm:$0xf]
        %v269 = vld [vmem:[%s1 + $0xc] sm:$0xf]
        %v270 = vld [vmem:[%s1 + $0x10] sm:$0xf]
        %v271 = vld [vmem:[%s1 + $0x14] sm:$0xf]
        %v272 = vld [vmem:[%s1 + $0x18] sm:$0xf]
        %v273 = vld [vmem:[%s1 + $0x1c] sm:$0xf]
        %v274 = vld [vmem:[%s1 + $0x20] sm:$0xf]
        %v275 = vld [vmem:[%s1 + $0x24] sm:$0xf]
        %v276 = vld [vmem:[%s1 + $0x28] sm:$0xf]
        %v277 = vld [vmem:[%s1 + $0x2c] sm:$0xf]
        %v278 = vld [vmem:[%s1 + $0x30] sm:$0xf]
        %v279 = vld [vmem:[%s1 + $0x34] sm:$0xf]
        %v280 = vld [vmem:[%s1 + $0x38] sm:$0xf]
        %v281 = vld [vmem:[%s1 + $0x3c] sm:$0xf]
        %v282 = vld [vmem:[%s1 + $0x40] sm:$0xf]
        %v283 = vld [vmem:[%s1 + $0x44] sm:$0xf]
        %v284 = vld [vmem:[%s1 + $0x48] sm:$0xf]
        %v285 = vld [vmem:[%s1 + $0x4c] sm:$0xf]
        %v286 = vld [vmem:[%s1 + $0x50] sm:$0xf]
        %v287 = vld [vmem:[%s1 + $0x54] sm:$0xf]
        %v288 = vld [vmem:[%s1 + $0x58] sm:$0xf]
        %v289 = vld [vmem:[%s1 + $0x5c] sm:$0xf]
        %v290 = vld [vmem:[%s1 + $0x60] sm:$0xf]
        %v291 = vld [vmem:[%s1 + $0x64] sm:$0xf]
        %v292 = vld [vmem:[%s1 + $0x68] sm:$0xf]
        %v293 = vld [vmem:[%s1 + $0x6c] sm:$0xf]
        %v294 = vld [vmem:[%s1 + $0x70] sm:$0xf]
        %v295 = vld [vmem:[%s1 + $0x74] sm:$0xf]
        %v296 = vld [vmem:[%s1 + $0x78] sm:$0xf]
        %v297 = vld [vmem:[%s1 + $0x7c] sm:$0xf]
        %v298 = vld [vmem:[%s1 + $0x80] sm:$0xf]
        %v299 = vld [vmem:[%s1 + $0x84] sm:$0xf]
        %v300 = vld [vmem:[%s1 + $0x88] sm:$0xf]
        %v301 = vld [vmem:[%s1 + $0x8c] sm:$0xf]
        %v302 = vld [vmem:[%s1 + $0x90] sm:$0xf]
        %v303 = vld [vmem:[%s1 + $0x94] sm:$0xf]
        %v304 = vld [vmem:[%s1 + $0x98] sm:$0xf]
        %v305 = vld [vmem:[%s1 + $0x9c] sm:$0xf]
        %v306 = vld [vmem:[%s1 + $0xa0] sm:$0xf]
        %v307 = vld [vmem:[%s1 + $0xa4] sm:$0xf]
        %v308 = vld [vmem:[%s1 + $0xa8] sm:$0xf]
        %v309 = vld [vmem:[%s1 + $0xac] sm:$0xf]
        %v310 = vld [vmem:[%s1 + $0xb0] sm:$0xf]
        %v311 = vld [vmem:[%s1 + $0xb4] sm:$0xf]
        %v312 = vld [vmem:[%s1 + $0xb8] sm:$0xf]
        %v313 = vld [vmem:[%s1 + $0xbc] sm:$0xf]
        %v314 = vld [vmem:[%s1 + $0xc0] sm:$0xf]
        %v315 = vld [vmem:[%s1 + $0xc4] sm:$0xf]
        %v316 = vld [vmem:[%s1 + $0xc8] sm:$0xf]
        %v317 = vld [vmem:[%s1 + $0xcc] sm:$0xf]
        %v318 = vld [vmem:[%s1 + $0xd0] sm:$0xf]
        %v319 = vld [vmem:[%s1 + $0xd4] sm:$0xf]
        %v320 = vld [vmem:[%s1 + $0xd8] sm:$0xf]
        %v321 = vld [vmem:[%s1 + $0xdc] sm:$0xf]
        %v322 = vld [vmem:[%s1 + $0xe0] sm:$0xf]
        %v323 = vld [vmem:[%s1 + $0xe4] sm:$0xf]
        %v324 = vld [vmem:[%s1 + $0xe8] sm:$0xf]
        %v325 = vld [vmem:[%s1 + $0xec] sm:$0xf]
        %v326 = vld [vmem:[%s1 + $0xf0] sm:$0xf]
        %v327 = vld [vmem:[%s1 + $0xf4] sm:$0xf]
        %v328 = vld [vmem:[%s1 + $0xf8] sm:$0xf]
        %v329 = vld [vmem:[%s1 + $0xfc] sm:$0xf]
        %v330 = vld [vmem:[%s1 + $0x100] sm:$0xf]
        %v331 = vld [vmem:[%s1 + $0x104] sm:$0xf]
        %v332 = vld [vmem:[%s1 + $0x108] sm:$0xf]
        %v333 = vld [vmem:[%s1 + $0x10c] sm:$0xf]
        %v334 = vld [vmem:[%s1 + $0x110] sm:$0xf]
        %v335 = vld [vmem:[%s1 + $0x114] sm:$0xf]
        %v336 = vld [vmem:[%s1 + $0x118] sm:$0xf]
        %v337 = vld [vmem:[%s1 + $0x11c] sm:$0xf]
        %v338 = vld [vmem:[%s1 + $0x120] sm:$0xf]
        %v339 = vld [vmem:[%s1 + $0x124] sm:$0xf]
        %v340 = vld [vmem:[%s1 + $0x128] sm:$0xf]
        %v341 = vld [vmem:[%s1 + $0x12c] sm:$0xf]
        %v342 = vld [vmem:[%s1 + $0x130] sm:$0xf]
        %v343 = vld [vmem:[%s1 + $0x134] sm:$0xf]
        %v344 = vld [vmem:[%s1 + $0x138] sm:$0xf]
        %v345 = vld [vmem:[%s1 + $0x13c] sm:$0xf]
        %v346 = vld [vmem:[%s1 + $0x140] sm:$0xf]
        %v347 = vld [vmem:[%s1 + $0x144] sm:$0xf]
        %v348 = vld [vmem:[%s1 + $0x148] sm:$0xf]
        %v349 = vld [vmem:[%s1 + $0x14c] sm:$0xf]
        %v350 = vld [vmem:[%s1 + $0x150] sm:$0xf]
        %v351 = vld [vmem:[%s1 + $0x154] sm:$0xf]
        %v352 = vld [vmem:[%s1 + $0x158] sm:$0xf]
        %v353 = vld [vmem:[%s1 + $0x15c] sm:$0xf]
        %v354 = vld [vmem:[%s1 + $0x160] sm:$0xf]
        %v355 = vld [vmem:[%s1 + $0x164] sm:$0xf]
        %v356 = vld [vmem:[%s1 + $0x168] sm:$0xf]
        %v357 = vld [vmem:[%s1 + $0x16c] sm:$0xf]
        %v358 = vld [vmem:[%s1 + $0x170] sm:$0xf]
        %v359 = vld [vmem:[%s1 + $0x174] sm:$0xf]
        %v360 = vld [vmem:[%s1 + $0x178] sm:$0xf]
        %v361 = vld [vmem:[%s1 + $0x17c] sm:$0xf]
        %v362 = vld [vmem:[%s1 + $0x180] sm:$0xf]
        %v363 = vld [vmem:[%s1 + $0x184] sm:$0xf]
        %v364 = vld [vmem:[%s1 + $0x188] sm:$0xf]
        %v365 = vld [vmem:[%s1 + $0x18c] sm:$0xf]
        %v366 = vld [vmem:[%s1 + $0x190] sm:$0xf]
        %v367 = vld [vmem:[%s1 + $0x194] sm:$0xf]
        %v368 = vld [vmem:[%s1 + $0x198] sm:$0xf]
        %v369 = vld [vmem:[%s1 + $0x19c] sm:$0xf]
        %v370 = vld [vmem:[%s1 + $0x1a0] sm:$0xf]
        %v371 = vld [vmem:[%s1 + $0x1a4] sm:$0xf]
        %v372 = vld [vmem:[%s1 + $0x1a8] sm:$0xf]
        %v373 = vld [vmem:[%s1 + $0x1ac] sm:$0xf]
        %v374 = vld [vmem:[%s1 + $0x1b0] sm:$0xf]
        %v375 = vld [vmem:[%s1 + $0x1b4] sm:$0xf]
        %v376 = vld [vmem:[%s1 + $0x1b8] sm:$0xf]
        %v377 = vld [vmem:[%s1 + $0x1bc] sm:$0xf]
        %v378 = vld [vmem:[%s238] sm:$0xff]
        %v379 = vld [vmem:[%s238 + $0x8] sm:$0xff]
        %v380 = vld [vmem:[%s238 + $0x10] sm:$0xff]
        %v381 = vld [vmem:[%s238 + $0x18] sm:$0xf]
        %v382 = vld [vmem:[%s238 + $0x1c] sm:$0xff]
        %v383 = vld [vmem:[%s238 + $0x24] sm:$0xff]
        %v384 = vld [vmem:[%s238 + $0x2c] sm:$0xff]
        %v385 = vld [vmem:[%s238 + $0x34] sm:$0xf]
        %v394 = vunpack.c.l.b16 %v378
        %v395 = vunpack.c.h.b16 %v378
        %v396 = vunpack.c.l.b16 %v379
        %v397 = vunpack.c.h.b16 %v379
        %v398 = vunpack.c.l.b16 %v380
        %v399 = vunpack.c.h.b16 %v380
        %v400 = vunpack.c.l.b16 %v381
        %v401 = vunpack.c.l.b16 %v382
        %v402 = vunpack.c.h.b16 %v382
        %v403 = vunpack.c.l.b16 %v383
        %v404 = vunpack.c.h.b16 %v383
        %v405 = vunpack.c.l.b16 %v384
        %v406 = vunpack.c.h.b16 %v384
        %v407 = vunpack.c.l.b16 %v385
        %v408 = vpack.c.b16 %v401, %v394
        %v409 = vpack.c.b16 %v402, %v395
        %v410 = vpack.c.b16 %v403, %v396
        %v411 = vpack.c.b16 %v404, %v397
        %v412 = vpack.c.b16 %v405, %v398
        %v413 = vpack.c.b16 %v406, %v399
        %v414 = vpack.c.b16 %v407, %v400
        %v534 = vunpack.c.l.b16 %v266
        %v535 = vunpack.c.l.b16 %v267
        %v536 = vunpack.c.l.b16 %v268
        %v537 = vunpack.c.l.b16 %v269
        %v538 = vunpack.c.l.b16 %v270
        %v539 = vunpack.c.l.b16 %v271
        %v540 = vunpack.c.l.b16 %v272
        %v541 = vunpack.c.l.b16 %v273
        %v542 = vunpack.c.l.b16 %v274
        %v543 = vunpack.c.l.b16 %v275
        %v544 = vunpack.c.l.b16 %v276
        %v545 = vunpack.c.l.b16 %v277
        %v546 = vunpack.c.l.b16 %v278
        %v547 = vunpack.c.l.b16 %v279
        %v548 = vunpack.c.l.b16 %v280
        %v549 = vunpack.c.l.b16 %v281
        %v550 = vunpack.c.l.b16 %v282
        %v551 = vunpack.c.l.b16 %v283
        %v552 = vunpack.c.l.b16 %v284
        %v553 = vunpack.c.l.b16 %v285
        %v554 = vunpack.c.l.b16 %v286
        %v555 = vunpack.c.l.b16 %v287
        %v556 = vunpack.c.l.b16 %v288
        %v557 = vunpack.c.l.b16 %v289
        %v558 = vunpack.c.l.b16 %v290
        %v559 = vunpack.c.l.b16 %v291
        %v560 = vunpack.c.l.b16 %v292
        %v561 = vunpack.c.l.b16 %v293
        %v562 = vunpack.c.l.b16 %v294
        %v563 = vunpack.c.l.b16 %v295
        %v564 = vunpack.c.l.b16 %v296
        %v565 = vunpack.c.l.b16 %v297
        %v566 = vunpack.c.l.b16 %v298
        %v567 = vunpack.c.l.b16 %v299
        %v568 = vunpack.c.l.b16 %v300
        %v569 = vunpack.c.l.b16 %v301
        %v570 = vunpack.c.l.b16 %v302
        %v571 = vunpack.c.l.b16 %v303
        %v572 = vunpack.c.l.b16 %v304
        %v573 = vunpack.c.l.b16 %v305
        %v574 = vunpack.c.l.b16 %v306
        %v575 = vunpack.c.l.b16 %v307
        %v576 = vunpack.c.l.b16 %v308
        %v577 = vunpack.c.l.b16 %v309
        %v578 = vunpack.c.l.b16 %v310
        %v579 = vunpack.c.l.b16 %v311
        %v580 = vunpack.c.l.b16 %v312
        %v581 = vunpack.c.l.b16 %v313
        %v582 = vunpack.c.l.b16 %v314
        %v583 = vunpack.c.l.b16 %v315
        %v584 = vunpack.c.l.b16 %v316
        %v585 = vunpack.c.l.b16 %v317
        %v586 = vunpack.c.l.b16 %v318
        %v587 = vunpack.c.l.b16 %v319
        %v588 = vunpack.c.l.b16 %v320
        %v589 = vunpack.c.l.b16 %v321
        %v590 = vunpack.c.l.b16 %v322
        %v591 = vunpack.c.l.b16 %v323
        %v592 = vunpack.c.l.b16 %v324
        %v593 = vunpack.c.l.b16 %v325
        %v594 = vunpack.c.l.b16 %v326
        %v595 = vunpack.c.l.b16 %v327
        %v596 = vunpack.c.l.b16 %v328
        %v597 = vunpack.c.l.b16 %v329
        %v598 = vunpack.c.l.b16 %v330
        %v599 = vunpack.c.l.b16 %v331
        %v600 = vunpack.c.l.b16 %v332
        %v601 = vunpack.c.l.b16 %v333
        %v602 = vunpack.c.l.b16 %v334
        %v603 = vunpack.c.l.b16 %v335
        %v604 = vunpack.c.l.b16 %v336
        %v605 = vunpack.c.l.b16 %v337
        %v606 = vunpack.c.l.b16 %v338
        %v607 = vunpack.c.l.b16 %v339
        %v608 = vunpack.c.l.b16 %v340
        %v609 = vunpack.c.l.b16 %v341
        %v610 = vunpack.c.l.b16 %v342
        %v611 = vunpack.c.l.b16 %v343
        %v612 = vunpack.c.l.b16 %v344
        %v613 = vunpack.c.l.b16 %v345
        %v614 = vunpack.c.l.b16 %v346
        %v615 = vunpack.c.l.b16 %v347
        %v616 = vunpack.c.l.b16 %v348
        %v617 = vunpack.c.l.b16 %v349
        %v618 = vunpack.c.l.b16 %v350
        %v619 = vunpack.c.l.b16 %v351
        %v620 = vunpack.c.l.b16 %v352
        %v621 = vunpack.c.l.b16 %v353
        %v622 = vunpack.c.l.b16 %v354
        %v623 = vunpack.c.l.b16 %v355
        %v624 = vunpack.c.l.b16 %v356
        %v625 = vunpack.c.l.b16 %v357
        %v626 = vunpack.c.l.b16 %v358
        %v627 = vunpack.c.l.b16 %v359
        %v628 = vunpack.c.l.b16 %v360
        %v629 = vunpack.c.l.b16 %v361
        %v630 = vunpack.c.l.b16 %v362
        %v631 = vunpack.c.l.b16 %v363
        %v632 = vunpack.c.l.b16 %v364
        %v633 = vunpack.c.l.b16 %v365
        %v634 = vunpack.c.l.b16 %v366
        %v635 = vunpack.c.l.b16 %v367
        %v636 = vunpack.c.l.b16 %v368
        %v637 = vunpack.c.l.b16 %v369
        %v638 = vunpack.c.l.b16 %v370
        %v639 = vunpack.c.l.b16 %v371
        %v640 = vunpack.c.l.b16 %v372
        %v641 = vunpack.c.l.b16 %v373
        %v642 = vunpack.c.l.b16 %v374
        %v643 = vunpack.c.l.b16 %v375
        %v644 = vunpack.c.l.b16 %v376
        %v645 = vunpack.c.l.b16 %v377
        %v646 = vpack.c.b16 %v535, %v534
        %v647 = vpack.c.b16 %v537, %v536
        %v648 = vpack.c.b16 %v539, %v538
        %v649 = vpack.c.b16 %v541, %v540
        %v650 = vpack.c.b16 %v543, %v542
        %v651 = vpack.c.b16 %v545, %v544
        %v652 = vpack.c.b16 %v547, %v546
        %v653 = vpack.c.b16 %v549, %v548
        %v654 = vpack.c.b16 %v551, %v550
        %v655 = vpack.c.b16 %v553, %v552
        %v656 = vpack.c.b16 %v555, %v554
        %v657 = vpack.c.b16 %v557, %v556
        %v658 = vpack.c.b16 %v559, %v558
        %v659 = vpack.c.b16 %v561, %v560
        %v660 = vpack.c.b16 %v563, %v562
        %v661 = vpack.c.b16 %v565, %v564
        %v662 = vpack.c.b16 %v567, %v566
        %v663 = vpack.c.b16 %v569, %v568
        %v664 = vpack.c.b16 %v571, %v570
        %v665 = vpack.c.b16 %v573, %v572
        %v666 = vpack.c.b16 %v575, %v574
        %v667 = vpack.c.b16 %v577, %v576
        %v668 = vpack.c.b16 %v579, %v578
        %v669 = vpack.c.b16 %v581, %v580
        %v670 = vpack.c.b16 %v583, %v582
        %v671 = vpack.c.b16 %v585, %v584
        %v672 = vpack.c.b16 %v587, %v586
        %v673 = vpack.c.b16 %v589, %v588
        %v674 = vpack.c.b16 %v591, %v590
        %v675 = vpack.c.b16 %v593, %v592
        %v676 = vpack.c.b16 %v595, %v594
        %v677 = vpack.c.b16 %v597, %v596
        %v678 = vpack.c.b16 %v599, %v598
        %v679 = vpack.c.b16 %v601, %v600
        %v680 = vpack.c.b16 %v603, %v602
        %v681 = vpack.c.b16 %v605, %v604
        %v682 = vpack.c.b16 %v607, %v606
        %v683 = vpack.c.b16 %v609, %v608
        %v684 = vpack.c.b16 %v611, %v610
        %v685 = vpack.c.b16 %v613, %v612
        %v686 = vpack.c.b16 %v615, %v614
        %v687 = vpack.c.b16 %v617, %v616
        %v688 = vpack.c.b16 %v619, %v618
        %v689 = vpack.c.b16 %v621, %v620
        %v690 = vpack.c.b16 %v623, %v622
        %v691 = vpack.c.b16 %v625, %v624
        %v692 = vpack.c.b16 %v627, %v626
        %v693 = vpack.c.b16 %v629, %v628
        %v694 = vpack.c.b16 %v631, %v630
        %v695 = vpack.c.b16 %v633, %v632
        %v696 = vpack.c.b16 %v635, %v634
        %v697 = vpack.c.b16 %v637, %v636
        %v698 = vpack.c.b16 %v639, %v638
        %v699 = vpack.c.b16 %v641, %v640
        %v700 = vpack.c.b16 %v643, %v642
        %v701 = vpack.c.b16 %v645, %v644
        %758 = vmatpush.bf16.msra.mxu0 %v653
        %759 = vmatpush.bf16.msra.mxu0 %v652
        %760 = vmatpush.bf16.msra.mxu0 %v651
        %761 = vmatpush.bf16.msra.mxu0 %v650
        %762 = vmatpush.bf16.msra.mxu0 %v649
        %763 = vmatpush.bf16.msra.mxu0 %v648
        %764 = vmatpush.bf16.msra.mxu0 %v647
        %765 = vmatpush.bf16.msra.mxu0 %v646
        %766 = vmatmul.bf16.gmra.mxu0 %v408
        %v767 = vpop.f32.mrf.mxu0
        %v768 = vadd.f32 0.0, %v767
        %v769 = vpop.f32.mrf.mxu0
        %v770 = vadd.f32 0.0, %v769
        %771 = vdwg.mxu0
        %772 = vmatpush.bf16.msra.mxu0 %v661
        %773 = vmatpush.bf16.msra.mxu0 %v660
        %774 = vmatpush.bf16.msra.mxu0 %v659
        %775 = vmatpush.bf16.msra.mxu0 %v658
        %776 = vmatpush.bf16.msra.mxu0 %v657
        %777 = vmatpush.bf16.msra.mxu0 %v656
        %778 = vmatpush.bf16.msra.mxu0 %v655
        %779 = vmatpush.bf16.msra.mxu0 %v654
        %780 = vmatmul.bf16.gmra.mxu0 %v409
        %v781 = vpop.f32.mrf.mxu0
        %v782 = vadd.f32 %v768, %v781
        %v783 = vpop.f32.mrf.mxu0
        %v784 = vadd.f32 %v770, %v783
        %785 = vdwg.mxu0
        %786 = vmatpush.bf16.msra.mxu0 %v669
        %787 = vmatpush.bf16.msra.mxu0 %v668
        %788 = vmatpush.bf16.msra.mxu0 %v667
        %789 = vmatpush.bf16.msra.mxu0 %v666
        %790 = vmatpush.bf16.msra.mxu0 %v665
        %791 = vmatpush.bf16.msra.mxu0 %v664
        %792 = vmatpush.bf16.msra.mxu0 %v663
        %793 = vmatpush.bf16.msra.mxu0 %v662
        %794 = vmatmul.bf16.gmra.mxu0 %v410
        %v795 = vpop.f32.mrf.mxu0
        %v796 = vadd.f32 %v782, %v795
        %v797 = vpop.f32.mrf.mxu0
        %v798 = vadd.f32 %v784, %v797
        %799 = vdwg.mxu0
        %800 = vmatpush.bf16.msra.mxu0 %v677
        %801 = vmatpush.bf16.msra.mxu0 %v676
        %802 = vmatpush.bf16.msra.mxu0 %v675
        %803 = vmatpush.bf16.msra.mxu0 %v674
        %804 = vmatpush.bf16.msra.mxu0 %v673
        %805 = vmatpush.bf16.msra.mxu0 %v672
        %806 = vmatpush.bf16.msra.mxu0 %v671
        %807 = vmatpush.bf16.msra.mxu0 %v670
        %808 = vmatmul.bf16.gmra.mxu0 %v411
        %v809 = vpop.f32.mrf.mxu0
        %v810 = vadd.f32 %v796, %v809
        %v811 = vpop.f32.mrf.mxu0
        %v812 = vadd.f32 %v798, %v811
        %813 = vdwg.mxu0
        %814 = vmatpush.bf16.msra.mxu0 %v685
        %815 = vmatpush.bf16.msra.mxu0 %v684
        %816 = vmatpush.bf16.msra.mxu0 %v683
        %817 = vmatpush.bf16.msra.mxu0 %v682
        %818 = vmatpush.bf16.msra.mxu0 %v681
        %819 = vmatpush.bf16.msra.mxu0 %v680
        %820 = vmatpush.bf16.msra.mxu0 %v679
        %821 = vmatpush.bf16.msra.mxu0 %v678
        %822 = vmatmul.bf16.gmra.mxu0 %v412
        %v823 = vpop.f32.mrf.mxu0
        %v824 = vadd.f32 %v810, %v823
        %v825 = vpop.f32.mrf.mxu0
        %v826 = vadd.f32 %v812, %v825
        %827 = vdwg.mxu0
        %828 = vmatpush.bf16.msra.mxu0 %v693
        %829 = vmatpush.bf16.msra.mxu0 %v692
        %830 = vmatpush.bf16.msra.mxu0 %v691
        %831 = vmatpush.bf16.msra.mxu0 %v690
        %832 = vmatpush.bf16.msra.mxu0 %v689
        %833 = vmatpush.bf16.msra.mxu0 %v688
        %834 = vmatpush.bf16.msra.mxu0 %v687
        %835 = vmatpush.bf16.msra.mxu0 %v686
        %836 = vmatmul.bf16.gmra.mxu0 %v413
        %v837 = vpop.f32.mrf.mxu0
        %v838 = vadd.f32 %v824, %v837
        %v839 = vpop.f32.mrf.mxu0
        %v840 = vadd.f32 %v826, %v839
        %841 = vdwg.mxu0
        %842 = vmatpush.bf16.msra.mxu0 %v701
        %843 = vmatpush.bf16.msra.mxu0 %v700
        %844 = vmatpush.bf16.msra.mxu0 %v699
        %845 = vmatpush.bf16.msra.mxu0 %v698
        %846 = vmatpush.bf16.msra.mxu0 %v697
        %847 = vmatpush.bf16.msra.mxu0 %v696
        %848 = vmatpush.bf16.msra.mxu0 %v695
        %849 = vmatpush.bf16.msra.mxu0 %v694
        %850 = vmatmul.bf16.gmra.mxu0 %v414
        %v851 = vpop.f32.mrf.mxu0
        %v852 = vadd.f32 %v838, %v851
        %v853 = vpop.f32.mrf.mxu0
        %v854 = vadd.f32 %v840, %v853
        %855 = vdwg.mxu0
        %s856 = scalar_lea.vmem %s238, 56 [#allocation2]
        %v857 = vld [vmem:[%s856] sm:$0xff]
        %v858 = vld [vmem:[%s856 + $0x8] sm:$0xff]
        %v859 = vld [vmem:[%s856 + $0x10] sm:$0xff]
        %v860 = vld [vmem:[%s856 + $0x18] sm:$0xf]
        %v861 = vld [vmem:[%s856 + $0x1c] sm:$0xff]
        %v862 = vld [vmem:[%s856 + $0x24] sm:$0xff]
        %v863 = vld [vmem:[%s856 + $0x2c] sm:$0xff]
        %v864 = vld [vmem:[%s856 + $0x34] sm:$0xf]
        %v873 = vunpack.c.l.b16 %v857
        %v874 = vunpack.c.h.b16 %v857
        %v875 = vunpack.c.l.b16 %v858
        %v876 = vunpack.c.h.b16 %v858
        %v877 = vunpack.c.l.b16 %v859
        %v878 = vunpack.c.h.b16 %v859
        %v879 = vunpack.c.l.b16 %v860
        %v880 = vunpack.c.l.b16 %v861
        %v881 = vunpack.c.h.b16 %v861
        %v882 = vunpack.c.l.b16 %v862
        %v883 = vunpack.c.h.b16 %v862
        %v884 = vunpack.c.l.b16 %v863
        %v885 = vunpack.c.h.b16 %v863
        %v886 = vunpack.c.l.b16 %v864
        %v887 = vpack.c.b16 %v880, %v873
        %v888 = vpack.c.b16 %v881, %v874
        %v889 = vpack.c.b16 %v882, %v875
        %v890 = vpack.c.b16 %v883, %v876
        %v891 = vpack.c.b16 %v884, %v877
        %v892 = vpack.c.b16 %v885, %v878
        %v893 = vpack.c.b16 %v886, %v879
        %901 = vmatpush.bf16.msra.mxu0 %v653
        %902 = vmatpush.bf16.msra.mxu0 %v652
        %903 = vmatpush.bf16.msra.mxu0 %v651
        %904 = vmatpush.bf16.msra.mxu0 %v650
        %905 = vmatpush.bf16.msra.mxu0 %v649
        %906 = vmatpush.bf16.msra.mxu0 %v648
        %907 = vmatpush.bf16.msra.mxu0 %v647
        %908 = vmatpush.bf16.msra.mxu0 %v646
        %909 = vmatmul.bf16.gmra.mxu0 %v887
        %v910 = vpop.f32.mrf.mxu0
        %v911 = vadd.f32 0.0, %v910
        %v912 = vpop.f32.mrf.mxu0
        %v913 = vadd.f32 0.0, %v912
        %914 = vdwg.mxu0
        %915 = vmatpush.bf16.msra.mxu0 %v661
        %916 = vmatpush.bf16.msra.mxu0 %v660
        %917 = vmatpush.bf16.msra.mxu0 %v659
        %918 = vmatpush.bf16.msra.mxu0 %v658
        %919 = vmatpush.bf16.msra.mxu0 %v657
        %920 = vmatpush.bf16.msra.mxu0 %v656
        %921 = vmatpush.bf16.msra.mxu0 %v655
        %922 = vmatpush.bf16.msra.mxu0 %v654
        %923 = vmatmul.bf16.gmra.mxu0 %v888
        %v924 = vpop.f32.mrf.mxu0
        %v925 = vadd.f32 %v911, %v924
        %v926 = vpop.f32.mrf.mxu0
        %v927 = vadd.f32 %v913, %v926
        %928 = vdwg.mxu0
        %929 = vmatpush.bf16.msra.mxu0 %v669
        %930 = vmatpush.bf16.msra.mxu0 %v668
        %931 = vmatpush.bf16.msra.mxu0 %v667
        %932 = vmatpush.bf16.msra.mxu0 %v666
        %933 = vmatpush.bf16.msra.mxu0 %v665
        %934 = vmatpush.bf16.msra.mxu0 %v664
        %935 = vmatpush.bf16.msra.mxu0 %v663
        %936 = vmatpush.bf16.msra.mxu0 %v662
        %937 = vmatmul.bf16.gmra.mxu0 %v889
        %v938 = vpop.f32.mrf.mxu0
        %v939 = vadd.f32 %v925, %v938
        %v940 = vpop.f32.mrf.mxu0
        %v941 = vadd.f32 %v927, %v940
        %942 = vdwg.mxu0
        %943 = vmatpush.bf16.msra.mxu0 %v677
        %944 = vmatpush.bf16.msra.mxu0 %v676
        %945 = vmatpush.bf16.msra.mxu0 %v675
        %946 = vmatpush.bf16.msra.mxu0 %v674
        %947 = vmatpush.bf16.msra.mxu0 %v673
        %948 = vmatpush.bf16.msra.mxu0 %v672
        %949 = vmatpush.bf16.msra.mxu0 %v671
        %950 = vmatpush.bf16.msra.mxu0 %v670
        %951 = vmatmul.bf16.gmra.mxu0 %v890
        %v952 = vpop.f32.mrf.mxu0
        %v953 = vadd.f32 %v939, %v952
        %v954 = vpop.f32.mrf.mxu0
        %v955 = vadd.f32 %v941, %v954
        %956 = vdwg.mxu0
        %957 = vmatpush.bf16.msra.mxu0 %v685
        %958 = vmatpush.bf16.msra.mxu0 %v684
        %959 = vmatpush.bf16.msra.mxu0 %v683
        %960 = vmatpush.bf16.msra.mxu0 %v682
        %961 = vmatpush.bf16.msra.mxu0 %v681
        %962 = vmatpush.bf16.msra.mxu0 %v680
        %963 = vmatpush.bf16.msra.mxu0 %v679
        %964 = vmatpush.bf16.msra.mxu0 %v678
        %965 = vmatmul.bf16.gmra.mxu0 %v891
        %v966 = vpop.f32.mrf.mxu0
        %v967 = vadd.f32 %v953, %v966
        %v968 = vpop.f32.mrf.mxu0
        %v969 = vadd.f32 %v955, %v968
        %970 = vdwg.mxu0
        %971 = vmatpush.bf16.msra.mxu0 %v693
        %972 = vmatpush.bf16.msra.mxu0 %v692
        %973 = vmatpush.bf16.msra.mxu0 %v691
        %974 = vmatpush.bf16.msra.mxu0 %v690
        %975 = vmatpush.bf16.msra.mxu0 %v689
        %976 = vmatpush.bf16.msra.mxu0 %v688
        %977 = vmatpush.bf16.msra.mxu0 %v687
        %978 = vmatpush.bf16.msra.mxu0 %v686
        %979 = vmatmul.bf16.gmra.mxu0 %v892
        %v980 = vpop.f32.mrf.mxu0
        %v981 = vadd.f32 %v967, %v980
        %v982 = vpop.f32.mrf.mxu0
        %v983 = vadd.f32 %v969, %v982
        %984 = vdwg.mxu0
        %985 = vmatpush.bf16.msra.mxu0 %v701
        %986 = vmatpush.bf16.msra.mxu0 %v700
        %987 = vmatpush.bf16.msra.mxu0 %v699
        %988 = vmatpush.bf16.msra.mxu0 %v698
        %989 = vmatpush.bf16.msra.mxu0 %v697
        %990 = vmatpush.bf16.msra.mxu0 %v696
        %991 = vmatpush.bf16.msra.mxu0 %v695
        %992 = vmatpush.bf16.msra.mxu0 %v694
        %993 = vmatmul.bf16.gmra.mxu0 %v893
        %v994 = vpop.f32.mrf.mxu0
        %v995 = vadd.f32 %v981, %v994
        %v996 = vpop.f32.mrf.mxu0
        %v997 = vadd.f32 %v983, %v996
        %998 = vdwg.mxu0
        %v999 = vmax.f32 %v852, %v995
        %v1000 = vmax.f32 %v854, %v997
        %s1001 = scalar_lea.vmem %s238, 112 [#allocation2]
        %v1002 = vld [vmem:[%s1001] sm:$0xff]
        %v1003 = vld [vmem:[%s1001 + $0x8] sm:$0xff]
        %v1004 = vld [vmem:[%s1001 + $0x10] sm:$0xff]
        %v1005 = vld [vmem:[%s1001 + $0x18] sm:$0xf]
        %v1006 = vld [vmem:[%s1001 + $0x1c] sm:$0xff]
        %v1007 = vld [vmem:[%s1001 + $0x24] sm:$0xff]
        %v1008 = vld [vmem:[%s1001 + $0x2c] sm:$0xff]
        %v1009 = vld [vmem:[%s1001 + $0x34] sm:$0xf]
        %v1018 = vunpack.c.l.b16 %v1002
        %v1019 = vunpack.c.h.b16 %v1002
        %v1020 = vunpack.c.l.b16 %v1003
        %v1021 = vunpack.c.h.b16 %v1003
        %v1022 = vunpack.c.l.b16 %v1004
        %v1023 = vunpack.c.h.b16 %v1004
        %v1024 = vunpack.c.l.b16 %v1005
        %v1025 = vunpack.c.l.b16 %v1006
        %v1026 = vunpack.c.h.b16 %v1006
        %v1027 = vunpack.c.l.b16 %v1007
        %v1028 = vunpack.c.h.b16 %v1007
        %v1029 = vunpack.c.l.b16 %v1008
        %v1030 = vunpack.c.h.b16 %v1008
        %v1031 = vunpack.c.l.b16 %v1009
        %v1032 = vpack.c.b16 %v1025, %v1018
        %v1033 = vpack.c.b16 %v1026, %v1019
        %v1034 = vpack.c.b16 %v1027, %v1020
        %v1035 = vpack.c.b16 %v1028, %v1021
        %v1036 = vpack.c.b16 %v1029, %v1022
        %v1037 = vpack.c.b16 %v1030, %v1023
        %v1038 = vpack.c.b16 %v1031, %v1024
        %1046 = vmatpush.bf16.msra.mxu0 %v653
        %1047 = vmatpush.bf16.msra.mxu0 %v652
        %1048 = vmatpush.bf16.msra.mxu0 %v651
        %1049 = vmatpush.bf16.msra.mxu0 %v650
        %1050 = vmatpush.bf16.msra.mxu0 %v649
        %1051 = vmatpush.bf16.msra.mxu0 %v648
        %1052 = vmatpush.bf16.msra.mxu0 %v647
        %1053 = vmatpush.bf16.msra.mxu0 %v646
        %1054 = vmatmul.bf16.gmra.mxu0 %v1032
        %v1055 = vpop.f32.mrf.mxu0
        %v1056 = vadd.f32 0.0, %v1055
        %v1057 = vpop.f32.mrf.mxu0
        %v1058 = vadd.f32 0.0, %v1057
        %1059 = vdwg.mxu0
        %1060 = vmatpush.bf16.msra.mxu0 %v661
        %1061 = vmatpush.bf16.msra.mxu0 %v660
        %1062 = vmatpush.bf16.msra.mxu0 %v659
        %1063 = vmatpush.bf16.msra.mxu0 %v658
        %1064 = vmatpush.bf16.msra.mxu0 %v657
        %1065 = vmatpush.bf16.msra.mxu0 %v656
        %1066 = vmatpush.bf16.msra.mxu0 %v655
        %1067 = vmatpush.bf16.msra.mxu0 %v654
        %1068 = vmatmul.bf16.gmra.mxu0 %v1033
        %v1069 = vpop.f32.mrf.mxu0
        %v1070 = vadd.f32 %v1056, %v1069
        %v1071 = vpop.f32.mrf.mxu0
        %v1072 = vadd.f32 %v1058, %v1071
        %1073 = vdwg.mxu0
        %1074 = vmatpush.bf16.msra.mxu0 %v669
        %1075 = vmatpush.bf16.msra.mxu0 %v668
        %1076 = vmatpush.bf16.msra.mxu0 %v667
        %1077 = vmatpush.bf16.msra.mxu0 %v666
        %1078 = vmatpush.bf16.msra.mxu0 %v665
        %1079 = vmatpush.bf16.msra.mxu0 %v664
        %1080 = vmatpush.bf16.msra.mxu0 %v663
        %1081 = vmatpush.bf16.msra.mxu0 %v662
        %1082 = vmatmul.bf16.gmra.mxu0 %v1034
        %v1083 = vpop.f32.mrf.mxu0
        %v1084 = vadd.f32 %v1070, %v1083
        %v1085 = vpop.f32.mrf.mxu0
        %v1086 = vadd.f32 %v1072, %v1085
        %1087 = vdwg.mxu0
        %1088 = vmatpush.bf16.msra.mxu0 %v677
        %1089 = vmatpush.bf16.msra.mxu0 %v676
        %1090 = vmatpush.bf16.msra.mxu0 %v675
        %1091 = vmatpush.bf16.msra.mxu0 %v674
        %1092 = vmatpush.bf16.msra.mxu0 %v673
        %1093 = vmatpush.bf16.msra.mxu0 %v672
        %1094 = vmatpush.bf16.msra.mxu0 %v671
        %1095 = vmatpush.bf16.msra.mxu0 %v670
        %1096 = vmatmul.bf16.gmra.mxu0 %v1035
        %v1097 = vpop.f32.mrf.mxu0
        %v1098 = vadd.f32 %v1084, %v1097
        %v1099 = vpop.f32.mrf.mxu0
        %v1100 = vadd.f32 %v1086, %v1099
        %1101 = vdwg.mxu0
        %1102 = vmatpush.bf16.msra.mxu0 %v685
        %1103 = vmatpush.bf16.msra.mxu0 %v684
        %1104 = vmatpush.bf16.msra.mxu0 %v683
        %1105 = vmatpush.bf16.msra.mxu0 %v682
        %1106 = vmatpush.bf16.msra.mxu0 %v681
        %1107 = vmatpush.bf16.msra.mxu0 %v680
        %1108 = vmatpush.bf16.msra.mxu0 %v679
        %1109 = vmatpush.bf16.msra.mxu0 %v678
        %1110 = vmatmul.bf16.gmra.mxu0 %v1036
        %v1111 = vpop.f32.mrf.mxu0
        %v1112 = vadd.f32 %v1098, %v1111
        %v1113 = vpop.f32.mrf.mxu0
        %v1114 = vadd.f32 %v1100, %v1113
        %1115 = vdwg.mxu0
        %1116 = vmatpush.bf16.msra.mxu0 %v693
        %1117 = vmatpush.bf16.msra.mxu0 %v692
        %1118 = vmatpush.bf16.msra.mxu0 %v691
        %1119 = vmatpush.bf16.msra.mxu0 %v690
        %1120 = vmatpush.bf16.msra.mxu0 %v689
        %1121 = vmatpush.bf16.msra.mxu0 %v688
        %1122 = vmatpush.bf16.msra.mxu0 %v687
        %1123 = vmatpush.bf16.msra.mxu0 %v686
        %1124 = vmatmul.bf16.gmra.mxu0 %v1037
        %v1125 = vpop.f32.mrf.mxu0
        %v1126 = vadd.f32 %v1112, %v1125
        %v1127 = vpop.f32.mrf.mxu0
        %v1128 = vadd.f32 %v1114, %v1127
        %1129 = vdwg.mxu0
        %1130 = vmatpush.bf16.msra.mxu0 %v701
        %1131 = vmatpush.bf16.msra.mxu0 %v700
        %1132 = vmatpush.bf16.msra.mxu0 %v699
        %1133 = vmatpush.bf16.msra.mxu0 %v698
        %1134 = vmatpush.bf16.msra.mxu0 %v697
        %1135 = vmatpush.bf16.msra.mxu0 %v696
        %1136 = vmatpush.bf16.msra.mxu0 %v695
        %1137 = vmatpush.bf16.msra.mxu0 %v694
        %1138 = vmatmul.bf16.gmra.mxu0 %v1038
        %v1139 = vpop.f32.mrf.mxu0
        %v1140 = vadd.f32 %v1126, %v1139
        %v1141 = vpop.f32.mrf.mxu0
        %v1142 = vadd.f32 %v1128, %v1141
        %1143 = vdwg.mxu0
        %v1144 = vmax.f32 %v999, %v1140
        %v1145 = vmax.f32 %v1000, %v1142
        %s1146 = scalar_lea.vmem %s238, 168 [#allocation2]
        %v1147 = vld [vmem:[%s1146] sm:$0xff]
        %v1148 = vld [vmem:[%s1146 + $0x8] sm:$0xff]
        %v1149 = vld [vmem:[%s1146 + $0x10] sm:$0xff]
        %v1150 = vld [vmem:[%s1146 + $0x18] sm:$0xf]
        %v1151 = vld [vmem:[%s1146 + $0x1c] sm:$0xff]
        %v1152 = vld [vmem:[%s1146 + $0x24] sm:$0xff]
        %v1153 = vld [vmem:[%s1146 + $0x2c] sm:$0xff]
        %v1154 = vld [vmem:[%s1146 + $0x34] sm:$0xf]
        %v1163 = vunpack.c.l.b16 %v1147
        %v1164 = vunpack.c.h.b16 %v1147
        %v1165 = vunpack.c.l.b16 %v1148
        %v1166 = vunpack.c.h.b16 %v1148
        %v1167 = vunpack.c.l.b16 %v1149
        %v1168 = vunpack.c.h.b16 %v1149
        %v1169 = vunpack.c.l.b16 %v1150
        %v1170 = vunpack.c.l.b16 %v1151
        %v1171 = vunpack.c.h.b16 %v1151
        %v1172 = vunpack.c.l.b16 %v1152
        %v1173 = vunpack.c.h.b16 %v1152
        %v1174 = vunpack.c.l.b16 %v1153
        %v1175 = vunpack.c.h.b16 %v1153
        %v1176 = vunpack.c.l.b16 %v1154
        %v1177 = vpack.c.b16 %v1170, %v1163
        %v1178 = vpack.c.b16 %v1171, %v1164
        %v1179 = vpack.c.b16 %v1172, %v1165
        %v1180 = vpack.c.b16 %v1173, %v1166
        %v1181 = vpack.c.b16 %v1174, %v1167
        %v1182 = vpack.c.b16 %v1175, %v1168
        %v1183 = vpack.c.b16 %v1176, %v1169
        %1191 = vmatpush.bf16.msra.mxu0 %v653
        %1192 = vmatpush.bf16.msra.mxu0 %v652
        %1193 = vmatpush.bf16.msra.mxu0 %v651
        %1194 = vmatpush.bf16.msra.mxu0 %v650
        %1195 = vmatpush.bf16.msra.mxu0 %v649
        %1196 = vmatpush.bf16.msra.mxu0 %v648
        %1197 = vmatpush.bf16.msra.mxu0 %v647
        %1198 = vmatpush.bf16.msra.mxu0 %v646
        %1199 = vmatmul.bf16.gmra.mxu0 %v1177
        %v1200 = vpop.f32.mrf.mxu0
        %v1201 = vadd.f32 0.0, %v1200
        %v1202 = vpop.f32.mrf.mxu0
        %v1203 = vadd.f32 0.0, %v1202
        %1204 = vdwg.mxu0
        %1205 = vmatpush.bf16.msra.mxu0 %v661
        %1206 = vmatpush.bf16.msra.mxu0 %v660
        %1207 = vmatpush.bf16.msra.mxu0 %v659
        %1208 = vmatpush.bf16.msra.mxu0 %v658
        %1209 = vmatpush.bf16.msra.mxu0 %v657
        %1210 = vmatpush.bf16.msra.mxu0 %v656
        %1211 = vmatpush.bf16.msra.mxu0 %v655
        %1212 = vmatpush.bf16.msra.mxu0 %v654
        %1213 = vmatmul.bf16.gmra.mxu0 %v1178
        %v1214 = vpop.f32.mrf.mxu0
        %v1215 = vadd.f32 %v1201, %v1214
        %v1216 = vpop.f32.mrf.mxu0
        %v1217 = vadd.f32 %v1203, %v1216
        %1218 = vdwg.mxu0
        %1219 = vmatpush.bf16.msra.mxu0 %v669
        %1220 = vmatpush.bf16.msra.mxu0 %v668
        %1221 = vmatpush.bf16.msra.mxu0 %v667
        %1222 = vmatpush.bf16.msra.mxu0 %v666
        %1223 = vmatpush.bf16.msra.mxu0 %v665
        %1224 = vmatpush.bf16.msra.mxu0 %v664
        %1225 = vmatpush.bf16.msra.mxu0 %v663
        %1226 = vmatpush.bf16.msra.mxu0 %v662
        %1227 = vmatmul.bf16.gmra.mxu0 %v1179
        %v1228 = vpop.f32.mrf.mxu0
        %v1229 = vadd.f32 %v1215, %v1228
        %v1230 = vpop.f32.mrf.mxu0
        %v1231 = vadd.f32 %v1217, %v1230
        %1232 = vdwg.mxu0
        %1233 = vmatpush.bf16.msra.mxu0 %v677
        %1234 = vmatpush.bf16.msra.mxu0 %v676
        %1235 = vmatpush.bf16.msra.mxu0 %v675
        %1236 = vmatpush.bf16.msra.mxu0 %v674
        %1237 = vmatpush.bf16.msra.mxu0 %v673
        %1238 = vmatpush.bf16.msra.mxu0 %v672
        %1239 = vmatpush.bf16.msra.mxu0 %v671
        %1240 = vmatpush.bf16.msra.mxu0 %v670
        %1241 = vmatmul.bf16.gmra.mxu0 %v1180
        %v1242 = vpop.f32.mrf.mxu0
        %v1243 = vadd.f32 %v1229, %v1242
        %v1244 = vpop.f32.mrf.mxu0
        %v1245 = vadd.f32 %v1231, %v1244
        %1246 = vdwg.mxu0
        %1247 = vmatpush.bf16.msra.mxu0 %v685
        %1248 = vmatpush.bf16.msra.mxu0 %v684
        %1249 = vmatpush.bf16.msra.mxu0 %v683
        %1250 = vmatpush.bf16.msra.mxu0 %v682
        %1251 = vmatpush.bf16.msra.mxu0 %v681
        %1252 = vmatpush.bf16.msra.mxu0 %v680
        %1253 = vmatpush.bf16.msra.mxu0 %v679
        %1254 = vmatpush.bf16.msra.mxu0 %v678
        %1255 = vmatmul.bf16.gmra.mxu0 %v1181
        %v1256 = vpop.f32.mrf.mxu0
        %v1257 = vadd.f32 %v1243, %v1256
        %v1258 = vpop.f32.mrf.mxu0
        %v1259 = vadd.f32 %v1245, %v1258
        %1260 = vdwg.mxu0
        %1261 = vmatpush.bf16.msra.mxu0 %v693
        %1262 = vmatpush.bf16.msra.mxu0 %v692
        %1263 = vmatpush.bf16.msra.mxu0 %v691
        %1264 = vmatpush.bf16.msra.mxu0 %v690
        %1265 = vmatpush.bf16.msra.mxu0 %v689
        %1266 = vmatpush.bf16.msra.mxu0 %v688
        %1267 = vmatpush.bf16.msra.mxu0 %v687
        %1268 = vmatpush.bf16.msra.mxu0 %v686
        %1269 = vmatmul.bf16.gmra.mxu0 %v1182
        %v1270 = vpop.f32.mrf.mxu0
        %v1271 = vadd.f32 %v1257, %v1270
        %v1272 = vpop.f32.mrf.mxu0
        %v1273 = vadd.f32 %v1259, %v1272
        %1274 = vdwg.mxu0
        %1275 = vmatpush.bf16.msra.mxu0 %v701
        %1276 = vmatpush.bf16.msra.mxu0 %v700
        %1277 = vmatpush.bf16.msra.mxu0 %v699
        %1278 = vmatpush.bf16.msra.mxu0 %v698
        %1279 = vmatpush.bf16.msra.mxu0 %v697
        %1280 = vmatpush.bf16.msra.mxu0 %v696
        %1281 = vmatpush.bf16.msra.mxu0 %v695
        %1282 = vmatpush.bf16.msra.mxu0 %v694
        %1283 = vmatmul.bf16.gmra.mxu0 %v1183
        %v1284 = vpop.f32.mrf.mxu0
        %v1285 = vadd.f32 %v1271, %v1284
        %v1286 = vpop.f32.mrf.mxu0
        %v1287 = vadd.f32 %v1273, %v1286
        %1288 = vdwg.mxu0
        %v1289 = vmax.f32 %v1144, %v1285
        %v1290 = vmax.f32 %v1145, %v1287
        %v1291 = vld [vmem:[%s2] sm:$0x1]
        %v1293 = vperm.slane %v1291, 0
        %v1295 = vadd.f32 %v1289, %v1293
        %v1296 = vadd.f32 %v1290, %v1293
        %v1297 = vmax.f32 %v1295, 0.0
        %v1298 = vmax.f32 %v1296, 0.0
        %v1299 = vpack.c.bf16 %v1297, %v1297
        %v1300 = vpack.c.bf16 %v1298, %v1298
        %1301 = vst [vmem:[%s264] sm:$0xf] %v1299
        %1302 = vst [vmem:[%s264 + $0x4] sm:$0xf] %v1300
        %s1303 = smul.u32 2, %s14
        %p1304 = scmp.lt.s32.totalorder %s1303, 3
        %s1305 = scalar_select %p1304, %s1303, 3
        %s1306 = smul.addr %s1305, 4
        %s1307 = scalar_lea.vmem %s3, %s1306
        // Predicated region
        $region59: #{net_forward.4} parent=53 // pred_check
          %p1308 = pneg %p100
        $region60: #{net_forward.4} parent=53 // pred_check_branch
          %1310 = sbr.rel (%p1308) target = $region62
        $region61: #{net_forward.4} parent=53 // pred_region
          %s1311 = smul.u32 2, %s14
        $region62: #{net_forward.4} parent=53 // pred_fallthru
          _
      $region54: #{net_forward.4} parent=5 // pred_fallthru
        _
      %p1312 = scmp.le.s32.totalorder 2, %s9
      // Predicated region
      $region63: #{net_forward.4} parent=5 // pred_check
        %p1313 = pneg %p1312
      $region64: #{net_forward.4} parent=5 // pred_check_branch
        %1315 = sbr.rel (%p1313) target = $region66
      $region65: #{net_forward.4} parent=5 // pred_region
        %s1316 = ssub.s32 %s9, 2
        // Predicated region
        $region67: #{net_forward.4} parent=65 // pred_check
          %p1317 = pneg %p106
        $region68: #{net_forward.4} parent=65 // pred_check_branch
          %1319 = sbr.rel (%p1317) target = $region70
        $region69: #{net_forward.4} parent=65 // pred_region
          %s1320 = smul.u32 2, %s15
          %p1321 = scmp.lt.s32.totalorder %s1320, 3
          %s1322 = scalar_select %p1321, %s1320, 3
          %s1323 = smul.addr %s1322, 4
          %s1324 = scalar_lea.vmem %s3, %s1323
        $region70: #{net_forward.4} parent=65 // pred_fallthru
          _
      $region66: #{net_forward.4} parent=5 // pred_fallthru
        _
    $region6: #{net_forward.4} parent=1 // loop_footer
      %s13 = sadd.s32 1, %s9
    $region7: #{net_forward.4} parent=1 // loop_footer_branch
      %8 = sbr.rel target = $region3
    $region8: #{net_forward.4} parent=1 // loop_exit
      _

// kernel: net_forward.5
$region0: #{net_forward.5}
  #allocation0 [shape = 'u32[]', space=smem, size = 0x4, offset = 0x4, fixed_abs, tag = 'smem constant byte address 0x4 - core index']
  #allocation1 [shape = 'u32[72,128]{1,0:T(1,128)}', space=vmem, size = 0x9000, scoped, tag = 'internal scratch']
  %s0 = inlined_call_operand.vmem [shape: bf16[16,1024], index: 0, kind: input, shape index: {}]
  %s1 = inlined_call_operand.vmem [shape: bf16[1024,128], index: 1, kind: input, shape index: {}]
  %s2 = inlined_call_operand.vmem [shape: f32[1,128], index: 2, kind: input, shape index: {}]
  %s3 = inlined_call_operand.vmem [shape: bf16[128,128], index: 3, kind: input, shape index: {}]
  %s4 = inlined_call_operand.vmem [shape: f32[1,128], index: 4, kind: input, shape index: {}]
  %s5 = inlined_call_operand.vmem [shape: f32[16,128], index: 5, kind: output, shape index: {}]
  %s6 = sld [smem:[#allocation0]]
  $region30: #{net_forward.5} parent=0
    _
  %s8 = ssub.s32 1, %s6
  %s9 = scalar_select 0, %s8, %s6
  // Predicated region
  $region2: #{net_forward.5} parent=0 // pred_check
    _
  $region3: #{net_forward.5} parent=0 // pred_check_branch
    %11 = sbr.rel (0) target = $region5
  $region4: #{net_forward.5} parent=0 // pred_region
    _
  $region5: #{net_forward.5} parent=0 // pred_fallthru
    _
  // Predicated region
  $region6: #{net_forward.5} parent=0 // pred_check
    _
  $region7: #{net_forward.5} parent=0 // pred_check_branch
    %13 = sbr.rel (0) target = $region9
  $region8: #{net_forward.5} parent=0 // pred_region
    _
  $region9: #{net_forward.5} parent=0 // pred_fallthru
    _
  // Predicated region
  $region10: #{net_forward.5} parent=0 // pred_check
    _
  $region11: #{net_forward.5} parent=0 // pred_check_branch
    %15 = sbr.rel (0) target = $region13
  $region12: #{net_forward.5} parent=0 // pred_region
    _
  $region13: #{net_forward.5} parent=0 // pred_fallthru
    _
  // Predicated region
  $region14: #{net_forward.5} parent=0 // pred_check
    _
  $region15: #{net_forward.5} parent=0 // pred_check_branch
    %17 = sbr.rel (0) target = $region17
  $region16: #{net_forward.5} parent=0 // pred_region
    _
  $region17: #{net_forward.5} parent=0 // pred_fallthru
    _
  // Predicated region
  $region18: #{net_forward.5} parent=0 // pred_check
    _
  $region19: #{net_forward.5} parent=0 // pred_check_branch
    %19 = sbr.rel (0) target = $region21
  $region20: #{net_forward.5} parent=0 // pred_region
    _
  $region21: #{net_forward.5} parent=0 // pred_fallthru
    _
  %v20 = vld [vmem:[%s0] sm:$0xff]
  %v21 = vld [vmem:[%s0 + $0x8] sm:$0xff]
  %v22 = vld [vmem:[%s0 + $0x10] sm:$0xff]
  %v23 = vld [vmem:[%s0 + $0x18] sm:$0xff]
  %v24 = vld [vmem:[%s0 + $0x20] sm:$0xff]
  %v25 = vld [vmem:[%s0 + $0x28] sm:$0xff]
  %v26 = vld [vmem:[%s0 + $0x30] sm:$0xff]
  %v27 = vld [vmem:[%s0 + $0x38] sm:$0xff]
  %v28 = vld [vmem:[%s1] sm:$0xf]
  %v29 = vld [vmem:[%s1 + $0x4] sm:$0xf]
  %v30 = vld [vmem:[%s1 + $0x8] sm:$0xf]
  %v31 = vld [vmem:[%s1 + $0xc] sm:$0xf]
  %v32 = vld [vmem:[%s1 + $0x10] sm:$0xf]
  %v33 = vld [vmem:[%s1 + $0x14] sm:$0xf]
  %v34 = vld [vmem:[%s1 + $0x18] sm:$0xf]
  %v35 = vld [vmem:[%s1 + $0x1c] sm:$0xf]
  %v36 = vld [vmem:[%s1 + $0x20] sm:$0xf]
  %v37 = vld [vmem:[%s1 + $0x24] sm:$0xf]
  %v38 = vld [vmem:[%s1 + $0x28] sm:$0xf]
  %v39 = vld [vmem:[%s1 + $0x2c] sm:$0xf]
  %v40 = vld [vmem:[%s1 + $0x30] sm:$0xf]
  %v41 = vld [vmem:[%s1 + $0x34] sm:$0xf]
  %v42 = vld [vmem:[%s1 + $0x38] sm:$0xf]
  %v43 = vld [vmem:[%s1 + $0x3c] sm:$0xf]
  %v44 = vld [vmem:[%s1 + $0x40] sm:$0xf]
  %v45 = vld [vmem:[%s1 + $0x44] sm:$0xf]
  %v46 = vld [vmem:[%s1 + $0x48] sm:$0xf]
  %v47 = vld [vmem:[%s1 + $0x4c] sm:$0xf]
  %v48 = vld [vmem:[%s1 + $0x50] sm:$0xf]
  %v49 = vld [vmem:[%s1 + $0x54] sm:$0xf]
  %v50 = vld [vmem:[%s1 + $0x58] sm:$0xf]
  %v51 = vld [vmem:[%s1 + $0x5c] sm:$0xf]
  %v52 = vld [vmem:[%s1 + $0x60] sm:$0xf]
  %v53 = vld [vmem:[%s1 + $0x64] sm:$0xf]
  %v54 = vld [vmem:[%s1 + $0x68] sm:$0xf]
  %v55 = vld [vmem:[%s1 + $0x6c] sm:$0xf]
  %v56 = vld [vmem:[%s1 + $0x70] sm:$0xf]
  %v57 = vld [vmem:[%s1 + $0x74] sm:$0xf]
  %v58 = vld [vmem:[%s1 + $0x78] sm:$0xf]
  %v59 = vld [vmem:[%s1 + $0x7c] sm:$0xf]
  %v60 = vld [vmem:[%s1 + $0x80] sm:$0xf]
  %v61 = vld [vmem:[%s1 + $0x84] sm:$0xf]
  %v62 = vld [vmem:[%s1 + $0x88] sm:$0xf]
  %v63 = vld [vmem:[%s1 + $0x8c] sm:$0xf]
  %v64 = vld [vmem:[%s1 + $0x90] sm:$0xf]
  %v65 = vld [vmem:[%s1 + $0x94] sm:$0xf]
  %v66 = vld [vmem:[%s1 + $0x98] sm:$0xf]
  %v67 = vld [vmem:[%s1 + $0x9c] sm:$0xf]
  %v68 = vld [vmem:[%s1 + $0xa0] sm:$0xf]
  %v69 = vld [vmem:[%s1 + $0xa4] sm:$0xf]
  %v70 = vld [vmem:[%s1 + $0xa8] sm:$0xf]
  %v71 = vld [vmem:[%s1 + $0xac] sm:$0xf]
  %v72 = vld [vmem:[%s1 + $0xb0] sm:$0xf]
  %v73 = vld [vmem:[%s1 + $0xb4] sm:$0xf]
  %v74 = vld [vmem:[%s1 + $0xb8] sm:$0xf]
  %v75 = vld [vmem:[%s1 + $0xbc] sm:$0xf]
  %v76 = vld [vmem:[%s1 + $0xc0] sm:$0xf]
  %v77 = vld [vmem:[%s1 + $0xc4] sm:$0xf]
  %v78 = vld [vmem:[%s1 + $0xc8] sm:$0xf]
  %v79 = vld [vmem:[%s1 + $0xcc] sm:$0xf]
  %v80 = vld [vmem:[%s1 + $0xd0] sm:$0xf]
  %v81 = vld [vmem:[%s1 + $0xd4] sm:$0xf]
  %v82 = vld [vmem:[%s1 + $0xd8] sm:$0xf]
  %v83 = vld [vmem:[%s1 + $0xdc] sm:$0xf]
  %v84 = vld [vmem:[%s1 + $0xe0] sm:$0xf]
  %v85 = vld [vmem:[%s1 + $0xe4] sm:$0xf]
  %v86 = vld [vmem:[%s1 + $0xe8] sm:$0xf]
  %v87 = vld [vmem:[%s1 + $0xec] sm:$0xf]
  %v88 = vld [vmem:[%s1 + $0xf0] sm:$0xf]
  %v89 = vld [vmem:[%s1 + $0xf4] sm:$0xf]
  %v90 = vld [vmem:[%s1 + $0xf8] sm:$0xf]
  %v91 = vld [vmem:[%s1 + $0xfc] sm:$0xf]
  %v92 = vld [vmem:[%s1 + $0x100] sm:$0xf]
  %v93 = vld [vmem:[%s1 + $0x104] sm:$0xf]
  %v94 = vld [vmem:[%s1 + $0x108] sm:$0xf]
  %v95 = vld [vmem:[%s1 + $0x10c] sm:$0xf]
  %v96 = vld [vmem:[%s1 + $0x110] sm:$0xf]
  %v97 = vld [vmem:[%s1 + $0x114] sm:$0xf]
  %v98 = vld [vmem:[%s1 + $0x118] sm:$0xf]
  %v99 = vld [vmem:[%s1 + $0x11c] sm:$0xf]
  %v100 = vld [vmem:[%s1 + $0x120] sm:$0xf]
  %v101 = vld [vmem:[%s1 + $0x124] sm:$0xf]
  %v102 = vld [vmem:[%s1 + $0x128] sm:$0xf]
  %v103 = vld [vmem:[%s1 + $0x12c] sm:$0xf]
  %v104 = vld [vmem:[%s1 + $0x130] sm:$0xf]
  %v105 = vld [vmem:[%s1 + $0x134] sm:$0xf]
  %v106 = vld [vmem:[%s1 + $0x138] sm:$0xf]
  %v107 = vld [vmem:[%s1 + $0x13c] sm:$0xf]
  %v108 = vld [vmem:[%s1 + $0x140] sm:$0xf]
  %v109 = vld [vmem:[%s1 + $0x144] sm:$0xf]
  %v110 = vld [vmem:[%s1 + $0x148] sm:$0xf]
  %v111 = vld [vmem:[%s1 + $0x14c] sm:$0xf]
  %v112 = vld [vmem:[%s1 + $0x150] sm:$0xf]
  %v113 = vld [vmem:[%s1 + $0x154] sm:$0xf]
  %v114 = vld [vmem:[%s1 + $0x158] sm:$0xf]
  %v115 = vld [vmem:[%s1 + $0x15c] sm:$0xf]
  %v116 = vld [vmem:[%s1 + $0x160] sm:$0xf]
  %v117 = vld [vmem:[%s1 + $0x164] sm:$0xf]
  %v118 = vld [vmem:[%s1 + $0x168] sm:$0xf]
  %v119 = vld [vmem:[%s1 + $0x16c] sm:$0xf]
  %v120 = vld [vmem:[%s1 + $0x170] sm:$0xf]
  %v121 = vld [vmem:[%s1 + $0x174] sm:$0xf]
  %v122 = vld [vmem:[%s1 + $0x178] sm:$0xf]
  %v123 = vld [vmem:[%s1 + $0x17c] sm:$0xf]
  %v124 = vld [vmem:[%s1 + $0x180] sm:$0xf]
  %v125 = vld [vmem:[%s1 + $0x184] sm:$0xf]
  %v126 = vld [vmem:[%s1 + $0x188] sm:$0xf]
  %v127 = vld [vmem:[%s1 + $0x18c] sm:$0xf]
  %v128 = vld [vmem:[%s1 + $0x190] sm:$0xf]
  %v129 = vld [vmem:[%s1 + $0x194] sm:$0xf]
  %v130 = vld [vmem:[%s1 + $0x198] sm:$0xf]
  %v131 = vld [vmem:[%s1 + $0x19c] sm:$0xf]
  %v132 = vld [vmem:[%s1 + $0x1a0] sm:$0xf]
  %v133 = vld [vmem:[%s1 + $0x1a4] sm:$0xf]
  %v134 = vld [vmem:[%s1 + $0x1a8] sm:$0xf]
  %v135 = vld [vmem:[%s1 + $0x1ac] sm:$0xf]
  %v136 = vld [vmem:[%s1 + $0x1b0] sm:$0xf]
  %v137 = vld [vmem:[%s1 + $0x1b4] sm:$0xf]
  %v138 = vld [vmem:[%s1 + $0x1b8] sm:$0xf]
  %v139 = vld [vmem:[%s1 + $0x1bc] sm:$0xf]
  %v140 = vld [vmem:[%s1 + $0x1c0] sm:$0xf]
  %v141 = vld [vmem:[%s1 + $0x1c4] sm:$0xf]
  %v142 = vld [vmem:[%s1 + $0x1c8] sm:$0xf]
  %v143 = vld [vmem:[%s1 + $0x1cc] sm:$0xf]
  %v144 = vld [vmem:[%s1 + $0x1d0] sm:$0xf]
  %v145 = vld [vmem:[%s1 + $0x1d4] sm:$0xf]
  %v146 = vld [vmem:[%s1 + $0x1d8] sm:$0xf]
  %v147 = vld [vmem:[%s1 + $0x1dc] sm:$0xf]
  %v148 = vld [vmem:[%s1 + $0x1e0] sm:$0xf]
  %v149 = vld [vmem:[%s1 + $0x1e4] sm:$0xf]
  %v150 = vld [vmem:[%s1 + $0x1e8] sm:$0xf]
  %v151 = vld [vmem:[%s1 + $0x1ec] sm:$0xf]
  %v152 = vld [vmem:[%s1 + $0x1f0] sm:$0xf]
  %v153 = vld [vmem:[%s1 + $0x1f4] sm:$0xf]
  %v154 = vld [vmem:[%s1 + $0x1f8] sm:$0xf]
  %v155 = vld [vmem:[%s1 + $0x1fc] sm:$0xf]
  %v156 = vld [vmem:[%s2] sm:$0x1]
  %v158 = vperm.slane %v156, 0
  %v168 = vunpack.c.l.b16 %v20
  %v169 = vunpack.c.h.b16 %v20
  %v170 = vunpack.c.l.b16 %v21
  %v171 = vunpack.c.h.b16 %v21
  %v172 = vunpack.c.l.b16 %v22
  %v173 = vunpack.c.h.b16 %v22
  %v174 = vunpack.c.l.b16 %v23
  %v175 = vunpack.c.h.b16 %v23
  %v176 = vunpack.c.l.b16 %v24
  %v177 = vunpack.c.h.b16 %v24
  %v178 = vunpack.c.l.b16 %v25
  %v179 = vunpack.c.h.b16 %v25
  %v180 = vunpack.c.l.b16 %v26
  %v181 = vunpack.c.h.b16 %v26
  %v182 = vunpack.c.l.b16 %v27
  %v183 = vunpack.c.h.b16 %v27
  %v184 = vpack.c.b16 %v176, %v168
  %v185 = vpack.c.b16 %v177, %v169
  %v186 = vpack.c.b16 %v178, %v170
  %v187 = vpack.c.b16 %v179, %v171
  %v188 = vpack.c.b16 %v180, %v172
  %v189 = vpack.c.b16 %v181, %v173
  %v190 = vpack.c.b16 %v182, %v174
  %v191 = vpack.c.b16 %v183, %v175
  %v328 = vunpack.c.l.b16 %v28
  %v329 = vunpack.c.l.b16 %v29
  %v330 = vunpack.c.l.b16 %v30
  %v331 = vunpack.c.l.b16 %v31
  %v332 = vunpack.c.l.b16 %v32
  %v333 = vunpack.c.l.b16 %v33
  %v334 = vunpack.c.l.b16 %v34
  %v335 = vunpack.c.l.b16 %v35
  %v336 = vunpack.c.l.b16 %v36
  %v337 = vunpack.c.l.b16 %v37
  %v338 = vunpack.c.l.b16 %v38
  %v339 = vunpack.c.l.b16 %v39
  %v340 = vunpack.c.l.b16 %v40
  %v341 = vunpack.c.l.b16 %v41
  %v342 = vunpack.c.l.b16 %v42
  %v343 = vunpack.c.l.b16 %v43
  %v344 = vunpack.c.l.b16 %v44
  %v345 = vunpack.c.l.b16 %v45
  %v346 = vunpack.c.l.b16 %v46
  %v347 = vunpack.c.l.b16 %v47
  %v348 = vunpack.c.l.b16 %v48
  %v349 = vunpack.c.l.b16 %v49
  %v350 = vunpack.c.l.b16 %v50
  %v351 = vunpack.c.l.b16 %v51
  %v352 = vunpack.c.l.b16 %v52
  %v353 = vunpack.c.l.b16 %v53
  %v354 = vunpack.c.l.b16 %v54
  %v355 = vunpack.c.l.b16 %v55
  %v356 = vunpack.c.l.b16 %v56
  %v357 = vunpack.c.l.b16 %v57
  %v358 = vunpack.c.l.b16 %v58
  %v359 = vunpack.c.l.b16 %v59
  %v360 = vunpack.c.l.b16 %v60
  %v361 = vunpack.c.l.b16 %v61
  %v362 = vunpack.c.l.b16 %v62
  %v363 = vunpack.c.l.b16 %v63
  %v364 = vunpack.c.l.b16 %v64
  %v365 = vunpack.c.l.b16 %v65
  %v366 = vunpack.c.l.b16 %v66
  %v367 = vunpack.c.l.b16 %v67
  %v368 = vunpack.c.l.b16 %v68
  %v369 = vunpack.c.l.b16 %v69
  %v370 = vunpack.c.l.b16 %v70
  %v371 = vunpack.c.l.b16 %v71
  %v372 = vunpack.c.l.b16 %v72
  %v373 = vunpack.c.l.b16 %v73
  %v374 = vunpack.c.l.b16 %v74
  %v375 = vunpack.c.l.b16 %v75
  %v376 = vunpack.c.l.b16 %v76
  %v377 = vunpack.c.l.b16 %v77
  %v378 = vunpack.c.l.b16 %v78
  %v379 = vunpack.c.l.b16 %v79
  %v380 = vunpack.c.l.b16 %v80
  %v381 = vunpack.c.l.b16 %v81
  %v382 = vunpack.c.l.b16 %v82
  %v383 = vunpack.c.l.b16 %v83
  %v384 = vunpack.c.l.b16 %v84
  %v385 = vunpack.c.l.b16 %v85
  %v386 = vunpack.c.l.b16 %v86
  %v387 = vunpack.c.l.b16 %v87
  %v388 = vunpack.c.l.b16 %v88
  %v389 = vunpack.c.l.b16 %v89
  %v390 = vunpack.c.l.b16 %v90
  %v391 = vunpack.c.l.b16 %v91
  %v392 = vunpack.c.l.b16 %v92
  %v393 = vunpack.c.l.b16 %v93
  %v394 = vunpack.c.l.b16 %v94
  %v395 = vunpack.c.l.b16 %v95
  %v396 = vunpack.c.l.b16 %v96
  %v397 = vunpack.c.l.b16 %v97
  %v398 = vunpack.c.l.b16 %v98
  %v399 = vunpack.c.l.b16 %v99
  %v400 = vunpack.c.l.b16 %v100
  %v401 = vunpack.c.l.b16 %v101
  %v402 = vunpack.c.l.b16 %v102
  %v403 = vunpack.c.l.b16 %v103
  %v404 = vunpack.c.l.b16 %v104
  %v405 = vunpack.c.l.b16 %v105
  %v406 = vunpack.c.l.b16 %v106
  %v407 = vunpack.c.l.b16 %v107
  %v408 = vunpack.c.l.b16 %v108
  %v409 = vunpack.c.l.b16 %v109
  %v410 = vunpack.c.l.b16 %v110
  %v411 = vunpack.c.l.b16 %v111
  %v412 = vunpack.c.l.b16 %v112
  %v413 = vunpack.c.l.b16 %v113
  %v414 = vunpack.c.l.b16 %v114
  %v415 = vunpack.c.l.b16 %v115
  %v416 = vunpack.c.l.b16 %v116
  %v417 = vunpack.c.l.b16 %v117
  %v418 = vunpack.c.l.b16 %v118
  %v419 = vunpack.c.l.b16 %v119
  %v420 = vunpack.c.l.b16 %v120
  %v421 = vunpack.c.l.b16 %v121
  %v422 = vunpack.c.l.b16 %v122
  %v423 = vunpack.c.l.b16 %v123
  %v424 = vunpack.c.l.b16 %v124
  %v425 = vunpack.c.l.b16 %v125
  %v426 = vunpack.c.l.b16 %v126
  %v427 = vunpack.c.l.b16 %v127
  %v428 = vunpack.c.l.b16 %v128
  %v429 = vunpack.c.l.b16 %v129
  %v430 = vunpack.c.l.b16 %v130
  %v431 = vunpack.c.l.b16 %v131
  %v432 = vunpack.c.l.b16 %v132
  %v433 = vunpack.c.l.b16 %v133
  %v434 = vunpack.c.l.b16 %v134
  %v435 = vunpack.c.l.b16 %v135
  %v436 = vunpack.c.l.b16 %v136
  %v437 = vunpack.c.l.b16 %v137
  %v438 = vunpack.c.l.b16 %v138
  %v439 = vunpack.c.l.b16 %v139
  %v440 = vunpack.c.l.b16 %v140
  %v441 = vunpack.c.l.b16 %v141
  %v442 = vunpack.c.l.b16 %v142
  %v443 = vunpack.c.l.b16 %v143
  %v444 = vunpack.c.l.b16 %v144
  %v445 = vunpack.c.l.b16 %v145
  %v446 = vunpack.c.l.b16 %v146
  %v447 = vunpack.c.l.b16 %v147
  %v448 = vunpack.c.l.b16 %v148
  %v449 = vunpack.c.l.b16 %v149
  %v450 = vunpack.c.l.b16 %v150
  %v451 = vunpack.c.l.b16 %v151
  %v452 = vunpack.c.l.b16 %v152
  %v453 = vunpack.c.l.b16 %v153
  %v454 = vunpack.c.l.b16 %v154
  %v455 = vunpack.c.l.b16 %v155
  %v456 = vpack.c.b16 %v329, %v328
  %v457 = vpack.c.b16 %v331, %v330
  %v458 = vpack.c.b16 %v333, %v332
  %v459 = vpack.c.b16 %v335, %v334
  %v460 = vpack.c.b16 %v337, %v336
  %v461 = vpack.c.b16 %v339, %v338
  %v462 = vpack.c.b16 %v341, %v340
  %v463 = vpack.c.b16 %v343, %v342
  %v464 = vpack.c.b16 %v345, %v344
  %v465 = vpack.c.b16 %v347, %v346
  %v466 = vpack.c.b16 %v349, %v348
  %v467 = vpack.c.b16 %v351, %v350
  %v468 = vpack.c.b16 %v353, %v352
  %v469 = vpack.c.b16 %v355, %v354
  %v470 = vpack.c.b16 %v357, %v356
  %v471 = vpack.c.b16 %v359, %v358
  %v472 = vpack.c.b16 %v361, %v360
  %v473 = vpack.c.b16 %v363, %v362
  %v474 = vpack.c.b16 %v365, %v364
  %v475 = vpack.c.b16 %v367, %v366
  %v476 = vpack.c.b16 %v369, %v368
  %v477 = vpack.c.b16 %v371, %v370
  %v478 = vpack.c.b16 %v373, %v372
  %v479 = vpack.c.b16 %v375, %v374
  %v480 = vpack.c.b16 %v377, %v376
  %v481 = vpack.c.b16 %v379, %v378
  %v482 = vpack.c.b16 %v381, %v380
  %v483 = vpack.c.b16 %v383, %v382
  %v484 = vpack.c.b16 %v385, %v384
  %v485 = vpack.c.b16 %v387, %v386
  %v486 = vpack.c.b16 %v389, %v388
  %v487 = vpack.c.b16 %v391, %v390
  %v488 = vpack.c.b16 %v393, %v392
  %v489 = vpack.c.b16 %v395, %v394
  %v490 = vpack.c.b16 %v397, %v396
  %v491 = vpack.c.b16 %v399, %v398
  %v492 = vpack.c.b16 %v401, %v400
  %v493 = vpack.c.b16 %v403, %v402
  %v494 = vpack.c.b16 %v405, %v404
  %v495 = vpack.c.b16 %v407, %v406
  %v496 = vpack.c.b16 %v409, %v408
  %v497 = vpack.c.b16 %v411, %v410
  %v498 = vpack.c.b16 %v413, %v412
  %v499 = vpack.c.b16 %v415, %v414
  %v500 = vpack.c.b16 %v417, %v416
  %v501 = vpack.c.b16 %v419, %v418
  %v502 = vpack.c.b16 %v421, %v420
  %v503 = vpack.c.b16 %v423, %v422
  %v504 = vpack.c.b16 %v425, %v424
  %v505 = vpack.c.b16 %v427, %v426
  %v506 = vpack.c.b16 %v429, %v428
  %v507 = vpack.c.b16 %v431, %v430
  %v508 = vpack.c.b16 %v433, %v432
  %v509 = vpack.c.b16 %v435, %v434
  %v510 = vpack.c.b16 %v437, %v436
  %v511 = vpack.c.b16 %v439, %v438
  %v512 = vpack.c.b16 %v441, %v440
  %v513 = vpack.c.b16 %v443, %v442
  %v514 = vpack.c.b16 %v445, %v444
  %v515 = vpack.c.b16 %v447, %v446
  %v516 = vpack.c.b16 %v449, %v448
  %v517 = vpack.c.b16 %v451, %v450
  %v518 = vpack.c.b16 %v453, %v452
  %v519 = vpack.c.b16 %v455, %v454
  %584 = vmatpush.bf16.msra.mxu0 %v463
  %585 = vmatpush.bf16.msra.mxu0 %v462
  %586 = vmatpush.bf16.msra.mxu0 %v461
  %587 = vmatpush.bf16.msra.mxu0 %v460
  %588 = vmatpush.bf16.msra.mxu0 %v459
  %589 = vmatpush.bf16.msra.mxu0 %v458
  %590 = vmatpush.bf16.msra.mxu0 %v457
  %591 = vmatpush.bf16.msra.mxu0 %v456
  %592 = vmatmul.bf16.gmra.mxu0 %v184
  %v593 = vpop.f32.mrf.mxu0
  %v594 = vadd.f32 %v158, %v593
  %v595 = vpop.f32.mrf.mxu0
  %v596 = vadd.f32 %v158, %v595
  %597 = vdwg.mxu0
  %598 = vmatpush.bf16.msra.mxu0 %v471
  %599 = vmatpush.bf16.msra.mxu0 %v470
  %600 = vmatpush.bf16.msra.mxu0 %v469
  %601 = vmatpush.bf16.msra.mxu0 %v468
  %602 = vmatpush.bf16.msra.mxu0 %v467
  %603 = vmatpush.bf16.msra.mxu0 %v466
  %604 = vmatpush.bf16.msra.mxu0 %v465
  %605 = vmatpush.bf16.msra.mxu0 %v464
  %606 = vmatmul.bf16.gmra.mxu0 %v185
  %v607 = vpop.f32.mrf.mxu0
  %v608 = vadd.f32 %v594, %v607
  %v609 = vpop.f32.mrf.mxu0
  %v610 = vadd.f32 %v596, %v609
  %611 = vdwg.mxu0
  %612 = vmatpush.bf16.msra.mxu0 %v479
  %613 = vmatpush.bf16.msra.mxu0 %v478
  %614 = vmatpush.bf16.msra.mxu0 %v477
  %615 = vmatpush.bf16.msra.mxu0 %v476
  %616 = vmatpush.bf16.msra.mxu0 %v475
  %617 = vmatpush.bf16.msra.mxu0 %v474
  %618 = vmatpush.bf16.msra.mxu0 %v473
  %619 = vmatpush.bf16.msra.mxu0 %v472
  %620 = vmatmul.bf16.gmra.mxu0 %v186
  %v621 = vpop.f32.mrf.mxu0
  %v622 = vadd.f32 %v608, %v621
  %v623 = vpop.f32.mrf.mxu0
  %v624 = vadd.f32 %v610, %v623
  %625 = vdwg.mxu0
  %626 = vmatpush.bf16.msra.mxu0 %v487
  %627 = vmatpush.bf16.msra.mxu0 %v486
  %628 = vmatpush.bf16.msra.mxu0 %v485
  %629 = vmatpush.bf16.msra.mxu0 %v484
  %630 = vmatpush.bf16.msra.mxu0 %v483
  %631 = vmatpush.bf16.msra.mxu0 %v482
  %632 = vmatpush.bf16.msra.mxu0 %v481
  %633 = vmatpush.bf16.msra.mxu0 %v480
  %634 = vmatmul.bf16.gmra.mxu0 %v187
  %v635 = vpop.f32.mrf.mxu0
  %v636 = vadd.f32 %v622, %v635
  %v637 = vpop.f32.mrf.mxu0
  %v638 = vadd.f32 %v624, %v637
  %639 = vdwg.mxu0
  %640 = vmatpush.bf16.msra.mxu0 %v495
  %641 = vmatpush.bf16.msra.mxu0 %v494
  %642 = vmatpush.bf16.msra.mxu0 %v493
  %643 = vmatpush.bf16.msra.mxu0 %v492
  %644 = vmatpush.bf16.msra.mxu0 %v491
  %645 = vmatpush.bf16.msra.mxu0 %v490
  %646 = vmatpush.bf16.msra.mxu0 %v489
  %647 = vmatpush.bf16.msra.mxu0 %v488
  %648 = vmatmul.bf16.gmra.mxu0 %v188
  %v649 = vpop.f32.mrf.mxu0
  %v650 = vadd.f32 %v636, %v649
  %v651 = vpop.f32.mrf.mxu0
  %v652 = vadd.f32 %v638, %v651
  %653 = vdwg.mxu0
  %654 = vmatpush.bf16.msra.mxu0 %v503
  %655 = vmatpush.bf16.msra.mxu0 %v502
  %656 = vmatpush.bf16.msra.mxu0 %v501
  %657 = vmatpush.bf16.msra.mxu0 %v500
  %658 = vmatpush.bf16.msra.mxu0 %v499
  %659 = vmatpush.bf16.msra.mxu0 %v498
  %660 = vmatpush.bf16.msra.mxu0 %v497
  %661 = vmatpush.bf16.msra.mxu0 %v496
  %662 = vmatmul.bf16.gmra.mxu0 %v189
  %v663 = vpop.f32.mrf.mxu0
  %v664 = vadd.f32 %v650, %v663
  %v665 = vpop.f32.mrf.mxu0
  %v666 = vadd.f32 %v652, %v665
  %667 = vdwg.mxu0
  %668 = vmatpush.bf16.msra.mxu0 %v511
  %669 = vmatpush.bf16.msra.mxu0 %v510
  %670 = vmatpush.bf16.msra.mxu0 %v509
  %671 = vmatpush.bf16.msra.mxu0 %v508
  %672 = vmatpush.bf16.msra.mxu0 %v507
  %673 = vmatpush.bf16.msra.mxu0 %v506
  %674 = vmatpush.bf16.msra.mxu0 %v505
  %675 = vmatpush.bf16.msra.mxu0 %v504
  %676 = vmatmul.bf16.gmra.mxu0 %v190
  %v677 = vpop.f32.mrf.mxu0
  %v678 = vadd.f32 %v664, %v677
  %v679 = vpop.f32.mrf.mxu0
  %v680 = vadd.f32 %v666, %v679
  %681 = vdwg.mxu0
  %682 = vmatpush.bf16.msra.mxu0 %v519
  %683 = vmatpush.bf16.msra.mxu0 %v518
  %684 = vmatpush.bf16.msra.mxu0 %v517
  %685 = vmatpush.bf16.msra.mxu0 %v516
  %686 = vmatpush.bf16.msra.mxu0 %v515
  %687 = vmatpush.bf16.msra.mxu0 %v514
  %688 = vmatpush.bf16.msra.mxu0 %v513
  %689 = vmatpush.bf16.msra.mxu0 %v512
  %690 = vmatmul.bf16.gmra.mxu0 %v191
  %v691 = vpop.f32.mrf.mxu0
  %v692 = vadd.f32 %v678, %v691
  %v693 = vpop.f32.mrf.mxu0
  %v694 = vadd.f32 %v680, %v693
  %695 = vdwg.mxu0
  %v696 = vmax.f32 %v692, 0.0
  %v697 = vmax.f32 %v694, 0.0
  %v698 = vpack.c.bf16 %v697, %v696
  %v699 = vld [vmem:[%s3] sm:$0xf]
  %v700 = vld [vmem:[%s3 + $0x4] sm:$0xf]
  %v701 = vld [vmem:[%s3 + $0x8] sm:$0xf]
  %v702 = vld [vmem:[%s3 + $0xc] sm:$0xf]
  %v703 = vld [vmem:[%s3 + $0x10] sm:$0xf]
  %v704 = vld [vmem:[%s3 + $0x14] sm:$0xf]
  %v705 = vld [vmem:[%s3 + $0x18] sm:$0xf]
  %v706 = vld [vmem:[%s3 + $0x1c] sm:$0xf]
  %v707 = vld [vmem:[%s3 + $0x20] sm:$0xf]
  %v708 = vld [vmem:[%s3 + $0x24] sm:$0xf]
  %v709 = vld [vmem:[%s3 + $0x28] sm:$0xf]
  %v710 = vld [vmem:[%s3 + $0x2c] sm:$0xf]
  %v711 = vld [vmem:[%s3 + $0x30] sm:$0xf]
  %v712 = vld [vmem:[%s3 + $0x34] sm:$0xf]
  %v713 = vld [vmem:[%s3 + $0x38] sm:$0xf]
  %v714 = vld [vmem:[%s3 + $0x3c] sm:$0xf]
  %v715 = vld [vmem:[%s4] sm:$0x1]
  %v717 = vperm.slane %v715, 0
  %v735 = vunpack.c.l.b16 %v699
  %v736 = vunpack.c.l.b16 %v700
  %v737 = vunpack.c.l.b16 %v701
  %v738 = vunpack.c.l.b16 %v702
  %v739 = vunpack.c.l.b16 %v703
  %v740 = vunpack.c.l.b16 %v704
  %v741 = vunpack.c.l.b16 %v705
  %v742 = vunpack.c.l.b16 %v706
  %v743 = vunpack.c.l.b16 %v707
  %v744 = vunpack.c.l.b16 %v708
  %v745 = vunpack.c.l.b16 %v709
  %v746 = vunpack.c.l.b16 %v710
  %v747 = vunpack.c.l.b16 %v711
  %v748 = vunpack.c.l.b16 %v712
  %v749 = vunpack.c.l.b16 %v713
  %v750 = vunpack.c.l.b16 %v714
  %v751 = vpack.c.b16 %v736, %v735
  %v752 = vpack.c.b16 %v738, %v737
  %v753 = vpack.c.b16 %v740, %v739
  %v754 = vpack.c.b16 %v742, %v741
  %v755 = vpack.c.b16 %v744, %v743
  %v756 = vpack.c.b16 %v746, %v745
  %v757 = vpack.c.b16 %v748, %v747
  %v758 = vpack.c.b16 %v750, %v749
  %767 = vmatpush.bf16.msra.mxu0 %v758
  %768 = vmatpush.bf16.msra.mxu0 %v757
  %769 = vmatpush.bf16.msra.mxu0 %v756
  %770 = vmatpush.bf16.msra.mxu0 %v755
  %771 = vmatpush.bf16.msra.mxu0 %v754
  %772 = vmatpush.bf16.msra.mxu0 %v753
  %773 = vmatpush.bf16.msra.mxu0 %v752
  %774 = vmatpush.bf16.msra.mxu0 %v751
  %775 = vmatmul.bf16.gmra.mxu0 %v698
  %v776 = vpop.f32.mrf.mxu0
  %v777 = vadd.f32 %v717, %v776
  %v778 = vpop.f32.mrf.mxu0
  %v779 = vadd.f32 %v717, %v778
  %780 = vdwg.mxu0
  %781 = vmax.xlane.f32.xlu0 %v777
  %v782 = vpop.xlane.xlu0 %781
  %783 = vmax.xlane.f32.xlu0 %v779
  %v784 = vpop.xlane.xlu0 %783
  %v785 = vsub.f32 %v777, %v782
  %v786 = vsub.f32 %v779, %v784
  %v787 = vmul.f32 %v785, 1.442695
  %v788 = vpow.pop %v787
  %v789 = vmul.f32 %v786, 1.442695
  %v790 = vpow.pop %v789
  %791 = vadd.xlane.f32.xlu0 %v788
  %v792 = vpop.xlane.xlu0 %791
  %793 = vadd.xlane.f32.xlu0 %v790
  %v794 = vpop.xlane.xlu0 %793
  %v795 = vlog2.pop %v792
  %v796 = vmul.f32 %v795, 0.6931472
  %v797 = vlog2.pop %v794
  %v798 = vmul.f32 %v797, 0.6931472
  %v799 = vsub.f32 %v785, %v796
  %v800 = vsub.f32 %v786, %v798
  %801 = vst [vmem:[%s5] sm:$0xff] %v799
  %802 = vst [vmem:[%s5 + $0x8] sm:$0xff] %v800
  // Predicated region
  $region22: #{net_forward.5} parent=0 // pred_check
    _
  $region23: #{net_forward.5} parent=0 // pred_check_branch
    %804 = sbr.rel (0) target = $region25
  $region24: #{net_forward.5} parent=0 // pred_region
    _
  $region25: #{net_forward.5} parent=0 // pred_fallthru
    _
  // Predicated region
  $region26: #{net_forward.5} parent=0 // pred_check
    _
  $region27: #{net_forward.5} parent=0 // pred_check_branch
    %806 = sbr.rel (0) target = $region29
  $region28: #{net_forward.5} parent=0 // pred_region
    _
  $region29: #{net_forward.5} parent=0 // pred_fallthru
    _

</llo_original>
